<compile_context>
chip_gen: v5e
topology: v5e:2x2
jax: 0.10.0
libtpu: 0.0.40
codegen_flags: <defaults>
</compile_context>

<pallas_src>
import math
from functools import partial

import jax
import jax.numpy as jnp
from jax.experimental import pallas as pl
from jax.experimental.pallas import tpu as pltpu


# ----------------------------- kernel helpers ------------------------------

def _sigmoid(x):
    # EUP tanh instead of exp + VALU divide inside the serial loop.
    return 0.5 * (jnp.tanh(0.5 * x) + 1.0)


def _cell_step(gx, h, c, whh_t, H):
    """One LSTM cell step with the input projection `gx` already hoisted.

    gates = gx + h @ W_hh^T ; PyTorch gate order i, f, g, o.
    """
    gates = gx + jnp.dot(h, whh_t, preferred_element_type=jnp.float32)
    i = _sigmoid(gates[:, 0 * H:1 * H])
    f = _sigmoid(gates[:, 1 * H:2 * H])
    g = jnp.tanh(gates[:, 2 * H:3 * H])
    o = _sigmoid(gates[:, 3 * H:4 * H])
    c_new = f * c + i * g
    h_new = o * jnp.tanh(c_new)
    return h_new, c_new


# ------------------------------ fused kernel --------------------------------

def _make_fused_kernel(T, B, L, E, H, nlayers, ntoken):
    """Builds the fused forward kernel (everything resident in VMEM)."""
    N = T * B
    n_fixed_in = 12
    n_layer_in = 3 * nlayers

    def kernel(*refs):
        (emb_ref, len_ref,
         wih_f_ref, whh_f_ref, bg_f_ref,
         wih_b_ref, whh_b_ref, bg_b_ref,
         wcomb_ref, bcomb_ref,
         h0_ref, c0_ref) = refs[:n_fixed_in]
        layer_refs = refs[n_fixed_in:n_fixed_in + n_layer_in]
        dec_w_ref, dec_b_ref = refs[n_fixed_in + n_layer_in:
                                    n_fixed_in + n_layer_in + 2]
        dec_out_ref, hT_ref, cT_ref = refs[n_fixed_in + n_layer_in + 2:
                                           n_fixed_in + n_layer_in + 5]
        gxf_scr, gxb_scr = refs[n_fixed_in + n_layer_in + 5:]

        # ------------------ BiLSTM over ngram characters -------------------
        emb = emb_ref[...]                               # (L*N, E)
        lens = len_ref[...]                              # (N, 1) int32

        # Hoisted input projections for BOTH directions: one big MXU matmul
        # each over all L positions and N sequences.
        gxf_scr[...] = (jnp.dot(emb, wih_f_ref[...],
                                preferred_element_type=jnp.float32)
                        + bg_f_ref[...])                 # (L*N, 4E)
        gxb_scr[...] = (jnp.dot(emb, wih_b_ref[...],
                                preferred_element_type=jnp.float32)
                        + bg_b_ref[...])                 # (L*N, 4E)

        whh_f = whh_f_ref[...]
        whh_b = whh_b_ref[...]

        h_f = jnp.zeros((N, E), jnp.float32)
        c_f = jnp.zeros((N, E), jnp.float32)
        h_b = jnp.zeros((N, E), jnp.float32)
        c_b = jnp.zeros((N, E), jnp.float32)

        # Interleaved, fully unrolled forward/backward recurrence with
        # packed-sequence masking (state frozen once t >= len).
        for s in range(L):
            tf = s
            tb = L - 1 - s

            hf_new, cf_new = _cell_step(gxf_scr[tf * N:(tf + 1) * N, :],
                                        h_f, c_f, whh_f, E)
            vf = lens > tf
            h_f = jnp.where(vf, hf_new, h_f)
            c_f = jnp.where(vf, cf_new, c_f)

            hb_new, cb_new = _cell_step(gxb_scr[tb * N:(tb + 1) * N, :],
                                        h_b, c_b, whh_b, E)
            vb = lens > tb
            h_b = jnp.where(vb, hb_new, h_b)
            c_b = jnp.where(vb, cb_new, c_b)

        # ---------------- combine: w_f(ht[0]) + w_b(ht[1]) -----------------
        # single stacked matmul: [h_f | h_b] @ [[W_f^T], [W_b^T]] + b_b
        hfb = jnp.concatenate([h_f, h_b], axis=1)        # (N, 2E)
        x = (jnp.dot(hfb, wcomb_ref[...],
                     preferred_element_type=jnp.float32)
             + bcomb_ref[...])                           # (N, E), N == T*B
        # (dropout on embeddings: identity in eval mode)

        # -------------------- main multi-layer LSTM ------------------------
        for l in range(nlayers):
            wih_t = layer_refs[3 * l][...]               # (in, 4H)
            whh_t = layer_refs[3 * l + 1][...]           # (H, 4H)
            bg = layer_refs[3 * l + 2][...]              # (1, 4H)

            # Hoisted input projection over the whole sequence.
            gx = (jnp.dot(x, wih_t, preferred_element_type=jnp.float32)
                  + bg)                                  # (T*B, 4H)

            h = h0_ref[l]                                # (B, H)
            c = c0_ref[l]
            ys = []
            for t in range(T):
                h, c = _cell_step(gx[t * B:(t + 1) * B, :], h, c, whh_t, H)
                ys.append(h)
            x = jnp.concatenate(ys, axis=0)              # (T*B, H)
            hT_ref[l] = h
            cT_ref[l] = c
            # (inter-layer / output dropout: identity in eval mode)

        # ----------------------------- decoder ------------------------------
        dec_out_ref[...] = (jnp.dot(x, dec_w_ref[...],
                                    preferred_element_type=jnp.float32)
                            + dec_b_ref[...])            # (T*B, ntoken)

    return kernel


_VMEM = pl.BlockSpec(memory_space=pltpu.MemorySpace.VMEM)


# --------------------------- parameter construction -------------------------

def init_params(key, *, ninp, nhid, nlayers, ntoken, ngram_num, ngram_pad_idx=0):
    """Weights stored pre-transposed ((in, out) layout) with LSTM biases
    (b_ih + b_hh) pre-combined, so no per-forward transpose/add is needed."""
    initrange = 0.1
    keys = iter(jax.random.split(key, 64))

    def u(shape, scale):
        return jax.random.uniform(next(keys), shape, jnp.float32, -scale, scale)

    p = {}
    # ngram embedding (uniform(-0.1, 0.1), pad row zeroed — matches init_weights)
    emb = u((ngram_num, ninp), initrange)
    p['ngram_emb'] = emb.at[ngram_pad_idx].set(0.0)

    # bidirectional LSTM (1 layer, input=hidden=ninp), PyTorch default init
    k = 1.0 / math.sqrt(ninp)
    for d in ('f', 'b'):
        p[f'bilstm_wih_{d}_t'] = jnp.transpose(u((4 * ninp, ninp), k))
        p[f'bilstm_whh_{d}_t'] = jnp.transpose(u((4 * ninp, ninp), k))
        p[f'bilstm_bg_{d}'] = (u((4 * ninp,), k) + u((4 * ninp,), k)).reshape(1, -1)

    # w_f (no bias) and w_b (bias zeroed per init_weights), stacked for one matmul
    kl = 1.0 / math.sqrt(ninp)
    w_f = u((ninp, ninp), kl)
    w_b = u((ninp, ninp), kl)
    p['w_comb_t'] = jnp.concatenate([jnp.transpose(w_f), jnp.transpose(w_b)], axis=0)
    p['w_b_bias'] = jnp.zeros((1, ninp), jnp.float32)

    # main multi-layer LSTM (rnn_type == 'LSTM')
    kh = 1.0 / math.sqrt(nhid)
    for l in range(nlayers):
        in_dim = ninp if l == 0 else nhid
        p[f'rnn_wih_l{l}_t'] = jnp.transpose(u((4 * nhid, in_dim), kh))
        p[f'rnn_whh_l{l}_t'] = jnp.transpose(u((4 * nhid, nhid), kh))
        p[f'rnn_bg_l{l}'] = (u((4 * nhid,), kh) + u((4 * nhid,), kh)).reshape(1, -1)

    # decoder (uniform(-0.1, 0.1), zero bias — matches init_weights)
    p['dec_w_t'] = jnp.transpose(u((ntoken, nhid), initrange))
    p['dec_b'] = jnp.zeros((1, ntoken), jnp.float32)
    return p


# --------------------------------- forward ----------------------------------

@partial(jax.jit, static_argnames=('nlayers',))
def rnn_model_forward(params, input_tokens, ngram_data, ngram_length, hidden,
                      *, nlayers):
    """Mirrors RNNModel.forward (input_tokens is unused, as in the PyTorch code)."""
    del input_tokens
    T, B, L = ngram_data.shape
    ninp = params['ngram_emb'].shape[1]
    nhid = params['rnn_whh_l0_t'].shape[0]
    ntoken = params['dec_w_t'].shape[1]
    N = T * B

    # Embedding gather stays in XLA (see TODO above); ordering: row l*N + n
    # holds ngram position l of flattened sequence n (n = t*B + b).
    flat = jnp.transpose(ngram_data.reshape(N, L)).reshape(L * N).astype(jnp.int32)
    emb = jnp.take(params['ngram_emb'], flat, axis=0)        # (L*N, ninp)
    lens = ngram_length.reshape(N, 1).astype(jnp.int32)      # (N, 1)

    h0, c0 = hidden

    layer_args = []
    for l in range(nlayers):
        layer_args += [params[f'rnn_wih_l{l}_t'],
                       params[f'rnn_whh_l{l}_t'],
                       params[f'rnn_bg_l{l}']]

    kernel = _make_fused_kernel(T, B, L, ninp, nhid, nlayers, ntoken)
    n_inputs = 12 + 3 * nlayers + 2

    decoded, hT, cT = pl.pallas_call(
        kernel,
        out_shape=(jax.ShapeDtypeStruct((N, ntoken), jnp.float32),
                   jax.ShapeDtypeStruct((nlayers, B, nhid), jnp.float32),
                   jax.ShapeDtypeStruct((nlayers, B, nhid), jnp.float32)),
        in_specs=[_VMEM] * n_inputs,
        out_specs=(_VMEM, _VMEM, _VMEM),
        scratch_shapes=[pltpu.VMEM((L * N, 4 * ninp), jnp.float32),
                        pltpu.VMEM((L * N, 4 * ninp), jnp.float32)],
    )(emb, lens,
      params['bilstm_wih_f_t'], params['bilstm_whh_f_t'], params['bilstm_bg_f'],
      params['bilstm_wih_b_t'], params['bilstm_whh_b_t'], params['bilstm_bg_b'],
      params['w_comb_t'], params['w_b_bias'],
      h0, c0,
      *layer_args,
      params['dec_w_t'], params['dec_b'])

    return decoded.reshape(T, B, ntoken), (hT, cT)


# ----------------------------------- main ------------------------------------

if __name__ == "__main__":
    seq_len, batch = 8, 2
    max_ngram_len = 6
    ninp = 32
    nhid = 32
    nlayers = 2
    ntoken = 64
    ngram_num = 50

    key = jax.random.PRNGKey(0)
    kp, kd, kl, ki = jax.random.split(key, 4)
    params = init_params(kp, ninp=ninp, nhid=nhid, nlayers=nlayers,
                         ntoken=ntoken, ngram_num=ngram_num, ngram_pad_idx=0)

    # ngram lengths in [1, max_ngram_len]; data padded with pad_idx = 0
    ngram_length = jax.random.randint(kl, (seq_len, batch), 1, max_ngram_len + 1)
    ngram_data = jax.random.randint(kd, (seq_len, batch, max_ngram_len), 1, ngram_num)
    pos = jnp.arange(max_ngram_len)[None, None, :]
    ngram_data = jnp.where(pos < ngram_length[..., None], ngram_data, 0)

    input_tokens = jax.random.randint(ki, (seq_len, batch), 0, ntoken)  # unused by forward

    hidden = (jnp.zeros((nlayers, batch, nhid), jnp.float32),
              jnp.zeros((nlayers, batch, nhid), jnp.float32))

    decoded, hidden_out = rnn_model_forward(params, input_tokens, ngram_data,
                                            ngram_length, hidden, nlayers=nlayers)
    jax.block_until_ready((decoded, hidden_out))

    assert decoded.shape == (seq_len, batch, ntoken), decoded.shape
    assert hidden_out[0].shape == (nlayers, batch, nhid)
    assert hidden_out[1].shape == (nlayers, batch, nhid)
    assert bool(jnp.all(jnp.isfinite(decoded)))
    print("KERNEL_OK")
</pallas_src>

<mosaic_0001>
module attributes {stable_mosaic.version = 11 : i64} {
  func.func @kernel(%arg0: memref<96x32xf32, #tpu.memory_space<vmem>>, %arg1: memref<16x1xi32, #tpu.memory_space<vmem>>, %arg2: memref<32x128xf32, #tpu.memory_space<vmem>>, %arg3: memref<32x128xf32, #tpu.memory_space<vmem>>, %arg4: memref<1x128xf32, #tpu.memory_space<vmem>>, %arg5: memref<32x128xf32, #tpu.memory_space<vmem>>, %arg6: memref<32x128xf32, #tpu.memory_space<vmem>>, %arg7: memref<1x128xf32, #tpu.memory_space<vmem>>, %arg8: memref<64x32xf32, #tpu.memory_space<vmem>>, %arg9: memref<1x32xf32, #tpu.memory_space<vmem>>, %arg10: memref<2x2x32xf32, #tpu.memory_space<vmem>>, %arg11: memref<2x2x32xf32, #tpu.memory_space<vmem>>, %arg12: memref<32x128xf32, #tpu.memory_space<vmem>>, %arg13: memref<32x128xf32, #tpu.memory_space<vmem>>, %arg14: memref<1x128xf32, #tpu.memory_space<vmem>>, %arg15: memref<32x128xf32, #tpu.memory_space<vmem>>, %arg16: memref<32x128xf32, #tpu.memory_space<vmem>>, %arg17: memref<1x128xf32, #tpu.memory_space<vmem>>, %arg18: memref<32x64xf32, #tpu.memory_space<vmem>>, %arg19: memref<1x64xf32, #tpu.memory_space<vmem>>, %arg20: memref<16x64xf32, #tpu.memory_space<vmem>>, %arg21: memref<2x2x32xf32, #tpu.memory_space<vmem>>, %arg22: memref<2x2x32xf32, #tpu.memory_space<vmem>>, %arg23: memref<96x128xf32, #tpu.memory_space<vmem>>, %arg24: memref<96x128xf32, #tpu.memory_space<vmem>>) attributes {dimension_semantics = [], scalar_prefetch = 0 : i64, scratch_operands = 2 : i64, tpu.core_type = #tpu.core_type<tc>} {
    %c0 = arith.constant 0 : index
    %c0_0 = arith.constant 0 : index
    %0 = vector.load %arg0[%c0, %c0_0] : memref<96x32xf32, #tpu.memory_space<vmem>>, vector<96x32xf32>
    %c0_1 = arith.constant 0 : index
    %c0_2 = arith.constant 0 : index
    %1 = vector.load %arg1[%c0_1, %c0_2] : memref<16x1xi32, #tpu.memory_space<vmem>>, vector<16x1xi32>
    %c0_3 = arith.constant 0 : index
    %c0_4 = arith.constant 0 : index
    %2 = vector.load %arg2[%c0_3, %c0_4] : memref<32x128xf32, #tpu.memory_space<vmem>>, vector<32x128xf32>
    %cst = arith.constant dense<0.000000e+00> : vector<96x128xf32>
    %3 = tpu.matmul %0, %2, %cst {dimension_numbers = #tpu.dot_dimension_numbers<[1], [0], [0], [1], [0, 0, 1, 1], [], []>} : vector<96x32xf32>, vector<32x128xf32>, vector<96x128xf32> -> vector<96x128xf32>
    %c0_5 = arith.constant 0 : index
    %c0_6 = arith.constant 0 : index
    %4 = vector.load %arg4[%c0_5, %c0_6] : memref<1x128xf32, #tpu.memory_space<vmem>>, vector<1x128xf32>
    %5 = vector.broadcast %4 : vector<1x128xf32> to vector<96x128xf32>
    %6 = arith.addf %3, %5 : vector<96x128xf32>
    %c0_7 = arith.constant 0 : index
    %c0_8 = arith.constant 0 : index
    %7 = vector.load %arg23[%c0_7, %c0_8] : memref<96x128xf32, #tpu.memory_space<vmem>>, vector<96x128xf32>
    tpu.vector_store %arg23[%c0_7, %c0_8], %6 {strides = array<i32>} : memref<96x128xf32, #tpu.memory_space<vmem>>, vector<96x128xf32>,
    %c0_9 = arith.constant 0 : index
    %c0_10 = arith.constant 0 : index
    %8 = vector.load %arg5[%c0_9, %c0_10] : memref<32x128xf32, #tpu.memory_space<vmem>>, vector<32x128xf32>
    %cst_11 = arith.constant dense<0.000000e+00> : vector<96x128xf32>
    %9 = tpu.matmul %0, %8, %cst_11 {dimension_numbers = #tpu.dot_dimension_numbers<[1], [0], [0], [1], [0, 0, 1, 1], [], []>} : vector<96x32xf32>, vector<32x128xf32>, vector<96x128xf32> -> vector<96x128xf32>
    %c0_12 = arith.constant 0 : index
    %c0_13 = arith.constant 0 : index
    %10 = vector.load %arg7[%c0_12, %c0_13] : memref<1x128xf32, #tpu.memory_space<vmem>>, vector<1x128xf32>
    %11 = vector.broadcast %10 : vector<1x128xf32> to vector<96x128xf32>
    %12 = arith.addf %9, %11 : vector<96x128xf32>
    %c0_14 = arith.constant 0 : index
    %c0_15 = arith.constant 0 : index
    %13 = vector.load %arg24[%c0_14, %c0_15] : memref<96x128xf32, #tpu.memory_space<vmem>>, vector<96x128xf32>
    tpu.vector_store %arg24[%c0_14, %c0_15], %12 {strides = array<i32>} : memref<96x128xf32, #tpu.memory_space<vmem>>, vector<96x128xf32>,
    %c0_16 = arith.constant 0 : index
    %c0_17 = arith.constant 0 : index
    %14 = vector.load %arg3[%c0_16, %c0_17] : memref<32x128xf32, #tpu.memory_space<vmem>>, vector<32x128xf32>
    %c0_18 = arith.constant 0 : index
    %c0_19 = arith.constant 0 : index
    %15 = vector.load %arg6[%c0_18, %c0_19] : memref<32x128xf32, #tpu.memory_space<vmem>>, vector<32x128xf32>
    %cst_20 = arith.constant 0.000000e+00 : f32
    %16 = vector.broadcast %cst_20 : f32 to vector<16x32xf32>
    %cst_21 = arith.constant 0.000000e+00 : f32
    %17 = vector.broadcast %cst_21 : f32 to vector<16x32xf32>
    %cst_22 = arith.constant 0.000000e+00 : f32
    %18 = vector.broadcast %cst_22 : f32 to vector<16x32xf32>
    %cst_23 = arith.constant 0.000000e+00 : f32
    %19 = vector.broadcast %cst_23 : f32 to vector<16x32xf32>
    %c0_24 = arith.constant 0 : index
    %c0_25 = arith.constant 0 : index
    %20 = vector.load %arg23[%c0_24, %c0_25] : memref<96x128xf32, #tpu.memory_space<vmem>>, vector<16x128xf32>
    %cst_26 = arith.constant dense<0.000000e+00> : vector<16x128xf32>
    %21 = tpu.matmul %16, %14, %cst_26 {dimension_numbers = #tpu.dot_dimension_numbers<[1], [0], [0], [1], [0, 0, 1, 1], [], []>} : vector<16x32xf32>, vector<32x128xf32>, vector<16x128xf32> -> vector<16x128xf32>
    %22 = arith.addf %20, %21 : vector<16x128xf32>
    %23 = vector.extract_strided_slice %22 {offsets = [0, 0], sizes = [16, 32], strides = [1, 1]} : vector<16x128xf32> to vector<16x32xf32>
    %cst_27 = arith.constant 5.000000e-01 : f32
    %24 = vector.broadcast %cst_27 : f32 to vector<16x32xf32>
    %25 = arith.mulf %24, %23 : vector<16x32xf32>
    %26 = math.tanh %25 : vector<16x32xf32>
    %cst_28 = arith.constant 1.000000e+00 : f32
    %27 = vector.broadcast %cst_28 : f32 to vector<16x32xf32>
    %28 = arith.addf %26, %27 : vector<16x32xf32>
    %cst_29 = arith.constant 5.000000e-01 : f32
    %29 = vector.broadcast %cst_29 : f32 to vector<16x32xf32>
    %30 = arith.mulf %29, %28 : vector<16x32xf32>
    %31 = vector.extract_strided_slice %22 {offsets = [0, 32], sizes = [16, 32], strides = [1, 1]} : vector<16x128xf32> to vector<16x32xf32>
    %cst_30 = arith.constant 5.000000e-01 : f32
    %32 = vector.broadcast %cst_30 : f32 to vector<16x32xf32>
    %33 = arith.mulf %32, %31 : vector<16x32xf32>
    %34 = math.tanh %33 : vector<16x32xf32>
    %cst_31 = arith.constant 1.000000e+00 : f32
    %35 = vector.broadcast %cst_31 : f32 to vector<16x32xf32>
    %36 = arith.addf %34, %35 : vector<16x32xf32>
    %cst_32 = arith.constant 5.000000e-01 : f32
    %37 = vector.broadcast %cst_32 : f32 to vector<16x32xf32>
    %38 = arith.mulf %37, %36 : vector<16x32xf32>
    %39 = vector.extract_strided_slice %22 {offsets = [0, 64], sizes = [16, 32], strides = [1, 1]} : vector<16x128xf32> to vector<16x32xf32>
    %40 = math.tanh %39 : vector<16x32xf32>
    %41 = vector.extract_strided_slice %22 {offsets = [0, 96], sizes = [16, 32], strides = [1, 1]} : vector<16x128xf32> to vector<16x32xf32>
    %cst_33 = arith.constant 5.000000e-01 : f32
    %42 = vector.broadcast %cst_33 : f32 to vector<16x32xf32>
    %43 = arith.mulf %42, %41 : vector<16x32xf32>
    %44 = math.tanh %43 : vector<16x32xf32>
    %cst_34 = arith.constant 1.000000e+00 : f32
    %45 = vector.broadcast %cst_34 : f32 to vector<16x32xf32>
    %46 = arith.addf %44, %45 : vector<16x32xf32>
    %cst_35 = arith.constant 5.000000e-01 : f32
    %47 = vector.broadcast %cst_35 : f32 to vector<16x32xf32>
    %48 = arith.mulf %47, %46 : vector<16x32xf32>
    %49 = arith.mulf %38, %17 : vector<16x32xf32>
    %50 = arith.mulf %30, %40 : vector<16x32xf32>
    %51 = arith.addf %49, %50 : vector<16x32xf32>
    %52 = math.tanh %51 : vector<16x32xf32>
    %53 = arith.mulf %48, %52 : vector<16x32xf32>
    %c0_i32 = arith.constant 0 : i32
    %54 = vector.broadcast %c0_i32 : i32 to vector<16x1xi32>
    %55 = arith.cmpi sgt, %1, %54 : vector<16x1xi32>
    %56 = vector.shape_cast %55 : vector<16x1xi1> to vector<16x1xi1>
    %57 = vector.broadcast %56 : vector<16x1xi1> to vector<16x32xi1>
    %58 = arith.select %57, %53, %16 : vector<16x32xi1>, vector<16x32xf32>
    %59 = vector.shape_cast %55 : vector<16x1xi1> to vector<16x1xi1>
    %60 = vector.broadcast %59 : vector<16x1xi1> to vector<16x32xi1>
    %61 = arith.select %60, %51, %17 : vector<16x32xi1>, vector<16x32xf32>
    %c80 = arith.constant 80 : index
    %c0_36 = arith.constant 0 : index
    %62 = vector.load %arg24[%c80, %c0_36] : memref<96x128xf32, #tpu.memory_space<vmem>>, vector<16x128xf32>
    %cst_37 = arith.constant dense<0.000000e+00> : vector<16x128xf32>
    %63 = tpu.matmul %18, %15, %cst_37 {dimension_numbers = #tpu.dot_dimension_numbers<[1], [0], [0], [1], [0, 0, 1, 1], [], []>} : vector<16x32xf32>, vector<32x128xf32>, vector<16x128xf32> -> vector<16x128xf32>
    %64 = arith.addf %62, %63 : vector<16x128xf32>
    %65 = vector.extract_strided_slice %64 {offsets = [0, 0], sizes = [16, 32], strides = [1, 1]} : vector<16x128xf32> to vector<16x32xf32>
    %cst_38 = arith.constant 5.000000e-01 : f32
    %66 = vector.broadcast %cst_38 : f32 to vector<16x32xf32>
    %67 = arith.mulf %66, %65 : vector<16x32xf32>
    %68 = math.tanh %67 : vector<16x32xf32>
    %cst_39 = arith.constant 1.000000e+00 : f32
    %69 = vector.broadcast %cst_39 : f32 to vector<16x32xf32>
    %70 = arith.addf %68, %69 : vector<16x32xf32>
    %cst_40 = arith.constant 5.000000e-01 : f32
    %71 = vector.broadcast %cst_40 : f32 to vector<16x32xf32>
    %72 = arith.mulf %71, %70 : vector<16x32xf32>
    %73 = vector.extract_strided_slice %64 {offsets = [0, 32], sizes = [16, 32], strides = [1, 1]} : vector<16x128xf32> to vector<16x32xf32>
    %cst_41 = arith.constant 5.000000e-01 : f32
    %74 = vector.broadcast %cst_41 : f32 to vector<16x32xf32>
    %75 = arith.mulf %74, %73 : vector<16x32xf32>
    %76 = math.tanh %75 : vector<16x32xf32>
    %cst_42 = arith.constant 1.000000e+00 : f32
    %77 = vector.broadcast %cst_42 : f32 to vector<16x32xf32>
    %78 = arith.addf %76, %77 : vector<16x32xf32>
    %cst_43 = arith.constant 5.000000e-01 : f32
    %79 = vector.broadcast %cst_43 : f32 to vector<16x32xf32>
    %80 = arith.mulf %79, %78 : vector<16x32xf32>
    %81 = vector.extract_strided_slice %64 {offsets = [0, 64], sizes = [16, 32], strides = [1, 1]} : vector<16x128xf32> to vector<16x32xf32>
    %82 = math.tanh %81 : vector<16x32xf32>
    %83 = vector.extract_strided_slice %64 {offsets = [0, 96], sizes = [16, 32], strides = [1, 1]} : vector<16x128xf32> to vector<16x32xf32>
    %cst_44 = arith.constant 5.000000e-01 : f32
    %84 = vector.broadcast %cst_44 : f32 to vector<16x32xf32>
    %85 = arith.mulf %84, %83 : vector<16x32xf32>
    %86 = math.tanh %85 : vector<16x32xf32>
    %cst_45 = arith.constant 1.000000e+00 : f32
    %87 = vector.broadcast %cst_45 : f32 to vector<16x32xf32>
    %88 = arith.addf %86, %87 : vector<16x32xf32>
    %cst_46 = arith.constant 5.000000e-01 : f32
    %89 = vector.broadcast %cst_46 : f32 to vector<16x32xf32>
    %90 = arith.mulf %89, %88 : vector<16x32xf32>
    %91 = arith.mulf %80, %19 : vector<16x32xf32>
    %92 = arith.mulf %72, %82 : vector<16x32xf32>
    %93 = arith.addf %91, %92 : vector<16x32xf32>
    %94 = math.tanh %93 : vector<16x32xf32>
    %95 = arith.mulf %90, %94 : vector<16x32xf32>
    %c5_i32 = arith.constant 5 : i32
    %96 = vector.broadcast %c5_i32 : i32 to vector<16x1xi32>
    %97 = arith.cmpi sgt, %1, %96 : vector<16x1xi32>
    %98 = vector.shape_cast %97 : vector<16x1xi1> to vector<16x1xi1>
    %99 = vector.broadcast %98 : vector<16x1xi1> to vector<16x32xi1>
    %100 = arith.select %99, %95, %18 : vector<16x32xi1>, vector<16x32xf32>
    %101 = vector.shape_cast %97 : vector<16x1xi1> to vector<16x1xi1>
    %102 = vector.broadcast %101 : vector<16x1xi1> to vector<16x32xi1>
    %103 = arith.select %102, %93, %19 : vector<16x32xi1>, vector<16x32xf32>
    %c16 = arith.constant 16 : index
    %c0_47 = arith.constant 0 : index
    %104 = vector.load %arg23[%c16, %c0_47] : memref<96x128xf32, #tpu.memory_space<vmem>>, vector<16x128xf32>
    %cst_48 = arith.constant dense<0.000000e+00> : vector<16x128xf32>
    %105 = tpu.matmul %58, %14, %cst_48 {dimension_numbers = #tpu.dot_dimension_numbers<[1], [0], [0], [1], [0, 0, 1, 1], [], []>} : vector<16x32xf32>, vector<32x128xf32>, vector<16x128xf32> -> vector<16x128xf32>
    %106 = arith.addf %104, %105 : vector<16x128xf32>
    %107 = vector.extract_strided_slice %106 {offsets = [0, 0], sizes = [16, 32], strides = [1, 1]} : vector<16x128xf32> to vector<16x32xf32>
    %cst_49 = arith.constant 5.000000e-01 : f32
    %108 = vector.broadcast %cst_49 : f32 to vector<16x32xf32>
    %109 = arith.mulf %108, %107 : vector<16x32xf32>
    %110 = math.tanh %109 : vector<16x32xf32>
    %cst_50 = arith.constant 1.000000e+00 : f32
    %111 = vector.broadcast %cst_50 : f32 to vector<16x32xf32>
    %112 = arith.addf %110, %111 : vector<16x32xf32>
    %cst_51 = arith.constant 5.000000e-01 : f32
    %113 = vector.broadcast %cst_51 : f32 to vector<16x32xf32>
    %114 = arith.mulf %113, %112 : vector<16x32xf32>
    %115 = vector.extract_strided_slice %106 {offsets = [0, 32], sizes = [16, 32], strides = [1, 1]} : vector<16x128xf32> to vector<16x32xf32>
    %cst_52 = arith.constant 5.000000e-01 : f32
    %116 = vector.broadcast %cst_52 : f32 to vector<16x32xf32>
    %117 = arith.mulf %116, %115 : vector<16x32xf32>
    %118 = math.tanh %117 : vector<16x32xf32>
    %cst_53 = arith.constant 1.000000e+00 : f32
    %119 = vector.broadcast %cst_53 : f32 to vector<16x32xf32>
    %120 = arith.addf %118, %119 : vector<16x32xf32>
    %cst_54 = arith.constant 5.000000e-01 : f32
    %121 = vector.broadcast %cst_54 : f32 to vector<16x32xf32>
    %122 = arith.mulf %121, %120 : vector<16x32xf32>
    %123 = vector.extract_strided_slice %106 {offsets = [0, 64], sizes = [16, 32], strides = [1, 1]} : vector<16x128xf32> to vector<16x32xf32>
    %124 = math.tanh %123 : vector<16x32xf32>
    %125 = vector.extract_strided_slice %106 {offsets = [0, 96], sizes = [16, 32], strides = [1, 1]} : vector<16x128xf32> to vector<16x32xf32>
    %cst_55 = arith.constant 5.000000e-01 : f32
    %126 = vector.broadcast %cst_55 : f32 to vector<16x32xf32>
    %127 = arith.mulf %126, %125 : vector<16x32xf32>
    %128 = math.tanh %127 : vector<16x32xf32>
    %cst_56 = arith.constant 1.000000e+00 : f32
    %129 = vector.broadcast %cst_56 : f32 to vector<16x32xf32>
    %130 = arith.addf %128, %129 : vector<16x32xf32>
    %cst_57 = arith.constant 5.000000e-01 : f32
    %131 = vector.broadcast %cst_57 : f32 to vector<16x32xf32>
    %132 = arith.mulf %131, %130 : vector<16x32xf32>
    %133 = arith.mulf %122, %61 : vector<16x32xf32>
    %134 = arith.mulf %114, %124 : vector<16x32xf32>
    %135 = arith.addf %133, %134 : vector<16x32xf32>
    %136 = math.tanh %135 : vector<16x32xf32>
    %137 = arith.mulf %132, %136 : vector<16x32xf32>
    %c1_i32 = arith.constant 1 : i32
    %138 = vector.broadcast %c1_i32 : i32 to vector<16x1xi32>
    %139 = arith.cmpi sgt, %1, %138 : vector<16x1xi32>
    %140 = vector.shape_cast %139 : vector<16x1xi1> to vector<16x1xi1>
    %141 = vector.broadcast %140 : vector<16x1xi1> to vector<16x32xi1>
    %142 = arith.select %141, %137, %58 : vector<16x32xi1>, vector<16x32xf32>
    %143 = vector.shape_cast %139 : vector<16x1xi1> to vector<16x1xi1>
    %144 = vector.broadcast %143 : vector<16x1xi1> to vector<16x32xi1>
    %145 = arith.select %144, %135, %61 : vector<16x32xi1>, vector<16x32xf32>
    %c64 = arith.constant 64 : index
    %c0_58 = arith.constant 0 : index
    %146 = vector.load %arg24[%c64, %c0_58] : memref<96x128xf32, #tpu.memory_space<vmem>>, vector<16x128xf32>
    %cst_59 = arith.constant dense<0.000000e+00> : vector<16x128xf32>
    %147 = tpu.matmul %100, %15, %cst_59 {dimension_numbers = #tpu.dot_dimension_numbers<[1], [0], [0], [1], [0, 0, 1, 1], [], []>} : vector<16x32xf32>, vector<32x128xf32>, vector<16x128xf32> -> vector<16x128xf32>
    %148 = arith.addf %146, %147 : vector<16x128xf32>
    %149 = vector.extract_strided_slice %148 {offsets = [0, 0], sizes = [16, 32], strides = [1, 1]} : vector<16x128xf32> to vector<16x32xf32>
    %cst_60 = arith.constant 5.000000e-01 : f32
    %150 = vector.broadcast %cst_60 : f32 to vector<16x32xf32>
    %151 = arith.mulf %150, %149 : vector<16x32xf32>
    %152 = math.tanh %151 : vector<16x32xf32>
    %cst_61 = arith.constant 1.000000e+00 : f32
    %153 = vector.broadcast %cst_61 : f32 to vector<16x32xf32>
    %154 = arith.addf %152, %153 : vector<16x32xf32>
    %cst_62 = arith.constant 5.000000e-01 : f32
    %155 = vector.broadcast %cst_62 : f32 to vector<16x32xf32>
    %156 = arith.mulf %155, %154 : vector<16x32xf32>
    %157 = vector.extract_strided_slice %148 {offsets = [0, 32], sizes = [16, 32], strides = [1, 1]} : vector<16x128xf32> to vector<16x32xf32>
    %cst_63 = arith.constant 5.000000e-01 : f32
    %158 = vector.broadcast %cst_63 : f32 to vector<16x32xf32>
    %159 = arith.mulf %158, %157 : vector<16x32xf32>
    %160 = math.tanh %159 : vector<16x32xf32>
    %cst_64 = arith.constant 1.000000e+00 : f32
    %161 = vector.broadcast %cst_64 : f32 to vector<16x32xf32>
    %162 = arith.addf %160, %161 : vector<16x32xf32>
    %cst_65 = arith.constant 5.000000e-01 : f32
    %163 = vector.broadcast %cst_65 : f32 to vector<16x32xf32>
    %164 = arith.mulf %163, %162 : vector<16x32xf32>
    %165 = vector.extract_strided_slice %148 {offsets = [0, 64], sizes = [16, 32], strides = [1, 1]} : vector<16x128xf32> to vector<16x32xf32>
    %166 = math.tanh %165 : vector<16x32xf32>
    %167 = vector.extract_strided_slice %148 {offsets = [0, 96], sizes = [16, 32], strides = [1, 1]} : vector<16x128xf32> to vector<16x32xf32>
    %cst_66 = arith.constant 5.000000e-01 : f32
    %168 = vector.broadcast %cst_66 : f32 to vector<16x32xf32>
    %169 = arith.mulf %168, %167 : vector<16x32xf32>
    %170 = math.tanh %169 : vector<16x32xf32>
    %cst_67 = arith.constant 1.000000e+00 : f32
    %171 = vector.broadcast %cst_67 : f32 to vector<16x32xf32>
    %172 = arith.addf %170, %171 : vector<16x32xf32>
    %cst_68 = arith.constant 5.000000e-01 : f32
    %173 = vector.broadcast %cst_68 : f32 to vector<16x32xf32>
    %174 = arith.mulf %173, %172 : vector<16x32xf32>
    %175 = arith.mulf %164, %103 : vector<16x32xf32>
    %176 = arith.mulf %156, %166 : vector<16x32xf32>
    %177 = arith.addf %175, %176 : vector<16x32xf32>
    %178 = math.tanh %177 : vector<16x32xf32>
    %179 = arith.mulf %174, %178 : vector<16x32xf32>
    %c4_i32 = arith.constant 4 : i32
    %180 = vector.broadcast %c4_i32 : i32 to vector<16x1xi32>
    %181 = arith.cmpi sgt, %1, %180 : vector<16x1xi32>
    %182 = vector.shape_cast %181 : vector<16x1xi1> to vector<16x1xi1>
    %183 = vector.broadcast %182 : vector<16x1xi1> to vector<16x32xi1>
    %184 = arith.select %183, %179, %100 : vector<16x32xi1>, vector<16x32xf32>
    %185 = vector.shape_cast %181 : vector<16x1xi1> to vector<16x1xi1>
    %186 = vector.broadcast %185 : vector<16x1xi1> to vector<16x32xi1>
    %187 = arith.select %186, %177, %103 : vector<16x32xi1>, vector<16x32xf32>
    %c32 = arith.constant 32 : index
    %c0_69 = arith.constant 0 : index
    %188 = vector.load %arg23[%c32, %c0_69] : memref<96x128xf32, #tpu.memory_space<vmem>>, vector<16x128xf32>
    %cst_70 = arith.constant dense<0.000000e+00> : vector<16x128xf32>
    %189 = tpu.matmul %142, %14, %cst_70 {dimension_numbers = #tpu.dot_dimension_numbers<[1], [0], [0], [1], [0, 0, 1, 1], [], []>} : vector<16x32xf32>, vector<32x128xf32>, vector<16x128xf32> -> vector<16x128xf32>
    %190 = arith.addf %188, %189 : vector<16x128xf32>
    %191 = vector.extract_strided_slice %190 {offsets = [0, 0], sizes = [16, 32], strides = [1, 1]} : vector<16x128xf32> to vector<16x32xf32>
    %cst_71 = arith.constant 5.000000e-01 : f32
    %192 = vector.broadcast %cst_71 : f32 to vector<16x32xf32>
    %193 = arith.mulf %192, %191 : vector<16x32xf32>
    %194 = math.tanh %193 : vector<16x32xf32>
    %cst_72 = arith.constant 1.000000e+00 : f32
    %195 = vector.broadcast %cst_72 : f32 to vector<16x32xf32>
    %196 = arith.addf %194, %195 : vector<16x32xf32>
    %cst_73 = arith.constant 5.000000e-01 : f32
    %197 = vector.broadcast %cst_73 : f32 to vector<16x32xf32>
    %198 = arith.mulf %197, %196 : vector<16x32xf32>
    %199 = vector.extract_strided_slice %190 {offsets = [0, 32], sizes = [16, 32], strides = [1, 1]} : vector<16x128xf32> to vector<16x32xf32>
    %cst_74 = arith.constant 5.000000e-01 : f32
    %200 = vector.broadcast %cst_74 : f32 to vector<16x32xf32>
    %201 = arith.mulf %200, %199 : vector<16x32xf32>
    %202 = math.tanh %201 : vector<16x32xf32>
    %cst_75 = arith.constant 1.000000e+00 : f32
    %203 = vector.broadcast %cst_75 : f32 to vector<16x32xf32>
    %204 = arith.addf %202, %203 : vector<16x32xf32>
    %cst_76 = arith.constant 5.000000e-01 : f32
    %205 = vector.broadcast %cst_76 : f32 to vector<16x32xf32>
    %206 = arith.mulf %205, %204 : vector<16x32xf32>
    %207 = vector.extract_strided_slice %190 {offsets = [0, 64], sizes = [16, 32], strides = [1, 1]} : vector<16x128xf32> to vector<16x32xf32>
    %208 = math.tanh %207 : vector<16x32xf32>
    %209 = vector.extract_strided_slice %190 {offsets = [0, 96], sizes = [16, 32], strides = [1, 1]} : vector<16x128xf32> to vector<16x32xf32>
    %cst_77 = arith.constant 5.000000e-01 : f32
    %210 = vector.broadcast %cst_77 : f32 to vector<16x32xf32>
    %211 = arith.mulf %210, %209 : vector<16x32xf32>
    %212 = math.tanh %211 : vector<16x32xf32>
    %cst_78 = arith.constant 1.000000e+00 : f32
    %213 = vector.broadcast %cst_78 : f32 to vector<16x32xf32>
    %214 = arith.addf %212, %213 : vector<16x32xf32>
    %cst_79 = arith.constant 5.000000e-01 : f32
    %215 = vector.broadcast %cst_79 : f32 to vector<16x32xf32>
    %216 = arith.mulf %215, %214 : vector<16x32xf32>
    %217 = arith.mulf %206, %145 : vector<16x32xf32>
    %218 = arith.mulf %198, %208 : vector<16x32xf32>
    %219 = arith.addf %217, %218 : vector<16x32xf32>
    %220 = math.tanh %219 : vector<16x32xf32>
    %221 = arith.mulf %216, %220 : vector<16x32xf32>
    %c2_i32 = arith.constant 2 : i32
    %222 = vector.broadcast %c2_i32 : i32 to vector<16x1xi32>
    %223 = arith.cmpi sgt, %1, %222 : vector<16x1xi32>
    %224 = vector.shape_cast %223 : vector<16x1xi1> to vector<16x1xi1>
    %225 = vector.broadcast %224 : vector<16x1xi1> to vector<16x32xi1>
    %226 = arith.select %225, %221, %142 : vector<16x32xi1>, vector<16x32xf32>
    %227 = vector.shape_cast %223 : vector<16x1xi1> to vector<16x1xi1>
    %228 = vector.broadcast %227 : vector<16x1xi1> to vector<16x32xi1>
    %229 = arith.select %228, %219, %145 : vector<16x32xi1>, vector<16x32xf32>
    %c48 = arith.constant 48 : index
    %c0_80 = arith.constant 0 : index
    %230 = vector.load %arg24[%c48, %c0_80] : memref<96x128xf32, #tpu.memory_space<vmem>>, vector<16x128xf32>
    %cst_81 = arith.constant dense<0.000000e+00> : vector<16x128xf32>
    %231 = tpu.matmul %184, %15, %cst_81 {dimension_numbers = #tpu.dot_dimension_numbers<[1], [0], [0], [1], [0, 0, 1, 1], [], []>} : vector<16x32xf32>, vector<32x128xf32>, vector<16x128xf32> -> vector<16x128xf32>
    %232 = arith.addf %230, %231 : vector<16x128xf32>
    %233 = vector.extract_strided_slice %232 {offsets = [0, 0], sizes = [16, 32], strides = [1, 1]} : vector<16x128xf32> to vector<16x32xf32>
    %cst_82 = arith.constant 5.000000e-01 : f32
    %234 = vector.broadcast %cst_82 : f32 to vector<16x32xf32>
    %235 = arith.mulf %234, %233 : vector<16x32xf32>
    %236 = math.tanh %235 : vector<16x32xf32>
    %cst_83 = arith.constant 1.000000e+00 : f32
    %237 = vector.broadcast %cst_83 : f32 to vector<16x32xf32>
    %238 = arith.addf %236, %237 : vector<16x32xf32>
    %cst_84 = arith.constant 5.000000e-01 : f32
    %239 = vector.broadcast %cst_84 : f32 to vector<16x32xf32>
    %240 = arith.mulf %239, %238 : vector<16x32xf32>
    %241 = vector.extract_strided_slice %232 {offsets = [0, 32], sizes = [16, 32], strides = [1, 1]} : vector<16x128xf32> to vector<16x32xf32>
    %cst_85 = arith.constant 5.000000e-01 : f32
    %242 = vector.broadcast %cst_85 : f32 to vector<16x32xf32>
    %243 = arith.mulf %242, %241 : vector<16x32xf32>
    %244 = math.tanh %243 : vector<16x32xf32>
    %cst_86 = arith.constant 1.000000e+00 : f32
    %245 = vector.broadcast %cst_86 : f32 to vector<16x32xf32>
    %246 = arith.addf %244, %245 : vector<16x32xf32>
    %cst_87 = arith.constant 5.000000e-01 : f32
    %247 = vector.broadcast %cst_87 : f32 to vector<16x32xf32>
    %248 = arith.mulf %247, %246 : vector<16x32xf32>
    %249 = vector.extract_strided_slice %232 {offsets = [0, 64], sizes = [16, 32], strides = [1, 1]} : vector<16x128xf32> to vector<16x32xf32>
    %250 = math.tanh %249 : vector<16x32xf32>
    %251 = vector.extract_strided_slice %232 {offsets = [0, 96], sizes = [16, 32], strides = [1, 1]} : vector<16x128xf32> to vector<16x32xf32>
    %cst_88 = arith.constant 5.000000e-01 : f32
    %252 = vector.broadcast %cst_88 : f32 to vector<16x32xf32>
    %253 = arith.mulf %252, %251 : vector<16x32xf32>
    %254 = math.tanh %253 : vector<16x32xf32>
    %cst_89 = arith.constant 1.000000e+00 : f32
    %255 = vector.broadcast %cst_89 : f32 to vector<16x32xf32>
    %256 = arith.addf %254, %255 : vector<16x32xf32>
    %cst_90 = arith.constant 5.000000e-01 : f32
    %257 = vector.broadcast %cst_90 : f32 to vector<16x32xf32>
    %258 = arith.mulf %257, %256 : vector<16x32xf32>
    %259 = arith.mulf %248, %187 : vector<16x32xf32>
    %260 = arith.mulf %240, %250 : vector<16x32xf32>
    %261 = arith.addf %259, %260 : vector<16x32xf32>
    %262 = math.tanh %261 : vector<16x32xf32>
    %263 = arith.mulf %258, %262 : vector<16x32xf32>
    %c3_i32 = arith.constant 3 : i32
    %264 = vector.broadcast %c3_i32 : i32 to vector<16x1xi32>
    %265 = arith.cmpi sgt, %1, %264 : vector<16x1xi32>
    %266 = vector.shape_cast %265 : vector<16x1xi1> to vector<16x1xi1>
    %267 = vector.broadcast %266 : vector<16x1xi1> to vector<16x32xi1>
    %268 = arith.select %267, %263, %184 : vector<16x32xi1>, vector<16x32xf32>
    %269 = vector.shape_cast %265 : vector<16x1xi1> to vector<16x1xi1>
    %270 = vector.broadcast %269 : vector<16x1xi1> to vector<16x32xi1>
    %271 = arith.select %270, %261, %187 : vector<16x32xi1>, vector<16x32xf32>
    %c48_91 = arith.constant 48 : index
    %c0_92 = arith.constant 0 : index
    %272 = vector.load %arg23[%c48_91, %c0_92] : memref<96x128xf32, #tpu.memory_space<vmem>>, vector<16x128xf32>
    %cst_93 = arith.constant dense<0.000000e+00> : vector<16x128xf32>
    %273 = tpu.matmul %226, %14, %cst_93 {dimension_numbers = #tpu.dot_dimension_numbers<[1], [0], [0], [1], [0, 0, 1, 1], [], []>} : vector<16x32xf32>, vector<32x128xf32>, vector<16x128xf32> -> vector<16x128xf32>
    %274 = arith.addf %272, %273 : vector<16x128xf32>
    %275 = vector.extract_strided_slice %274 {offsets = [0, 0], sizes = [16, 32], strides = [1, 1]} : vector<16x128xf32> to vector<16x32xf32>
    %cst_94 = arith.constant 5.000000e-01 : f32
    %276 = vector.broadcast %cst_94 : f32 to vector<16x32xf32>
    %277 = arith.mulf %276, %275 : vector<16x32xf32>
    %278 = math.tanh %277 : vector<16x32xf32>
    %cst_95 = arith.constant 1.000000e+00 : f32
    %279 = vector.broadcast %cst_95 : f32 to vector<16x32xf32>
    %280 = arith.addf %278, %279 : vector<16x32xf32>
    %cst_96 = arith.constant 5.000000e-01 : f32
    %281 = vector.broadcast %cst_96 : f32 to vector<16x32xf32>
    %282 = arith.mulf %281, %280 : vector<16x32xf32>
    %283 = vector.extract_strided_slice %274 {offsets = [0, 32], sizes = [16, 32], strides = [1, 1]} : vector<16x128xf32> to vector<16x32xf32>
    %cst_97 = arith.constant 5.000000e-01 : f32
    %284 = vector.broadcast %cst_97 : f32 to vector<16x32xf32>
    %285 = arith.mulf %284, %283 : vector<16x32xf32>
    %286 = math.tanh %285 : vector<16x32xf32>
    %cst_98 = arith.constant 1.000000e+00 : f32
    %287 = vector.broadcast %cst_98 : f32 to vector<16x32xf32>
    %288 = arith.addf %286, %287 : vector<16x32xf32>
    %cst_99 = arith.constant 5.000000e-01 : f32
    %289 = vector.broadcast %cst_99 : f32 to vector<16x32xf32>
    %290 = arith.mulf %289, %288 : vector<16x32xf32>
    %291 = vector.extract_strided_slice %274 {offsets = [0, 64], sizes = [16, 32], strides = [1, 1]} : vector<16x128xf32> to vector<16x32xf32>
    %292 = math.tanh %291 : vector<16x32xf32>
    %293 = vector.extract_strided_slice %274 {offsets = [0, 96], sizes = [16, 32], strides = [1, 1]} : vector<16x128xf32> to vector<16x32xf32>
    %cst_100 = arith.constant 5.000000e-01 : f32
    %294 = vector.broadcast %cst_100 : f32 to vector<16x32xf32>
    %295 = arith.mulf %294, %293 : vector<16x32xf32>
    %296 = math.tanh %295 : vector<16x32xf32>
    %cst_101 = arith.constant 1.000000e+00 : f32
    %297 = vector.broadcast %cst_101 : f32 to vector<16x32xf32>
    %298 = arith.addf %296, %297 : vector<16x32xf32>
    %cst_102 = arith.constant 5.000000e-01 : f32
    %299 = vector.broadcast %cst_102 : f32 to vector<16x32xf32>
    %300 = arith.mulf %299, %298 : vector<16x32xf32>
    %301 = arith.mulf %290, %229 : vector<16x32xf32>
    %302 = arith.mulf %282, %292 : vector<16x32xf32>
    %303 = arith.addf %301, %302 : vector<16x32xf32>
    %304 = math.tanh %303 : vector<16x32xf32>
    %305 = arith.mulf %300, %304 : vector<16x32xf32>
    %c3_i32_103 = arith.constant 3 : i32
    %306 = vector.broadcast %c3_i32_103 : i32 to vector<16x1xi32>
    %307 = arith.cmpi sgt, %1, %306 : vector<16x1xi32>
    %308 = vector.shape_cast %307 : vector<16x1xi1> to vector<16x1xi1>
    %309 = vector.broadcast %308 : vector<16x1xi1> to vector<16x32xi1>
    %310 = arith.select %309, %305, %226 : vector<16x32xi1>, vector<16x32xf32>
    %311 = vector.shape_cast %307 : vector<16x1xi1> to vector<16x1xi1>
    %312 = vector.broadcast %311 : vector<16x1xi1> to vector<16x32xi1>
    %313 = arith.select %312, %303, %229 : vector<16x32xi1>, vector<16x32xf32>
    %c32_104 = arith.constant 32 : index
    %c0_105 = arith.constant 0 : index
    %314 = vector.load %arg24[%c32_104, %c0_105] : memref<96x128xf32, #tpu.memory_space<vmem>>, vector<16x128xf32>
    %cst_106 = arith.constant dense<0.000000e+00> : vector<16x128xf32>
    %315 = tpu.matmul %268, %15, %cst_106 {dimension_numbers = #tpu.dot_dimension_numbers<[1], [0], [0], [1], [0, 0, 1, 1], [], []>} : vector<16x32xf32>, vector<32x128xf32>, vector<16x128xf32> -> vector<16x128xf32>
    %316 = arith.addf %314, %315 : vector<16x128xf32>
    %317 = vector.extract_strided_slice %316 {offsets = [0, 0], sizes = [16, 32], strides = [1, 1]} : vector<16x128xf32> to vector<16x32xf32>
    %cst_107 = arith.constant 5.000000e-01 : f32
    %318 = vector.broadcast %cst_107 : f32 to vector<16x32xf32>
    %319 = arith.mulf %318, %317 : vector<16x32xf32>
    %320 = math.tanh %319 : vector<16x32xf32>
    %cst_108 = arith.constant 1.000000e+00 : f32
    %321 = vector.broadcast %cst_108 : f32 to vector<16x32xf32>
    %322 = arith.addf %320, %321 : vector<16x32xf32>
    %cst_109 = arith.constant 5.000000e-01 : f32
    %323 = vector.broadcast %cst_109 : f32 to vector<16x32xf32>
    %324 = arith.mulf %323, %322 : vector<16x32xf32>
    %325 = vector.extract_strided_slice %316 {offsets = [0, 32], sizes = [16, 32], strides = [1, 1]} : vector<16x128xf32> to vector<16x32xf32>
    %cst_110 = arith.constant 5.000000e-01 : f32
    %326 = vector.broadcast %cst_110 : f32 to vector<16x32xf32>
    %327 = arith.mulf %326, %325 : vector<16x32xf32>
    %328 = math.tanh %327 : vector<16x32xf32>
    %cst_111 = arith.constant 1.000000e+00 : f32
    %329 = vector.broadcast %cst_111 : f32 to vector<16x32xf32>
    %330 = arith.addf %328, %329 : vector<16x32xf32>
    %cst_112 = arith.constant 5.000000e-01 : f32
    %331 = vector.broadcast %cst_112 : f32 to vector<16x32xf32>
    %332 = arith.mulf %331, %330 : vector<16x32xf32>
    %333 = vector.extract_strided_slice %316 {offsets = [0, 64], sizes = [16, 32], strides = [1, 1]} : vector<16x128xf32> to vector<16x32xf32>
    %334 = math.tanh %333 : vector<16x32xf32>
    %335 = vector.extract_strided_slice %316 {offsets = [0, 96], sizes = [16, 32], strides = [1, 1]} : vector<16x128xf32> to vector<16x32xf32>
    %cst_113 = arith.constant 5.000000e-01 : f32
    %336 = vector.broadcast %cst_113 : f32 to vector<16x32xf32>
    %337 = arith.mulf %336, %335 : vector<16x32xf32>
    %338 = math.tanh %337 : vector<16x32xf32>
    %cst_114 = arith.constant 1.000000e+00 : f32
    %339 = vector.broadcast %cst_114 : f32 to vector<16x32xf32>
    %340 = arith.addf %338, %339 : vector<16x32xf32>
    %cst_115 = arith.constant 5.000000e-01 : f32
    %341 = vector.broadcast %cst_115 : f32 to vector<16x32xf32>
    %342 = arith.mulf %341, %340 : vector<16x32xf32>
    %343 = arith.mulf %332, %271 : vector<16x32xf32>
    %344 = arith.mulf %324, %334 : vector<16x32xf32>
    %345 = arith.addf %343, %344 : vector<16x32xf32>
    %346 = math.tanh %345 : vector<16x32xf32>
    %347 = arith.mulf %342, %346 : vector<16x32xf32>
    %c2_i32_116 = arith.constant 2 : i32
    %348 = vector.broadcast %c2_i32_116 : i32 to vector<16x1xi32>
    %349 = arith.cmpi sgt, %1, %348 : vector<16x1xi32>
    %350 = vector.shape_cast %349 : vector<16x1xi1> to vector<16x1xi1>
    %351 = vector.broadcast %350 : vector<16x1xi1> to vector<16x32xi1>
    %352 = arith.select %351, %347, %268 : vector<16x32xi1>, vector<16x32xf32>
    %353 = vector.shape_cast %349 : vector<16x1xi1> to vector<16x1xi1>
    %354 = vector.broadcast %353 : vector<16x1xi1> to vector<16x32xi1>
    %355 = arith.select %354, %345, %271 : vector<16x32xi1>, vector<16x32xf32>
    %c64_117 = arith.constant 64 : index
    %c0_118 = arith.constant 0 : index
    %356 = vector.load %arg23[%c64_117, %c0_118] : memref<96x128xf32, #tpu.memory_space<vmem>>, vector<16x128xf32>
    %cst_119 = arith.constant dense<0.000000e+00> : vector<16x128xf32>
    %357 = tpu.matmul %310, %14, %cst_119 {dimension_numbers = #tpu.dot_dimension_numbers<[1], [0], [0], [1], [0, 0, 1, 1], [], []>} : vector<16x32xf32>, vector<32x128xf32>, vector<16x128xf32> -> vector<16x128xf32>
    %358 = arith.addf %356, %357 : vector<16x128xf32>
    %359 = vector.extract_strided_slice %358 {offsets = [0, 0], sizes = [16, 32], strides = [1, 1]} : vector<16x128xf32> to vector<16x32xf32>
    %cst_120 = arith.constant 5.000000e-01 : f32
    %360 = vector.broadcast %cst_120 : f32 to vector<16x32xf32>
    %361 = arith.mulf %360, %359 : vector<16x32xf32>
    %362 = math.tanh %361 : vector<16x32xf32>
    %cst_121 = arith.constant 1.000000e+00 : f32
    %363 = vector.broadcast %cst_121 : f32 to vector<16x32xf32>
    %364 = arith.addf %362, %363 : vector<16x32xf32>
    %cst_122 = arith.constant 5.000000e-01 : f32
    %365 = vector.broadcast %cst_122 : f32 to vector<16x32xf32>
    %366 = arith.mulf %365, %364 : vector<16x32xf32>
    %367 = vector.extract_strided_slice %358 {offsets = [0, 32], sizes = [16, 32], strides = [1, 1]} : vector<16x128xf32> to vector<16x32xf32>
    %cst_123 = arith.constant 5.000000e-01 : f32
    %368 = vector.broadcast %cst_123 : f32 to vector<16x32xf32>
    %369 = arith.mulf %368, %367 : vector<16x32xf32>
    %370 = math.tanh %369 : vector<16x32xf32>
    %cst_124 = arith.constant 1.000000e+00 : f32
    %371 = vector.broadcast %cst_124 : f32 to vector<16x32xf32>
    %372 = arith.addf %370, %371 : vector<16x32xf32>
    %cst_125 = arith.constant 5.000000e-01 : f32
    %373 = vector.broadcast %cst_125 : f32 to vector<16x32xf32>
    %374 = arith.mulf %373, %372 : vector<16x32xf32>
    %375 = vector.extract_strided_slice %358 {offsets = [0, 64], sizes = [16, 32], strides = [1, 1]} : vector<16x128xf32> to vector<16x32xf32>
    %376 = math.tanh %375 : vector<16x32xf32>
    %377 = vector.extract_strided_slice %358 {offsets = [0, 96], sizes = [16, 32], strides = [1, 1]} : vector<16x128xf32> to vector<16x32xf32>
    %cst_126 = arith.constant 5.000000e-01 : f32
    %378 = vector.broadcast %cst_126 : f32 to vector<16x32xf32>
    %379 = arith.mulf %378, %377 : vector<16x32xf32>
    %380 = math.tanh %379 : vector<16x32xf32>
    %cst_127 = arith.constant 1.000000e+00 : f32
    %381 = vector.broadcast %cst_127 : f32 to vector<16x32xf32>
    %382 = arith.addf %380, %381 : vector<16x32xf32>
    %cst_128 = arith.constant 5.000000e-01 : f32
    %383 = vector.broadcast %cst_128 : f32 to vector<16x32xf32>
    %384 = arith.mulf %383, %382 : vector<16x32xf32>
    %385 = arith.mulf %374, %313 : vector<16x32xf32>
    %386 = arith.mulf %366, %376 : vector<16x32xf32>
    %387 = arith.addf %385, %386 : vector<16x32xf32>
    %388 = math.tanh %387 : vector<16x32xf32>
    %389 = arith.mulf %384, %388 : vector<16x32xf32>
    %c4_i32_129 = arith.constant 4 : i32
    %390 = vector.broadcast %c4_i32_129 : i32 to vector<16x1xi32>
    %391 = arith.cmpi sgt, %1, %390 : vector<16x1xi32>
    %392 = vector.shape_cast %391 : vector<16x1xi1> to vector<16x1xi1>
    %393 = vector.broadcast %392 : vector<16x1xi1> to vector<16x32xi1>
    %394 = arith.select %393, %389, %310 : vector<16x32xi1>, vector<16x32xf32>
    %395 = vector.shape_cast %391 : vector<16x1xi1> to vector<16x1xi1>
    %396 = vector.broadcast %395 : vector<16x1xi1> to vector<16x32xi1>
    %397 = arith.select %396, %387, %313 : vector<16x32xi1>, vector<16x32xf32>
    %c16_130 = arith.constant 16 : index
    %c0_131 = arith.constant 0 : index
    %398 = vector.load %arg24[%c16_130, %c0_131] : memref<96x128xf32, #tpu.memory_space<vmem>>, vector<16x128xf32>
    %cst_132 = arith.constant dense<0.000000e+00> : vector<16x128xf32>
    %399 = tpu.matmul %352, %15, %cst_132 {dimension_numbers = #tpu.dot_dimension_numbers<[1], [0], [0], [1], [0, 0, 1, 1], [], []>} : vector<16x32xf32>, vector<32x128xf32>, vector<16x128xf32> -> vector<16x128xf32>
    %400 = arith.addf %398, %399 : vector<16x128xf32>
    %401 = vector.extract_strided_slice %400 {offsets = [0, 0], sizes = [16, 32], strides = [1, 1]} : vector<16x128xf32> to vector<16x32xf32>
    %cst_133 = arith.constant 5.000000e-01 : f32
    %402 = vector.broadcast %cst_133 : f32 to vector<16x32xf32>
    %403 = arith.mulf %402, %401 : vector<16x32xf32>
    %404 = math.tanh %403 : vector<16x32xf32>
    %cst_134 = arith.constant 1.000000e+00 : f32
    %405 = vector.broadcast %cst_134 : f32 to vector<16x32xf32>
    %406 = arith.addf %404, %405 : vector<16x32xf32>
    %cst_135 = arith.constant 5.000000e-01 : f32
    %407 = vector.broadcast %cst_135 : f32 to vector<16x32xf32>
    %408 = arith.mulf %407, %406 : vector<16x32xf32>
    %409 = vector.extract_strided_slice %400 {offsets = [0, 32], sizes = [16, 32], strides = [1, 1]} : vector<16x128xf32> to vector<16x32xf32>
    %cst_136 = arith.constant 5.000000e-01 : f32
    %410 = vector.broadcast %cst_136 : f32 to vector<16x32xf32>
    %411 = arith.mulf %410, %409 : vector<16x32xf32>
    %412 = math.tanh %411 : vector<16x32xf32>
    %cst_137 = arith.constant 1.000000e+00 : f32
    %413 = vector.broadcast %cst_137 : f32 to vector<16x32xf32>
    %414 = arith.addf %412, %413 : vector<16x32xf32>
    %cst_138 = arith.constant 5.000000e-01 : f32
    %415 = vector.broadcast %cst_138 : f32 to vector<16x32xf32>
    %416 = arith.mulf %415, %414 : vector<16x32xf32>
    %417 = vector.extract_strided_slice %400 {offsets = [0, 64], sizes = [16, 32], strides = [1, 1]} : vector<16x128xf32> to vector<16x32xf32>
    %418 = math.tanh %417 : vector<16x32xf32>
    %419 = vector.extract_strided_slice %400 {offsets = [0, 96], sizes = [16, 32], strides = [1, 1]} : vector<16x128xf32> to vector<16x32xf32>
    %cst_139 = arith.constant 5.000000e-01 : f32
    %420 = vector.broadcast %cst_139 : f32 to vector<16x32xf32>
    %421 = arith.mulf %420, %419 : vector<16x32xf32>
    %422 = math.tanh %421 : vector<16x32xf32>
    %cst_140 = arith.constant 1.000000e+00 : f32
    %423 = vector.broadcast %cst_140 : f32 to vector<16x32xf32>
    %424 = arith.addf %422, %423 : vector<16x32xf32>
    %cst_141 = arith.constant 5.000000e-01 : f32
    %425 = vector.broadcast %cst_141 : f32 to vector<16x32xf32>
    %426 = arith.mulf %425, %424 : vector<16x32xf32>
    %427 = arith.mulf %416, %355 : vector<16x32xf32>
    %428 = arith.mulf %408, %418 : vector<16x32xf32>
    %429 = arith.addf %427, %428 : vector<16x32xf32>
    %430 = math.tanh %429 : vector<16x32xf32>
    %431 = arith.mulf %426, %430 : vector<16x32xf32>
    %c1_i32_142 = arith.constant 1 : i32
    %432 = vector.broadcast %c1_i32_142 : i32 to vector<16x1xi32>
    %433 = arith.cmpi sgt, %1, %432 : vector<16x1xi32>
    %434 = vector.shape_cast %433 : vector<16x1xi1> to vector<16x1xi1>
    %435 = vector.broadcast %434 : vector<16x1xi1> to vector<16x32xi1>
    %436 = arith.select %435, %431, %352 : vector<16x32xi1>, vector<16x32xf32>
    %437 = vector.shape_cast %433 : vector<16x1xi1> to vector<16x1xi1>
    %438 = vector.broadcast %437 : vector<16x1xi1> to vector<16x32xi1>
    %439 = arith.select %438, %429, %355 : vector<16x32xi1>, vector<16x32xf32>
    %c80_143 = arith.constant 80 : index
    %c0_144 = arith.constant 0 : index
    %440 = vector.load %arg23[%c80_143, %c0_144] : memref<96x128xf32, #tpu.memory_space<vmem>>, vector<16x128xf32>
    %cst_145 = arith.constant dense<0.000000e+00> : vector<16x128xf32>
    %441 = tpu.matmul %394, %14, %cst_145 {dimension_numbers = #tpu.dot_dimension_numbers<[1], [0], [0], [1], [0, 0, 1, 1], [], []>} : vector<16x32xf32>, vector<32x128xf32>, vector<16x128xf32> -> vector<16x128xf32>
    %442 = arith.addf %440, %441 : vector<16x128xf32>
    %443 = vector.extract_strided_slice %442 {offsets = [0, 0], sizes = [16, 32], strides = [1, 1]} : vector<16x128xf32> to vector<16x32xf32>
    %cst_146 = arith.constant 5.000000e-01 : f32
    %444 = vector.broadcast %cst_146 : f32 to vector<16x32xf32>
    %445 = arith.mulf %444, %443 : vector<16x32xf32>
    %446 = math.tanh %445 : vector<16x32xf32>
    %cst_147 = arith.constant 1.000000e+00 : f32
    %447 = vector.broadcast %cst_147 : f32 to vector<16x32xf32>
    %448 = arith.addf %446, %447 : vector<16x32xf32>
    %cst_148 = arith.constant 5.000000e-01 : f32
    %449 = vector.broadcast %cst_148 : f32 to vector<16x32xf32>
    %450 = arith.mulf %449, %448 : vector<16x32xf32>
    %451 = vector.extract_strided_slice %442 {offsets = [0, 32], sizes = [16, 32], strides = [1, 1]} : vector<16x128xf32> to vector<16x32xf32>
    %cst_149 = arith.constant 5.000000e-01 : f32
    %452 = vector.broadcast %cst_149 : f32 to vector<16x32xf32>
    %453 = arith.mulf %452, %451 : vector<16x32xf32>
    %454 = math.tanh %453 : vector<16x32xf32>
    %cst_150 = arith.constant 1.000000e+00 : f32
    %455 = vector.broadcast %cst_150 : f32 to vector<16x32xf32>
    %456 = arith.addf %454, %455 : vector<16x32xf32>
    %cst_151 = arith.constant 5.000000e-01 : f32
    %457 = vector.broadcast %cst_151 : f32 to vector<16x32xf32>
    %458 = arith.mulf %457, %456 : vector<16x32xf32>
    %459 = vector.extract_strided_slice %442 {offsets = [0, 64], sizes = [16, 32], strides = [1, 1]} : vector<16x128xf32> to vector<16x32xf32>
    %460 = math.tanh %459 : vector<16x32xf32>
    %461 = vector.extract_strided_slice %442 {offsets = [0, 96], sizes = [16, 32], strides = [1, 1]} : vector<16x128xf32> to vector<16x32xf32>
    %cst_152 = arith.constant 5.000000e-01 : f32
    %462 = vector.broadcast %cst_152 : f32 to vector<16x32xf32>
    %463 = arith.mulf %462, %461 : vector<16x32xf32>
    %464 = math.tanh %463 : vector<16x32xf32>
    %cst_153 = arith.constant 1.000000e+00 : f32
    %465 = vector.broadcast %cst_153 : f32 to vector<16x32xf32>
    %466 = arith.addf %464, %465 : vector<16x32xf32>
    %cst_154 = arith.constant 5.000000e-01 : f32
    %467 = vector.broadcast %cst_154 : f32 to vector<16x32xf32>
    %468 = arith.mulf %467, %466 : vector<16x32xf32>
    %469 = arith.mulf %458, %397 : vector<16x32xf32>
    %470 = arith.mulf %450, %460 : vector<16x32xf32>
    %471 = arith.addf %469, %470 : vector<16x32xf32>
    %472 = math.tanh %471 : vector<16x32xf32>
    %473 = arith.mulf %468, %472 : vector<16x32xf32>
    %c5_i32_155 = arith.constant 5 : i32
    %474 = vector.broadcast %c5_i32_155 : i32 to vector<16x1xi32>
    %475 = arith.cmpi sgt, %1, %474 : vector<16x1xi32>
    %476 = vector.shape_cast %475 : vector<16x1xi1> to vector<16x1xi1>
    %477 = vector.broadcast %476 : vector<16x1xi1> to vector<16x32xi1>
    %478 = arith.select %477, %473, %394 : vector<16x32xi1>, vector<16x32xf32>
    %c0_156 = arith.constant 0 : index
    %c0_157 = arith.constant 0 : index
    %479 = vector.load %arg24[%c0_156, %c0_157] : memref<96x128xf32, #tpu.memory_space<vmem>>, vector<16x128xf32>
    %cst_158 = arith.constant dense<0.000000e+00> : vector<16x128xf32>
    %480 = tpu.matmul %436, %15, %cst_158 {dimension_numbers = #tpu.dot_dimension_numbers<[1], [0], [0], [1], [0, 0, 1, 1], [], []>} : vector<16x32xf32>, vector<32x128xf32>, vector<16x128xf32> -> vector<16x128xf32>
    %481 = arith.addf %479, %480 : vector<16x128xf32>
    %482 = vector.extract_strided_slice %481 {offsets = [0, 0], sizes = [16, 32], strides = [1, 1]} : vector<16x128xf32> to vector<16x32xf32>
    %cst_159 = arith.constant 5.000000e-01 : f32
    %483 = vector.broadcast %cst_159 : f32 to vector<16x32xf32>
    %484 = arith.mulf %483, %482 : vector<16x32xf32>
    %485 = math.tanh %484 : vector<16x32xf32>
    %cst_160 = arith.constant 1.000000e+00 : f32
    %486 = vector.broadcast %cst_160 : f32 to vector<16x32xf32>
    %487 = arith.addf %485, %486 : vector<16x32xf32>
    %cst_161 = arith.constant 5.000000e-01 : f32
    %488 = vector.broadcast %cst_161 : f32 to vector<16x32xf32>
    %489 = arith.mulf %488, %487 : vector<16x32xf32>
    %490 = vector.extract_strided_slice %481 {offsets = [0, 32], sizes = [16, 32], strides = [1, 1]} : vector<16x128xf32> to vector<16x32xf32>
    %cst_162 = arith.constant 5.000000e-01 : f32
    %491 = vector.broadcast %cst_162 : f32 to vector<16x32xf32>
    %492 = arith.mulf %491, %490 : vector<16x32xf32>
    %493 = math.tanh %492 : vector<16x32xf32>
    %cst_163 = arith.constant 1.000000e+00 : f32
    %494 = vector.broadcast %cst_163 : f32 to vector<16x32xf32>
    %495 = arith.addf %493, %494 : vector<16x32xf32>
    %cst_164 = arith.constant 5.000000e-01 : f32
    %496 = vector.broadcast %cst_164 : f32 to vector<16x32xf32>
    %497 = arith.mulf %496, %495 : vector<16x32xf32>
    %498 = vector.extract_strided_slice %481 {offsets = [0, 64], sizes = [16, 32], strides = [1, 1]} : vector<16x128xf32> to vector<16x32xf32>
    %499 = math.tanh %498 : vector<16x32xf32>
    %500 = vector.extract_strided_slice %481 {offsets = [0, 96], sizes = [16, 32], strides = [1, 1]} : vector<16x128xf32> to vector<16x32xf32>
    %cst_165 = arith.constant 5.000000e-01 : f32
    %501 = vector.broadcast %cst_165 : f32 to vector<16x32xf32>
    %502 = arith.mulf %501, %500 : vector<16x32xf32>
    %503 = math.tanh %502 : vector<16x32xf32>
    %cst_166 = arith.constant 1.000000e+00 : f32
    %504 = vector.broadcast %cst_166 : f32 to vector<16x32xf32>
    %505 = arith.addf %503, %504 : vector<16x32xf32>
    %cst_167 = arith.constant 5.000000e-01 : f32
    %506 = vector.broadcast %cst_167 : f32 to vector<16x32xf32>
    %507 = arith.mulf %506, %505 : vector<16x32xf32>
    %508 = arith.mulf %497, %439 : vector<16x32xf32>
    %509 = arith.mulf %489, %499 : vector<16x32xf32>
    %510 = arith.addf %508, %509 : vector<16x32xf32>
    %511 = math.tanh %510 : vector<16x32xf32>
    %512 = arith.mulf %507, %511 : vector<16x32xf32>
    %c0_i32_168 = arith.constant 0 : i32
    %513 = vector.broadcast %c0_i32_168 : i32 to vector<16x1xi32>
    %514 = arith.cmpi sgt, %1, %513 : vector<16x1xi32>
    %515 = vector.shape_cast %514 : vector<16x1xi1> to vector<16x1xi1>
    %516 = vector.broadcast %515 : vector<16x1xi1> to vector<16x32xi1>
    %517 = arith.select %516, %512, %436 : vector<16x32xi1>, vector<16x32xf32>
    %518 = tpu.concatenate %478, %517 in 1 : vector<16x32xf32>, vector<16x32xf32> -> vector<16x64xf32>
    %c0_169 = arith.constant 0 : index
    %c0_170 = arith.constant 0 : index
    %519 = vector.load %arg8[%c0_169, %c0_170] : memref<64x32xf32, #tpu.memory_space<vmem>>, vector<64x32xf32>
    %cst_171 = arith.constant dense<0.000000e+00> : vector<16x32xf32>
    %520 = tpu.matmul %518, %519, %cst_171 {dimension_numbers = #tpu.dot_dimension_numbers<[1], [0], [0], [1], [0, 0, 1, 1], [], []>} : vector<16x64xf32>, vector<64x32xf32>, vector<16x32xf32> -> vector<16x32xf32>
    %c0_172 = arith.constant 0 : index
    %c0_173 = arith.constant 0 : index
    %521 = vector.load %arg9[%c0_172, %c0_173] : memref<1x32xf32, #tpu.memory_space<vmem>>, vector<1x32xf32>
    %522 = vector.broadcast %521 : vector<1x32xf32> to vector<16x32xf32>
    %523 = arith.addf %520, %522 : vector<16x32xf32>
    %c0_174 = arith.constant 0 : index
    %c0_175 = arith.constant 0 : index
    %524 = vector.load %arg12[%c0_174, %c0_175] : memref<32x128xf32, #tpu.memory_space<vmem>>, vector<32x128xf32>
    %c0_176 = arith.constant 0 : index
    %c0_177 = arith.constant 0 : index
    %525 = vector.load %arg13[%c0_176, %c0_177] : memref<32x128xf32, #tpu.memory_space<vmem>>, vector<32x128xf32>
    %c0_178 = arith.constant 0 : index
    %c0_179 = arith.constant 0 : index
    %526 = vector.load %arg14[%c0_178, %c0_179] : memref<1x128xf32, #tpu.memory_space<vmem>>, vector<1x128xf32>
    %cst_180 = arith.constant dense<0.000000e+00> : vector<16x128xf32>
    %527 = tpu.matmul %523, %524, %cst_180 {dimension_numbers = #tpu.dot_dimension_numbers<[1], [0], [0], [1], [0, 0, 1, 1], [], []>} : vector<16x32xf32>, vector<32x128xf32>, vector<16x128xf32> -> vector<16x128xf32>
    %528 = vector.broadcast %526 : vector<1x128xf32> to vector<16x128xf32>
    %529 = arith.addf %527, %528 : vector<16x128xf32>
    %c0_181 = arith.constant 0 : index
    %c0_182 = arith.constant 0 : index
    %c0_183 = arith.constant 0 : index
    %530 = vector.load %arg10[%c0_181, %c0_182, %c0_183] : memref<2x2x32xf32, #tpu.memory_space<vmem>>, vector<1x2x32xf32>
    %531 = vector.shape_cast %530 : vector<1x2x32xf32> to vector<2x32xf32>
    %c0_184 = arith.constant 0 : index
    %c0_185 = arith.constant 0 : index
    %c0_186 = arith.constant 0 : index
    %532 = vector.load %arg11[%c0_184, %c0_185, %c0_186] : memref<2x2x32xf32, #tpu.memory_space<vmem>>, vector<1x2x32xf32>
    %533 = vector.shape_cast %532 : vector<1x2x32xf32> to vector<2x32xf32>
    %534 = vector.extract_strided_slice %529 {offsets = [0, 0], sizes = [2, 128], strides = [1, 1]} : vector<16x128xf32> to vector<2x128xf32>
    %cst_187 = arith.constant dense<0.000000e+00> : vector<2x128xf32>
    %535 = tpu.matmul %531, %525, %cst_187 {dimension_numbers = #tpu.dot_dimension_numbers<[1], [0], [0], [1], [0, 0, 1, 1], [], []>} : vector<2x32xf32>, vector<32x128xf32>, vector<2x128xf32> -> vector<2x128xf32>
    %536 = arith.addf %534, %535 : vector<2x128xf32>
    %537 = vector.extract_strided_slice %536 {offsets = [0, 0], sizes = [2, 32], strides = [1, 1]} : vector<2x128xf32> to vector<2x32xf32>
    %cst_188 = arith.constant 5.000000e-01 : f32
    %538 = vector.broadcast %cst_188 : f32 to vector<2x32xf32>
    %539 = arith.mulf %538, %537 : vector<2x32xf32>
    %540 = math.tanh %539 : vector<2x32xf32>
    %cst_189 = arith.constant 1.000000e+00 : f32
    %541 = vector.broadcast %cst_189 : f32 to vector<2x32xf32>
    %542 = arith.addf %540, %541 : vector<2x32xf32>
    %cst_190 = arith.constant 5.000000e-01 : f32
    %543 = vector.broadcast %cst_190 : f32 to vector<2x32xf32>
    %544 = arith.mulf %543, %542 : vector<2x32xf32>
    %545 = vector.extract_strided_slice %536 {offsets = [0, 32], sizes = [2, 32], strides = [1, 1]} : vector<2x128xf32> to vector<2x32xf32>
    %cst_191 = arith.constant 5.000000e-01 : f32
    %546 = vector.broadcast %cst_191 : f32 to vector<2x32xf32>
    %547 = arith.mulf %546, %545 : vector<2x32xf32>
    %548 = math.tanh %547 : vector<2x32xf32>
    %cst_192 = arith.constant 1.000000e+00 : f32
    %549 = vector.broadcast %cst_192 : f32 to vector<2x32xf32>
    %550 = arith.addf %548, %549 : vector<2x32xf32>
    %cst_193 = arith.constant 5.000000e-01 : f32
    %551 = vector.broadcast %cst_193 : f32 to vector<2x32xf32>
    %552 = arith.mulf %551, %550 : vector<2x32xf32>
    %553 = vector.extract_strided_slice %536 {offsets = [0, 64], sizes = [2, 32], strides = [1, 1]} : vector<2x128xf32> to vector<2x32xf32>
    %554 = math.tanh %553 : vector<2x32xf32>
    %555 = vector.extract_strided_slice %536 {offsets = [0, 96], sizes = [2, 32], strides = [1, 1]} : vector<2x128xf32> to vector<2x32xf32>
    %cst_194 = arith.constant 5.000000e-01 : f32
    %556 = vector.broadcast %cst_194 : f32 to vector<2x32xf32>
    %557 = arith.mulf %556, %555 : vector<2x32xf32>
    %558 = math.tanh %557 : vector<2x32xf32>
    %cst_195 = arith.constant 1.000000e+00 : f32
    %559 = vector.broadcast %cst_195 : f32 to vector<2x32xf32>
    %560 = arith.addf %558, %559 : vector<2x32xf32>
    %cst_196 = arith.constant 5.000000e-01 : f32
    %561 = vector.broadcast %cst_196 : f32 to vector<2x32xf32>
    %562 = arith.mulf %561, %560 : vector<2x32xf32>
    %563 = arith.mulf %552, %533 : vector<2x32xf32>
    %564 = arith.mulf %544, %554 : vector<2x32xf32>
    %565 = arith.addf %563, %564 : vector<2x32xf32>
    %566 = math.tanh %565 : vector<2x32xf32>
    %567 = arith.mulf %562, %566 : vector<2x32xf32>
    %568 = vector.extract_strided_slice %529 {offsets = [2, 0], sizes = [2, 128], strides = [1, 1]} : vector<16x128xf32> to vector<2x128xf32>
    %cst_197 = arith.constant dense<0.000000e+00> : vector<2x128xf32>
    %569 = tpu.matmul %567, %525, %cst_197 {dimension_numbers = #tpu.dot_dimension_numbers<[1], [0], [0], [1], [0, 0, 1, 1], [], []>} : vector<2x32xf32>, vector<32x128xf32>, vector<2x128xf32> -> vector<2x128xf32>
    %570 = arith.addf %568, %569 : vector<2x128xf32>
    %571 = vector.extract_strided_slice %570 {offsets = [0, 0], sizes = [2, 32], strides = [1, 1]} : vector<2x128xf32> to vector<2x32xf32>
    %cst_198 = arith.constant 5.000000e-01 : f32
    %572 = vector.broadcast %cst_198 : f32 to vector<2x32xf32>
    %573 = arith.mulf %572, %571 : vector<2x32xf32>
    %574 = math.tanh %573 : vector<2x32xf32>
    %cst_199 = arith.constant 1.000000e+00 : f32
    %575 = vector.broadcast %cst_199 : f32 to vector<2x32xf32>
    %576 = arith.addf %574, %575 : vector<2x32xf32>
    %cst_200 = arith.constant 5.000000e-01 : f32
    %577 = vector.broadcast %cst_200 : f32 to vector<2x32xf32>
    %578 = arith.mulf %577, %576 : vector<2x32xf32>
    %579 = vector.extract_strided_slice %570 {offsets = [0, 32], sizes = [2, 32], strides = [1, 1]} : vector<2x128xf32> to vector<2x32xf32>
    %cst_201 = arith.constant 5.000000e-01 : f32
    %580 = vector.broadcast %cst_201 : f32 to vector<2x32xf32>
    %581 = arith.mulf %580, %579 : vector<2x32xf32>
    %582 = math.tanh %581 : vector<2x32xf32>
    %cst_202 = arith.constant 1.000000e+00 : f32
    %583 = vector.broadcast %cst_202 : f32 to vector<2x32xf32>
    %584 = arith.addf %582, %583 : vector<2x32xf32>
    %cst_203 = arith.constant 5.000000e-01 : f32
    %585 = vector.broadcast %cst_203 : f32 to vector<2x32xf32>
    %586 = arith.mulf %585, %584 : vector<2x32xf32>
    %587 = vector.extract_strided_slice %570 {offsets = [0, 64], sizes = [2, 32], strides = [1, 1]} : vector<2x128xf32> to vector<2x32xf32>
    %588 = math.tanh %587 : vector<2x32xf32>
    %589 = vector.extract_strided_slice %570 {offsets = [0, 96], sizes = [2, 32], strides = [1, 1]} : vector<2x128xf32> to vector<2x32xf32>
    %cst_204 = arith.constant 5.000000e-01 : f32
    %590 = vector.broadcast %cst_204 : f32 to vector<2x32xf32>
    %591 = arith.mulf %590, %589 : vector<2x32xf32>
    %592 = math.tanh %591 : vector<2x32xf32>
    %cst_205 = arith.constant 1.000000e+00 : f32
    %593 = vector.broadcast %cst_205 : f32 to vector<2x32xf32>
    %594 = arith.addf %592, %593 : vector<2x32xf32>
    %cst_206 = arith.constant 5.000000e-01 : f32
    %595 = vector.broadcast %cst_206 : f32 to vector<2x32xf32>
    %596 = arith.mulf %595, %594 : vector<2x32xf32>
    %597 = arith.mulf %586, %565 : vector<2x32xf32>
    %598 = arith.mulf %578, %588 : vector<2x32xf32>
    %599 = arith.addf %597, %598 : vector<2x32xf32>
    %600 = math.tanh %599 : vector<2x32xf32>
    %601 = arith.mulf %596, %600 : vector<2x32xf32>
    %602 = vector.extract_strided_slice %529 {offsets = [4, 0], sizes = [2, 128], strides = [1, 1]} : vector<16x128xf32> to vector<2x128xf32>
    %cst_207 = arith.constant dense<0.000000e+00> : vector<2x128xf32>
    %603 = tpu.matmul %601, %525, %cst_207 {dimension_numbers = #tpu.dot_dimension_numbers<[1], [0], [0], [1], [0, 0, 1, 1], [], []>} : vector<2x32xf32>, vector<32x128xf32>, vector<2x128xf32> -> vector<2x128xf32>
    %604 = arith.addf %602, %603 : vector<2x128xf32>
    %605 = vector.extract_strided_slice %604 {offsets = [0, 0], sizes = [2, 32], strides = [1, 1]} : vector<2x128xf32> to vector<2x32xf32>
    %cst_208 = arith.constant 5.000000e-01 : f32
    %606 = vector.broadcast %cst_208 : f32 to vector<2x32xf32>
    %607 = arith.mulf %606, %605 : vector<2x32xf32>
    %608 = math.tanh %607 : vector<2x32xf32>
    %cst_209 = arith.constant 1.000000e+00 : f32
    %609 = vector.broadcast %cst_209 : f32 to vector<2x32xf32>
    %610 = arith.addf %608, %609 : vector<2x32xf32>
    %cst_210 = arith.constant 5.000000e-01 : f32
    %611 = vector.broadcast %cst_210 : f32 to vector<2x32xf32>
    %612 = arith.mulf %611, %610 : vector<2x32xf32>
    %613 = vector.extract_strided_slice %604 {offsets = [0, 32], sizes = [2, 32], strides = [1, 1]} : vector<2x128xf32> to vector<2x32xf32>
    %cst_211 = arith.constant 5.000000e-01 : f32
    %614 = vector.broadcast %cst_211 : f32 to vector<2x32xf32>
    %615 = arith.mulf %614, %613 : vector<2x32xf32>
    %616 = math.tanh %615 : vector<2x32xf32>
    %cst_212 = arith.constant 1.000000e+00 : f32
    %617 = vector.broadcast %cst_212 : f32 to vector<2x32xf32>
    %618 = arith.addf %616, %617 : vector<2x32xf32>
    %cst_213 = arith.constant 5.000000e-01 : f32
    %619 = vector.broadcast %cst_213 : f32 to vector<2x32xf32>
    %620 = arith.mulf %619, %618 : vector<2x32xf32>
    %621 = vector.extract_strided_slice %604 {offsets = [0, 64], sizes = [2, 32], strides = [1, 1]} : vector<2x128xf32> to vector<2x32xf32>
    %622 = math.tanh %621 : vector<2x32xf32>
    %623 = vector.extract_strided_slice %604 {offsets = [0, 96], sizes = [2, 32], strides = [1, 1]} : vector<2x128xf32> to vector<2x32xf32>
    %cst_214 = arith.constant 5.000000e-01 : f32
    %624 = vector.broadcast %cst_214 : f32 to vector<2x32xf32>
    %625 = arith.mulf %624, %623 : vector<2x32xf32>
    %626 = math.tanh %625 : vector<2x32xf32>
    %cst_215 = arith.constant 1.000000e+00 : f32
    %627 = vector.broadcast %cst_215 : f32 to vector<2x32xf32>
    %628 = arith.addf %626, %627 : vector<2x32xf32>
    %cst_216 = arith.constant 5.000000e-01 : f32
    %629 = vector.broadcast %cst_216 : f32 to vector<2x32xf32>
    %630 = arith.mulf %629, %628 : vector<2x32xf32>
    %631 = arith.mulf %620, %599 : vector<2x32xf32>
    %632 = arith.mulf %612, %622 : vector<2x32xf32>
    %633 = arith.addf %631, %632 : vector<2x32xf32>
    %634 = math.tanh %633 : vector<2x32xf32>
    %635 = arith.mulf %630, %634 : vector<2x32xf32>
    %636 = vector.extract_strided_slice %529 {offsets = [6, 0], sizes = [2, 128], strides = [1, 1]} : vector<16x128xf32> to vector<2x128xf32>
    %cst_217 = arith.constant dense<0.000000e+00> : vector<2x128xf32>
    %637 = tpu.matmul %635, %525, %cst_217 {dimension_numbers = #tpu.dot_dimension_numbers<[1], [0], [0], [1], [0, 0, 1, 1], [], []>} : vector<2x32xf32>, vector<32x128xf32>, vector<2x128xf32> -> vector<2x128xf32>
    %638 = arith.addf %636, %637 : vector<2x128xf32>
    %639 = vector.extract_strided_slice %638 {offsets = [0, 0], sizes = [2, 32], strides = [1, 1]} : vector<2x128xf32> to vector<2x32xf32>
    %cst_218 = arith.constant 5.000000e-01 : f32
    %640 = vector.broadcast %cst_218 : f32 to vector<2x32xf32>
    %641 = arith.mulf %640, %639 : vector<2x32xf32>
    %642 = math.tanh %641 : vector<2x32xf32>
    %cst_219 = arith.constant 1.000000e+00 : f32
    %643 = vector.broadcast %cst_219 : f32 to vector<2x32xf32>
    %644 = arith.addf %642, %643 : vector<2x32xf32>
    %cst_220 = arith.constant 5.000000e-01 : f32
    %645 = vector.broadcast %cst_220 : f32 to vector<2x32xf32>
    %646 = arith.mulf %645, %644 : vector<2x32xf32>
    %647 = vector.extract_strided_slice %638 {offsets = [0, 32], sizes = [2, 32], strides = [1, 1]} : vector<2x128xf32> to vector<2x32xf32>
    %cst_221 = arith.constant 5.000000e-01 : f32
    %648 = vector.broadcast %cst_221 : f32 to vector<2x32xf32>
    %649 = arith.mulf %648, %647 : vector<2x32xf32>
    %650 = math.tanh %649 : vector<2x32xf32>
    %cst_222 = arith.constant 1.000000e+00 : f32
    %651 = vector.broadcast %cst_222 : f32 to vector<2x32xf32>
    %652 = arith.addf %650, %651 : vector<2x32xf32>
    %cst_223 = arith.constant 5.000000e-01 : f32
    %653 = vector.broadcast %cst_223 : f32 to vector<2x32xf32>
    %654 = arith.mulf %653, %652 : vector<2x32xf32>
    %655 = vector.extract_strided_slice %638 {offsets = [0, 64], sizes = [2, 32], strides = [1, 1]} : vector<2x128xf32> to vector<2x32xf32>
    %656 = math.tanh %655 : vector<2x32xf32>
    %657 = vector.extract_strided_slice %638 {offsets = [0, 96], sizes = [2, 32], strides = [1, 1]} : vector<2x128xf32> to vector<2x32xf32>
    %cst_224 = arith.constant 5.000000e-01 : f32
    %658 = vector.broadcast %cst_224 : f32 to vector<2x32xf32>
    %659 = arith.mulf %658, %657 : vector<2x32xf32>
    %660 = math.tanh %659 : vector<2x32xf32>
    %cst_225 = arith.constant 1.000000e+00 : f32
    %661 = vector.broadcast %cst_225 : f32 to vector<2x32xf32>
    %662 = arith.addf %660, %661 : vector<2x32xf32>
    %cst_226 = arith.constant 5.000000e-01 : f32
    %663 = vector.broadcast %cst_226 : f32 to vector<2x32xf32>
    %664 = arith.mulf %663, %662 : vector<2x32xf32>
    %665 = arith.mulf %654, %633 : vector<2x32xf32>
    %666 = arith.mulf %646, %656 : vector<2x32xf32>
    %667 = arith.addf %665, %666 : vector<2x32xf32>
    %668 = math.tanh %667 : vector<2x32xf32>
    %669 = arith.mulf %664, %668 : vector<2x32xf32>
    %670 = vector.extract_strided_slice %529 {offsets = [8, 0], sizes = [2, 128], strides = [1, 1]} : vector<16x128xf32> to vector<2x128xf32>
    %cst_227 = arith.constant dense<0.000000e+00> : vector<2x128xf32>
    %671 = tpu.matmul %669, %525, %cst_227 {dimension_numbers = #tpu.dot_dimension_numbers<[1], [0], [0], [1], [0, 0, 1, 1], [], []>} : vector<2x32xf32>, vector<32x128xf32>, vector<2x128xf32> -> vector<2x128xf32>
    %672 = arith.addf %670, %671 : vector<2x128xf32>
    %673 = vector.extract_strided_slice %672 {offsets = [0, 0], sizes = [2, 32], strides = [1, 1]} : vector<2x128xf32> to vector<2x32xf32>
    %cst_228 = arith.constant 5.000000e-01 : f32
    %674 = vector.broadcast %cst_228 : f32 to vector<2x32xf32>
    %675 = arith.mulf %674, %673 : vector<2x32xf32>
    %676 = math.tanh %675 : vector<2x32xf32>
    %cst_229 = arith.constant 1.000000e+00 : f32
    %677 = vector.broadcast %cst_229 : f32 to vector<2x32xf32>
    %678 = arith.addf %676, %677 : vector<2x32xf32>
    %cst_230 = arith.constant 5.000000e-01 : f32
    %679 = vector.broadcast %cst_230 : f32 to vector<2x32xf32>
    %680 = arith.mulf %679, %678 : vector<2x32xf32>
    %681 = vector.extract_strided_slice %672 {offsets = [0, 32], sizes = [2, 32], strides = [1, 1]} : vector<2x128xf32> to vector<2x32xf32>
    %cst_231 = arith.constant 5.000000e-01 : f32
    %682 = vector.broadcast %cst_231 : f32 to vector<2x32xf32>
    %683 = arith.mulf %682, %681 : vector<2x32xf32>
    %684 = math.tanh %683 : vector<2x32xf32>
    %cst_232 = arith.constant 1.000000e+00 : f32
    %685 = vector.broadcast %cst_232 : f32 to vector<2x32xf32>
    %686 = arith.addf %684, %685 : vector<2x32xf32>
    %cst_233 = arith.constant 5.000000e-01 : f32
    %687 = vector.broadcast %cst_233 : f32 to vector<2x32xf32>
    %688 = arith.mulf %687, %686 : vector<2x32xf32>
    %689 = vector.extract_strided_slice %672 {offsets = [0, 64], sizes = [2, 32], strides = [1, 1]} : vector<2x128xf32> to vector<2x32xf32>
    %690 = math.tanh %689 : vector<2x32xf32>
    %691 = vector.extract_strided_slice %672 {offsets = [0, 96], sizes = [2, 32], strides = [1, 1]} : vector<2x128xf32> to vector<2x32xf32>
    %cst_234 = arith.constant 5.000000e-01 : f32
    %692 = vector.broadcast %cst_234 : f32 to vector<2x32xf32>
    %693 = arith.mulf %692, %691 : vector<2x32xf32>
    %694 = math.tanh %693 : vector<2x32xf32>
    %cst_235 = arith.constant 1.000000e+00 : f32
    %695 = vector.broadcast %cst_235 : f32 to vector<2x32xf32>
    %696 = arith.addf %694, %695 : vector<2x32xf32>
    %cst_236 = arith.constant 5.000000e-01 : f32
    %697 = vector.broadcast %cst_236 : f32 to vector<2x32xf32>
    %698 = arith.mulf %697, %696 : vector<2x32xf32>
    %699 = arith.mulf %688, %667 : vector<2x32xf32>
    %700 = arith.mulf %680, %690 : vector<2x32xf32>
    %701 = arith.addf %699, %700 : vector<2x32xf32>
    %702 = math.tanh %701 : vector<2x32xf32>
    %703 = arith.mulf %698, %702 : vector<2x32xf32>
    %704 = vector.extract_strided_slice %529 {offsets = [10, 0], sizes = [2, 128], strides = [1, 1]} : vector<16x128xf32> to vector<2x128xf32>
    %cst_237 = arith.constant dense<0.000000e+00> : vector<2x128xf32>
    %705 = tpu.matmul %703, %525, %cst_237 {dimension_numbers = #tpu.dot_dimension_numbers<[1], [0], [0], [1], [0, 0, 1, 1], [], []>} : vector<2x32xf32>, vector<32x128xf32>, vector<2x128xf32> -> vector<2x128xf32>
    %706 = arith.addf %704, %705 : vector<2x128xf32>
    %707 = vector.extract_strided_slice %706 {offsets = [0, 0], sizes = [2, 32], strides = [1, 1]} : vector<2x128xf32> to vector<2x32xf32>
    %cst_238 = arith.constant 5.000000e-01 : f32
    %708 = vector.broadcast %cst_238 : f32 to vector<2x32xf32>
    %709 = arith.mulf %708, %707 : vector<2x32xf32>
    %710 = math.tanh %709 : vector<2x32xf32>
    %cst_239 = arith.constant 1.000000e+00 : f32
    %711 = vector.broadcast %cst_239 : f32 to vector<2x32xf32>
    %712 = arith.addf %710, %711 : vector<2x32xf32>
    %cst_240 = arith.constant 5.000000e-01 : f32
    %713 = vector.broadcast %cst_240 : f32 to vector<2x32xf32>
    %714 = arith.mulf %713, %712 : vector<2x32xf32>
    %715 = vector.extract_strided_slice %706 {offsets = [0, 32], sizes = [2, 32], strides = [1, 1]} : vector<2x128xf32> to vector<2x32xf32>
    %cst_241 = arith.constant 5.000000e-01 : f32
    %716 = vector.broadcast %cst_241 : f32 to vector<2x32xf32>
    %717 = arith.mulf %716, %715 : vector<2x32xf32>
    %718 = math.tanh %717 : vector<2x32xf32>
    %cst_242 = arith.constant 1.000000e+00 : f32
    %719 = vector.broadcast %cst_242 : f32 to vector<2x32xf32>
    %720 = arith.addf %718, %719 : vector<2x32xf32>
    %cst_243 = arith.constant 5.000000e-01 : f32
    %721 = vector.broadcast %cst_243 : f32 to vector<2x32xf32>
    %722 = arith.mulf %721, %720 : vector<2x32xf32>
    %723 = vector.extract_strided_slice %706 {offsets = [0, 64], sizes = [2, 32], strides = [1, 1]} : vector<2x128xf32> to vector<2x32xf32>
    %724 = math.tanh %723 : vector<2x32xf32>
    %725 = vector.extract_strided_slice %706 {offsets = [0, 96], sizes = [2, 32], strides = [1, 1]} : vector<2x128xf32> to vector<2x32xf32>
    %cst_244 = arith.constant 5.000000e-01 : f32
    %726 = vector.broadcast %cst_244 : f32 to vector<2x32xf32>
    %727 = arith.mulf %726, %725 : vector<2x32xf32>
    %728 = math.tanh %727 : vector<2x32xf32>
    %cst_245 = arith.constant 1.000000e+00 : f32
    %729 = vector.broadcast %cst_245 : f32 to vector<2x32xf32>
    %730 = arith.addf %728, %729 : vector<2x32xf32>
    %cst_246 = arith.constant 5.000000e-01 : f32
    %731 = vector.broadcast %cst_246 : f32 to vector<2x32xf32>
    %732 = arith.mulf %731, %730 : vector<2x32xf32>
    %733 = arith.mulf %722, %701 : vector<2x32xf32>
    %734 = arith.mulf %714, %724 : vector<2x32xf32>
    %735 = arith.addf %733, %734 : vector<2x32xf32>
    %736 = math.tanh %735 : vector<2x32xf32>
    %737 = arith.mulf %732, %736 : vector<2x32xf32>
    %738 = vector.extract_strided_slice %529 {offsets = [12, 0], sizes = [2, 128], strides = [1, 1]} : vector<16x128xf32> to vector<2x128xf32>
    %cst_247 = arith.constant dense<0.000000e+00> : vector<2x128xf32>
    %739 = tpu.matmul %737, %525, %cst_247 {dimension_numbers = #tpu.dot_dimension_numbers<[1], [0], [0], [1], [0, 0, 1, 1], [], []>} : vector<2x32xf32>, vector<32x128xf32>, vector<2x128xf32> -> vector<2x128xf32>
    %740 = arith.addf %738, %739 : vector<2x128xf32>
    %741 = vector.extract_strided_slice %740 {offsets = [0, 0], sizes = [2, 32], strides = [1, 1]} : vector<2x128xf32> to vector<2x32xf32>
    %cst_248 = arith.constant 5.000000e-01 : f32
    %742 = vector.broadcast %cst_248 : f32 to vector<2x32xf32>
    %743 = arith.mulf %742, %741 : vector<2x32xf32>
    %744 = math.tanh %743 : vector<2x32xf32>
    %cst_249 = arith.constant 1.000000e+00 : f32
    %745 = vector.broadcast %cst_249 : f32 to vector<2x32xf32>
    %746 = arith.addf %744, %745 : vector<2x32xf32>
    %cst_250 = arith.constant 5.000000e-01 : f32
    %747 = vector.broadcast %cst_250 : f32 to vector<2x32xf32>
    %748 = arith.mulf %747, %746 : vector<2x32xf32>
    %749 = vector.extract_strided_slice %740 {offsets = [0, 32], sizes = [2, 32], strides = [1, 1]} : vector<2x128xf32> to vector<2x32xf32>
    %cst_251 = arith.constant 5.000000e-01 : f32
    %750 = vector.broadcast %cst_251 : f32 to vector<2x32xf32>
    %751 = arith.mulf %750, %749 : vector<2x32xf32>
    %752 = math.tanh %751 : vector<2x32xf32>
    %cst_252 = arith.constant 1.000000e+00 : f32
    %753 = vector.broadcast %cst_252 : f32 to vector<2x32xf32>
    %754 = arith.addf %752, %753 : vector<2x32xf32>
    %cst_253 = arith.constant 5.000000e-01 : f32
    %755 = vector.broadcast %cst_253 : f32 to vector<2x32xf32>
    %756 = arith.mulf %755, %754 : vector<2x32xf32>
    %757 = vector.extract_strided_slice %740 {offsets = [0, 64], sizes = [2, 32], strides = [1, 1]} : vector<2x128xf32> to vector<2x32xf32>
    %758 = math.tanh %757 : vector<2x32xf32>
    %759 = vector.extract_strided_slice %740 {offsets = [0, 96], sizes = [2, 32], strides = [1, 1]} : vector<2x128xf32> to vector<2x32xf32>
    %cst_254 = arith.constant 5.000000e-01 : f32
    %760 = vector.broadcast %cst_254 : f32 to vector<2x32xf32>
    %761 = arith.mulf %760, %759 : vector<2x32xf32>
    %762 = math.tanh %761 : vector<2x32xf32>
    %cst_255 = arith.constant 1.000000e+00 : f32
    %763 = vector.broadcast %cst_255 : f32 to vector<2x32xf32>
    %764 = arith.addf %762, %763 : vector<2x32xf32>
    %cst_256 = arith.constant 5.000000e-01 : f32
    %765 = vector.broadcast %cst_256 : f32 to vector<2x32xf32>
    %766 = arith.mulf %765, %764 : vector<2x32xf32>
    %767 = arith.mulf %756, %735 : vector<2x32xf32>
    %768 = arith.mulf %748, %758 : vector<2x32xf32>
    %769 = arith.addf %767, %768 : vector<2x32xf32>
    %770 = math.tanh %769 : vector<2x32xf32>
    %771 = arith.mulf %766, %770 : vector<2x32xf32>
    %772 = vector.extract_strided_slice %529 {offsets = [14, 0], sizes = [2, 128], strides = [1, 1]} : vector<16x128xf32> to vector<2x128xf32>
    %cst_257 = arith.constant dense<0.000000e+00> : vector<2x128xf32>
    %773 = tpu.matmul %771, %525, %cst_257 {dimension_numbers = #tpu.dot_dimension_numbers<[1], [0], [0], [1], [0, 0, 1, 1], [], []>} : vector<2x32xf32>, vector<32x128xf32>, vector<2x128xf32> -> vector<2x128xf32>
    %774 = arith.addf %772, %773 : vector<2x128xf32>
    %775 = vector.extract_strided_slice %774 {offsets = [0, 0], sizes = [2, 32], strides = [1, 1]} : vector<2x128xf32> to vector<2x32xf32>
    %cst_258 = arith.constant 5.000000e-01 : f32
    %776 = vector.broadcast %cst_258 : f32 to vector<2x32xf32>
    %777 = arith.mulf %776, %775 : vector<2x32xf32>
    %778 = math.tanh %777 : vector<2x32xf32>
    %cst_259 = arith.constant 1.000000e+00 : f32
    %779 = vector.broadcast %cst_259 : f32 to vector<2x32xf32>
    %780 = arith.addf %778, %779 : vector<2x32xf32>
    %cst_260 = arith.constant 5.000000e-01 : f32
    %781 = vector.broadcast %cst_260 : f32 to vector<2x32xf32>
    %782 = arith.mulf %781, %780 : vector<2x32xf32>
    %783 = vector.extract_strided_slice %774 {offsets = [0, 32], sizes = [2, 32], strides = [1, 1]} : vector<2x128xf32> to vector<2x32xf32>
    %cst_261 = arith.constant 5.000000e-01 : f32
    %784 = vector.broadcast %cst_261 : f32 to vector<2x32xf32>
    %785 = arith.mulf %784, %783 : vector<2x32xf32>
    %786 = math.tanh %785 : vector<2x32xf32>
    %cst_262 = arith.constant 1.000000e+00 : f32
    %787 = vector.broadcast %cst_262 : f32 to vector<2x32xf32>
    %788 = arith.addf %786, %787 : vector<2x32xf32>
    %cst_263 = arith.constant 5.000000e-01 : f32
    %789 = vector.broadcast %cst_263 : f32 to vector<2x32xf32>
    %790 = arith.mulf %789, %788 : vector<2x32xf32>
    %791 = vector.extract_strided_slice %774 {offsets = [0, 64], sizes = [2, 32], strides = [1, 1]} : vector<2x128xf32> to vector<2x32xf32>
    %792 = math.tanh %791 : vector<2x32xf32>
    %793 = vector.extract_strided_slice %774 {offsets = [0, 96], sizes = [2, 32], strides = [1, 1]} : vector<2x128xf32> to vector<2x32xf32>
    %cst_264 = arith.constant 5.000000e-01 : f32
    %794 = vector.broadcast %cst_264 : f32 to vector<2x32xf32>
    %795 = arith.mulf %794, %793 : vector<2x32xf32>
    %796 = math.tanh %795 : vector<2x32xf32>
    %cst_265 = arith.constant 1.000000e+00 : f32
    %797 = vector.broadcast %cst_265 : f32 to vector<2x32xf32>
    %798 = arith.addf %796, %797 : vector<2x32xf32>
    %cst_266 = arith.constant 5.000000e-01 : f32
    %799 = vector.broadcast %cst_266 : f32 to vector<2x32xf32>
    %800 = arith.mulf %799, %798 : vector<2x32xf32>
    %801 = arith.mulf %790, %769 : vector<2x32xf32>
    %802 = arith.mulf %782, %792 : vector<2x32xf32>
    %803 = arith.addf %801, %802 : vector<2x32xf32>
    %804 = math.tanh %803 : vector<2x32xf32>
    %805 = arith.mulf %800, %804 : vector<2x32xf32>
    %806 = tpu.concatenate %567, %601, %635, %669, %703, %737, %771, %805 in 0 : vector<2x32xf32>, vector<2x32xf32>, vector<2x32xf32>, vector<2x32xf32>, vector<2x32xf32>, vector<2x32xf32>, vector<2x32xf32>, vector<2x32xf32> -> vector<16x32xf32>
    %c0_267 = arith.constant 0 : index
    %c0_268 = arith.constant 0 : index
    %c0_269 = arith.constant 0 : index
    %807 = vector.load %arg21[%c0_267, %c0_268, %c0_269] : memref<2x2x32xf32, #tpu.memory_space<vmem>>, vector<1x2x32xf32>
    %808 = vector.shape_cast %807 : vector<1x2x32xf32> to vector<2x32xf32>
    %809 = vector.shape_cast %805 : vector<2x32xf32> to vector<1x2x32xf32>
    tpu.vector_store %arg21[%c0_267, %c0_268, %c0_269], %809 {strides = array<i32>} : memref<2x2x32xf32, #tpu.memory_space<vmem>>, vector<1x2x32xf32>,
    %c0_270 = arith.constant 0 : index
    %c0_271 = arith.constant 0 : index
    %c0_272 = arith.constant 0 : index
    %810 = vector.load %arg22[%c0_270, %c0_271, %c0_272] : memref<2x2x32xf32, #tpu.memory_space<vmem>>, vector<1x2x32xf32>
    %811 = vector.shape_cast %810 : vector<1x2x32xf32> to vector<2x32xf32>
    %812 = vector.shape_cast %803 : vector<2x32xf32> to vector<1x2x32xf32>
    tpu.vector_store %arg22[%c0_270, %c0_271, %c0_272], %812 {strides = array<i32>} : memref<2x2x32xf32, #tpu.memory_space<vmem>>, vector<1x2x32xf32>,
    %c0_273 = arith.constant 0 : index
    %c0_274 = arith.constant 0 : index
    %813 = vector.load %arg15[%c0_273, %c0_274] : memref<32x128xf32, #tpu.memory_space<vmem>>, vector<32x128xf32>
    %c0_275 = arith.constant 0 : index
    %c0_276 = arith.constant 0 : index
    %814 = vector.load %arg16[%c0_275, %c0_276] : memref<32x128xf32, #tpu.memory_space<vmem>>, vector<32x128xf32>
    %c0_277 = arith.constant 0 : index
    %c0_278 = arith.constant 0 : index
    %815 = vector.load %arg17[%c0_277, %c0_278] : memref<1x128xf32, #tpu.memory_space<vmem>>, vector<1x128xf32>
    %cst_279 = arith.constant dense<0.000000e+00> : vector<16x128xf32>
    %816 = tpu.matmul %806, %813, %cst_279 {dimension_numbers = #tpu.dot_dimension_numbers<[1], [0], [0], [1], [0, 0, 1, 1], [], []>} : vector<16x32xf32>, vector<32x128xf32>, vector<16x128xf32> -> vector<16x128xf32>
    %817 = vector.broadcast %815 : vector<1x128xf32> to vector<16x128xf32>
    %818 = arith.addf %816, %817 : vector<16x128xf32>
    %c1 = arith.constant 1 : index
    %c0_280 = arith.constant 0 : index
    %c0_281 = arith.constant 0 : index
    %819 = vector.load %arg10[%c1, %c0_280, %c0_281] : memref<2x2x32xf32, #tpu.memory_space<vmem>>, vector<1x2x32xf32>
    %820 = vector.shape_cast %819 : vector<1x2x32xf32> to vector<2x32xf32>
    %c1_282 = arith.constant 1 : index
    %c0_283 = arith.constant 0 : index
    %c0_284 = arith.constant 0 : index
    %821 = vector.load %arg11[%c1_282, %c0_283, %c0_284] : memref<2x2x32xf32, #tpu.memory_space<vmem>>, vector<1x2x32xf32>
    %822 = vector.shape_cast %821 : vector<1x2x32xf32> to vector<2x32xf32>
    %823 = vector.extract_strided_slice %818 {offsets = [0, 0], sizes = [2, 128], strides = [1, 1]} : vector<16x128xf32> to vector<2x128xf32>
    %cst_285 = arith.constant dense<0.000000e+00> : vector<2x128xf32>
    %824 = tpu.matmul %820, %814, %cst_285 {dimension_numbers = #tpu.dot_dimension_numbers<[1], [0], [0], [1], [0, 0, 1, 1], [], []>} : vector<2x32xf32>, vector<32x128xf32>, vector<2x128xf32> -> vector<2x128xf32>
    %825 = arith.addf %823, %824 : vector<2x128xf32>
    %826 = vector.extract_strided_slice %825 {offsets = [0, 0], sizes = [2, 32], strides = [1, 1]} : vector<2x128xf32> to vector<2x32xf32>
    %cst_286 = arith.constant 5.000000e-01 : f32
    %827 = vector.broadcast %cst_286 : f32 to vector<2x32xf32>
    %828 = arith.mulf %827, %826 : vector<2x32xf32>
    %829 = math.tanh %828 : vector<2x32xf32>
    %cst_287 = arith.constant 1.000000e+00 : f32
    %830 = vector.broadcast %cst_287 : f32 to vector<2x32xf32>
    %831 = arith.addf %829, %830 : vector<2x32xf32>
    %cst_288 = arith.constant 5.000000e-01 : f32
    %832 = vector.broadcast %cst_288 : f32 to vector<2x32xf32>
    %833 = arith.mulf %832, %831 : vector<2x32xf32>
    %834 = vector.extract_strided_slice %825 {offsets = [0, 32], sizes = [2, 32], strides = [1, 1]} : vector<2x128xf32> to vector<2x32xf32>
    %cst_289 = arith.constant 5.000000e-01 : f32
    %835 = vector.broadcast %cst_289 : f32 to vector<2x32xf32>
    %836 = arith.mulf %835, %834 : vector<2x32xf32>
    %837 = math.tanh %836 : vector<2x32xf32>
    %cst_290 = arith.constant 1.000000e+00 : f32
    %838 = vector.broadcast %cst_290 : f32 to vector<2x32xf32>
    %839 = arith.addf %837, %838 : vector<2x32xf32>
    %cst_291 = arith.constant 5.000000e-01 : f32
    %840 = vector.broadcast %cst_291 : f32 to vector<2x32xf32>
    %841 = arith.mulf %840, %839 : vector<2x32xf32>
    %842 = vector.extract_strided_slice %825 {offsets = [0, 64], sizes = [2, 32], strides = [1, 1]} : vector<2x128xf32> to vector<2x32xf32>
    %843 = math.tanh %842 : vector<2x32xf32>
    %844 = vector.extract_strided_slice %825 {offsets = [0, 96], sizes = [2, 32], strides = [1, 1]} : vector<2x128xf32> to vector<2x32xf32>
    %cst_292 = arith.constant 5.000000e-01 : f32
    %845 = vector.broadcast %cst_292 : f32 to vector<2x32xf32>
    %846 = arith.mulf %845, %844 : vector<2x32xf32>
    %847 = math.tanh %846 : vector<2x32xf32>
    %cst_293 = arith.constant 1.000000e+00 : f32
    %848 = vector.broadcast %cst_293 : f32 to vector<2x32xf32>
    %849 = arith.addf %847, %848 : vector<2x32xf32>
    %cst_294 = arith.constant 5.000000e-01 : f32
    %850 = vector.broadcast %cst_294 : f32 to vector<2x32xf32>
    %851 = arith.mulf %850, %849 : vector<2x32xf32>
    %852 = arith.mulf %841, %822 : vector<2x32xf32>
    %853 = arith.mulf %833, %843 : vector<2x32xf32>
    %854 = arith.addf %852, %853 : vector<2x32xf32>
    %855 = math.tanh %854 : vector<2x32xf32>
    %856 = arith.mulf %851, %855 : vector<2x32xf32>
    %857 = vector.extract_strided_slice %818 {offsets = [2, 0], sizes = [2, 128], strides = [1, 1]} : vector<16x128xf32> to vector<2x128xf32>
    %cst_295 = arith.constant dense<0.000000e+00> : vector<2x128xf32>
    %858 = tpu.matmul %856, %814, %cst_295 {dimension_numbers = #tpu.dot_dimension_numbers<[1], [0], [0], [1], [0, 0, 1, 1], [], []>} : vector<2x32xf32>, vector<32x128xf32>, vector<2x128xf32> -> vector<2x128xf32>
    %859 = arith.addf %857, %858 : vector<2x128xf32>
    %860 = vector.extract_strided_slice %859 {offsets = [0, 0], sizes = [2, 32], strides = [1, 1]} : vector<2x128xf32> to vector<2x32xf32>
    %cst_296 = arith.constant 5.000000e-01 : f32
    %861 = vector.broadcast %cst_296 : f32 to vector<2x32xf32>
    %862 = arith.mulf %861, %860 : vector<2x32xf32>
    %863 = math.tanh %862 : vector<2x32xf32>
    %cst_297 = arith.constant 1.000000e+00 : f32
    %864 = vector.broadcast %cst_297 : f32 to vector<2x32xf32>
    %865 = arith.addf %863, %864 : vector<2x32xf32>
    %cst_298 = arith.constant 5.000000e-01 : f32
    %866 = vector.broadcast %cst_298 : f32 to vector<2x32xf32>
    %867 = arith.mulf %866, %865 : vector<2x32xf32>
    %868 = vector.extract_strided_slice %859 {offsets = [0, 32], sizes = [2, 32], strides = [1, 1]} : vector<2x128xf32> to vector<2x32xf32>
    %cst_299 = arith.constant 5.000000e-01 : f32
    %869 = vector.broadcast %cst_299 : f32 to vector<2x32xf32>
    %870 = arith.mulf %869, %868 : vector<2x32xf32>
    %871 = math.tanh %870 : vector<2x32xf32>
    %cst_300 = arith.constant 1.000000e+00 : f32
    %872 = vector.broadcast %cst_300 : f32 to vector<2x32xf32>
    %873 = arith.addf %871, %872 : vector<2x32xf32>
    %cst_301 = arith.constant 5.000000e-01 : f32
    %874 = vector.broadcast %cst_301 : f32 to vector<2x32xf32>
    %875 = arith.mulf %874, %873 : vector<2x32xf32>
    %876 = vector.extract_strided_slice %859 {offsets = [0, 64], sizes = [2, 32], strides = [1, 1]} : vector<2x128xf32> to vector<2x32xf32>
    %877 = math.tanh %876 : vector<2x32xf32>
    %878 = vector.extract_strided_slice %859 {offsets = [0, 96], sizes = [2, 32], strides = [1, 1]} : vector<2x128xf32> to vector<2x32xf32>
    %cst_302 = arith.constant 5.000000e-01 : f32
    %879 = vector.broadcast %cst_302 : f32 to vector<2x32xf32>
    %880 = arith.mulf %879, %878 : vector<2x32xf32>
    %881 = math.tanh %880 : vector<2x32xf32>
    %cst_303 = arith.constant 1.000000e+00 : f32
    %882 = vector.broadcast %cst_303 : f32 to vector<2x32xf32>
    %883 = arith.addf %881, %882 : vector<2x32xf32>
    %cst_304 = arith.constant 5.000000e-01 : f32
    %884 = vector.broadcast %cst_304 : f32 to vector<2x32xf32>
    %885 = arith.mulf %884, %883 : vector<2x32xf32>
    %886 = arith.mulf %875, %854 : vector<2x32xf32>
    %887 = arith.mulf %867, %877 : vector<2x32xf32>
    %888 = arith.addf %886, %887 : vector<2x32xf32>
    %889 = math.tanh %888 : vector<2x32xf32>
    %890 = arith.mulf %885, %889 : vector<2x32xf32>
    %891 = vector.extract_strided_slice %818 {offsets = [4, 0], sizes = [2, 128], strides = [1, 1]} : vector<16x128xf32> to vector<2x128xf32>
    %cst_305 = arith.constant dense<0.000000e+00> : vector<2x128xf32>
    %892 = tpu.matmul %890, %814, %cst_305 {dimension_numbers = #tpu.dot_dimension_numbers<[1], [0], [0], [1], [0, 0, 1, 1], [], []>} : vector<2x32xf32>, vector<32x128xf32>, vector<2x128xf32> -> vector<2x128xf32>
    %893 = arith.addf %891, %892 : vector<2x128xf32>
    %894 = vector.extract_strided_slice %893 {offsets = [0, 0], sizes = [2, 32], strides = [1, 1]} : vector<2x128xf32> to vector<2x32xf32>
    %cst_306 = arith.constant 5.000000e-01 : f32
    %895 = vector.broadcast %cst_306 : f32 to vector<2x32xf32>
    %896 = arith.mulf %895, %894 : vector<2x32xf32>
    %897 = math.tanh %896 : vector<2x32xf32>
    %cst_307 = arith.constant 1.000000e+00 : f32
    %898 = vector.broadcast %cst_307 : f32 to vector<2x32xf32>
    %899 = arith.addf %897, %898 : vector<2x32xf32>
    %cst_308 = arith.constant 5.000000e-01 : f32
    %900 = vector.broadcast %cst_308 : f32 to vector<2x32xf32>
    %901 = arith.mulf %900, %899 : vector<2x32xf32>
    %902 = vector.extract_strided_slice %893 {offsets = [0, 32], sizes = [2, 32], strides = [1, 1]} : vector<2x128xf32> to vector<2x32xf32>
    %cst_309 = arith.constant 5.000000e-01 : f32
    %903 = vector.broadcast %cst_309 : f32 to vector<2x32xf32>
    %904 = arith.mulf %903, %902 : vector<2x32xf32>
    %905 = math.tanh %904 : vector<2x32xf32>
    %cst_310 = arith.constant 1.000000e+00 : f32
    %906 = vector.broadcast %cst_310 : f32 to vector<2x32xf32>
    %907 = arith.addf %905, %906 : vector<2x32xf32>
    %cst_311 = arith.constant 5.000000e-01 : f32
    %908 = vector.broadcast %cst_311 : f32 to vector<2x32xf32>
    %909 = arith.mulf %908, %907 : vector<2x32xf32>
    %910 = vector.extract_strided_slice %893 {offsets = [0, 64], sizes = [2, 32], strides = [1, 1]} : vector<2x128xf32> to vector<2x32xf32>
    %911 = math.tanh %910 : vector<2x32xf32>
    %912 = vector.extract_strided_slice %893 {offsets = [0, 96], sizes = [2, 32], strides = [1, 1]} : vector<2x128xf32> to vector<2x32xf32>
    %cst_312 = arith.constant 5.000000e-01 : f32
    %913 = vector.broadcast %cst_312 : f32 to vector<2x32xf32>
    %914 = arith.mulf %913, %912 : vector<2x32xf32>
    %915 = math.tanh %914 : vector<2x32xf32>
    %cst_313 = arith.constant 1.000000e+00 : f32
    %916 = vector.broadcast %cst_313 : f32 to vector<2x32xf32>
    %917 = arith.addf %915, %916 : vector<2x32xf32>
    %cst_314 = arith.constant 5.000000e-01 : f32
    %918 = vector.broadcast %cst_314 : f32 to vector<2x32xf32>
    %919 = arith.mulf %918, %917 : vector<2x32xf32>
    %920 = arith.mulf %909, %888 : vector<2x32xf32>
    %921 = arith.mulf %901, %911 : vector<2x32xf32>
    %922 = arith.addf %920, %921 : vector<2x32xf32>
    %923 = math.tanh %922 : vector<2x32xf32>
    %924 = arith.mulf %919, %923 : vector<2x32xf32>
    %925 = vector.extract_strided_slice %818 {offsets = [6, 0], sizes = [2, 128], strides = [1, 1]} : vector<16x128xf32> to vector<2x128xf32>
    %cst_315 = arith.constant dense<0.000000e+00> : vector<2x128xf32>
    %926 = tpu.matmul %924, %814, %cst_315 {dimension_numbers = #tpu.dot_dimension_numbers<[1], [0], [0], [1], [0, 0, 1, 1], [], []>} : vector<2x32xf32>, vector<32x128xf32>, vector<2x128xf32> -> vector<2x128xf32>
    %927 = arith.addf %925, %926 : vector<2x128xf32>
    %928 = vector.extract_strided_slice %927 {offsets = [0, 0], sizes = [2, 32], strides = [1, 1]} : vector<2x128xf32> to vector<2x32xf32>
    %cst_316 = arith.constant 5.000000e-01 : f32
    %929 = vector.broadcast %cst_316 : f32 to vector<2x32xf32>
    %930 = arith.mulf %929, %928 : vector<2x32xf32>
    %931 = math.tanh %930 : vector<2x32xf32>
    %cst_317 = arith.constant 1.000000e+00 : f32
    %932 = vector.broadcast %cst_317 : f32 to vector<2x32xf32>
    %933 = arith.addf %931, %932 : vector<2x32xf32>
    %cst_318 = arith.constant 5.000000e-01 : f32
    %934 = vector.broadcast %cst_318 : f32 to vector<2x32xf32>
    %935 = arith.mulf %934, %933 : vector<2x32xf32>
    %936 = vector.extract_strided_slice %927 {offsets = [0, 32], sizes = [2, 32], strides = [1, 1]} : vector<2x128xf32> to vector<2x32xf32>
    %cst_319 = arith.constant 5.000000e-01 : f32
    %937 = vector.broadcast %cst_319 : f32 to vector<2x32xf32>
    %938 = arith.mulf %937, %936 : vector<2x32xf32>
    %939 = math.tanh %938 : vector<2x32xf32>
    %cst_320 = arith.constant 1.000000e+00 : f32
    %940 = vector.broadcast %cst_320 : f32 to vector<2x32xf32>
    %941 = arith.addf %939, %940 : vector<2x32xf32>
    %cst_321 = arith.constant 5.000000e-01 : f32
    %942 = vector.broadcast %cst_321 : f32 to vector<2x32xf32>
    %943 = arith.mulf %942, %941 : vector<2x32xf32>
    %944 = vector.extract_strided_slice %927 {offsets = [0, 64], sizes = [2, 32], strides = [1, 1]} : vector<2x128xf32> to vector<2x32xf32>
    %945 = math.tanh %944 : vector<2x32xf32>
    %946 = vector.extract_strided_slice %927 {offsets = [0, 96], sizes = [2, 32], strides = [1, 1]} : vector<2x128xf32> to vector<2x32xf32>
    %cst_322 = arith.constant 5.000000e-01 : f32
    %947 = vector.broadcast %cst_322 : f32 to vector<2x32xf32>
    %948 = arith.mulf %947, %946 : vector<2x32xf32>
    %949 = math.tanh %948 : vector<2x32xf32>
    %cst_323 = arith.constant 1.000000e+00 : f32
    %950 = vector.broadcast %cst_323 : f32 to vector<2x32xf32>
    %951 = arith.addf %949, %950 : vector<2x32xf32>
    %cst_324 = arith.constant 5.000000e-01 : f32
    %952 = vector.broadcast %cst_324 : f32 to vector<2x32xf32>
    %953 = arith.mulf %952, %951 : vector<2x32xf32>
    %954 = arith.mulf %943, %922 : vector<2x32xf32>
    %955 = arith.mulf %935, %945 : vector<2x32xf32>
    %956 = arith.addf %954, %955 : vector<2x32xf32>
    %957 = math.tanh %956 : vector<2x32xf32>
    %958 = arith.mulf %953, %957 : vector<2x32xf32>
    %959 = vector.extract_strided_slice %818 {offsets = [8, 0], sizes = [2, 128], strides = [1, 1]} : vector<16x128xf32> to vector<2x128xf32>
    %cst_325 = arith.constant dense<0.000000e+00> : vector<2x128xf32>
    %960 = tpu.matmul %958, %814, %cst_325 {dimension_numbers = #tpu.dot_dimension_numbers<[1], [0], [0], [1], [0, 0, 1, 1], [], []>} : vector<2x32xf32>, vector<32x128xf32>, vector<2x128xf32> -> vector<2x128xf32>
    %961 = arith.addf %959, %960 : vector<2x128xf32>
    %962 = vector.extract_strided_slice %961 {offsets = [0, 0], sizes = [2, 32], strides = [1, 1]} : vector<2x128xf32> to vector<2x32xf32>
    %cst_326 = arith.constant 5.000000e-01 : f32
    %963 = vector.broadcast %cst_326 : f32 to vector<2x32xf32>
    %964 = arith.mulf %963, %962 : vector<2x32xf32>
    %965 = math.tanh %964 : vector<2x32xf32>
    %cst_327 = arith.constant 1.000000e+00 : f32
    %966 = vector.broadcast %cst_327 : f32 to vector<2x32xf32>
    %967 = arith.addf %965, %966 : vector<2x32xf32>
    %cst_328 = arith.constant 5.000000e-01 : f32
    %968 = vector.broadcast %cst_328 : f32 to vector<2x32xf32>
    %969 = arith.mulf %968, %967 : vector<2x32xf32>
    %970 = vector.extract_strided_slice %961 {offsets = [0, 32], sizes = [2, 32], strides = [1, 1]} : vector<2x128xf32> to vector<2x32xf32>
    %cst_329 = arith.constant 5.000000e-01 : f32
    %971 = vector.broadcast %cst_329 : f32 to vector<2x32xf32>
    %972 = arith.mulf %971, %970 : vector<2x32xf32>
    %973 = math.tanh %972 : vector<2x32xf32>
    %cst_330 = arith.constant 1.000000e+00 : f32
    %974 = vector.broadcast %cst_330 : f32 to vector<2x32xf32>
    %975 = arith.addf %973, %974 : vector<2x32xf32>
    %cst_331 = arith.constant 5.000000e-01 : f32
    %976 = vector.broadcast %cst_331 : f32 to vector<2x32xf32>
    %977 = arith.mulf %976, %975 : vector<2x32xf32>
    %978 = vector.extract_strided_slice %961 {offsets = [0, 64], sizes = [2, 32], strides = [1, 1]} : vector<2x128xf32> to vector<2x32xf32>
    %979 = math.tanh %978 : vector<2x32xf32>
    %980 = vector.extract_strided_slice %961 {offsets = [0, 96], sizes = [2, 32], strides = [1, 1]} : vector<2x128xf32> to vector<2x32xf32>
    %cst_332 = arith.constant 5.000000e-01 : f32
    %981 = vector.broadcast %cst_332 : f32 to vector<2x32xf32>
    %982 = arith.mulf %981, %980 : vector<2x32xf32>
    %983 = math.tanh %982 : vector<2x32xf32>
    %cst_333 = arith.constant 1.000000e+00 : f32
    %984 = vector.broadcast %cst_333 : f32 to vector<2x32xf32>
    %985 = arith.addf %983, %984 : vector<2x32xf32>
    %cst_334 = arith.constant 5.000000e-01 : f32
    %986 = vector.broadcast %cst_334 : f32 to vector<2x32xf32>
    %987 = arith.mulf %986, %985 : vector<2x32xf32>
    %988 = arith.mulf %977, %956 : vector<2x32xf32>
    %989 = arith.mulf %969, %979 : vector<2x32xf32>
    %990 = arith.addf %988, %989 : vector<2x32xf32>
    %991 = math.tanh %990 : vector<2x32xf32>
    %992 = arith.mulf %987, %991 : vector<2x32xf32>
    %993 = vector.extract_strided_slice %818 {offsets = [10, 0], sizes = [2, 128], strides = [1, 1]} : vector<16x128xf32> to vector<2x128xf32>
    %cst_335 = arith.constant dense<0.000000e+00> : vector<2x128xf32>
    %994 = tpu.matmul %992, %814, %cst_335 {dimension_numbers = #tpu.dot_dimension_numbers<[1], [0], [0], [1], [0, 0, 1, 1], [], []>} : vector<2x32xf32>, vector<32x128xf32>, vector<2x128xf32> -> vector<2x128xf32>
    %995 = arith.addf %993, %994 : vector<2x128xf32>
    %996 = vector.extract_strided_slice %995 {offsets = [0, 0], sizes = [2, 32], strides = [1, 1]} : vector<2x128xf32> to vector<2x32xf32>
    %cst_336 = arith.constant 5.000000e-01 : f32
    %997 = vector.broadcast %cst_336 : f32 to vector<2x32xf32>
    %998 = arith.mulf %997, %996 : vector<2x32xf32>
    %999 = math.tanh %998 : vector<2x32xf32>
    %cst_337 = arith.constant 1.000000e+00 : f32
    %1000 = vector.broadcast %cst_337 : f32 to vector<2x32xf32>
    %1001 = arith.addf %999, %1000 : vector<2x32xf32>
    %cst_338 = arith.constant 5.000000e-01 : f32
    %1002 = vector.broadcast %cst_338 : f32 to vector<2x32xf32>
    %1003 = arith.mulf %1002, %1001 : vector<2x32xf32>
    %1004 = vector.extract_strided_slice %995 {offsets = [0, 32], sizes = [2, 32], strides = [1, 1]} : vector<2x128xf32> to vector<2x32xf32>
    %cst_339 = arith.constant 5.000000e-01 : f32
    %1005 = vector.broadcast %cst_339 : f32 to vector<2x32xf32>
    %1006 = arith.mulf %1005, %1004 : vector<2x32xf32>
    %1007 = math.tanh %1006 : vector<2x32xf32>
    %cst_340 = arith.constant 1.000000e+00 : f32
    %1008 = vector.broadcast %cst_340 : f32 to vector<2x32xf32>
    %1009 = arith.addf %1007, %1008 : vector<2x32xf32>
    %cst_341 = arith.constant 5.000000e-01 : f32
    %1010 = vector.broadcast %cst_341 : f32 to vector<2x32xf32>
    %1011 = arith.mulf %1010, %1009 : vector<2x32xf32>
    %1012 = vector.extract_strided_slice %995 {offsets = [0, 64], sizes = [2, 32], strides = [1, 1]} : vector<2x128xf32> to vector<2x32xf32>
    %1013 = math.tanh %1012 : vector<2x32xf32>
    %1014 = vector.extract_strided_slice %995 {offsets = [0, 96], sizes = [2, 32], strides = [1, 1]} : vector<2x128xf32> to vector<2x32xf32>
    %cst_342 = arith.constant 5.000000e-01 : f32
    %1015 = vector.broadcast %cst_342 : f32 to vector<2x32xf32>
    %1016 = arith.mulf %1015, %1014 : vector<2x32xf32>
    %1017 = math.tanh %1016 : vector<2x32xf32>
    %cst_343 = arith.constant 1.000000e+00 : f32
    %1018 = vector.broadcast %cst_343 : f32 to vector<2x32xf32>
    %1019 = arith.addf %1017, %1018 : vector<2x32xf32>
    %cst_344 = arith.constant 5.000000e-01 : f32
    %1020 = vector.broadcast %cst_344 : f32 to vector<2x32xf32>
    %1021 = arith.mulf %1020, %1019 : vector<2x32xf32>
    %1022 = arith.mulf %1011, %990 : vector<2x32xf32>
    %1023 = arith.mulf %1003, %1013 : vector<2x32xf32>
    %1024 = arith.addf %1022, %1023 : vector<2x32xf32>
    %1025 = math.tanh %1024 : vector<2x32xf32>
    %1026 = arith.mulf %1021, %1025 : vector<2x32xf32>
    %1027 = vector.extract_strided_slice %818 {offsets = [12, 0], sizes = [2, 128], strides = [1, 1]} : vector<16x128xf32> to vector<2x128xf32>
    %cst_345 = arith.constant dense<0.000000e+00> : vector<2x128xf32>
    %1028 = tpu.matmul %1026, %814, %cst_345 {dimension_numbers = #tpu.dot_dimension_numbers<[1], [0], [0], [1], [0, 0, 1, 1], [], []>} : vector<2x32xf32>, vector<32x128xf32>, vector<2x128xf32> -> vector<2x128xf32>
    %1029 = arith.addf %1027, %1028 : vector<2x128xf32>
    %1030 = vector.extract_strided_slice %1029 {offsets = [0, 0], sizes = [2, 32], strides = [1, 1]} : vector<2x128xf32> to vector<2x32xf32>
    %cst_346 = arith.constant 5.000000e-01 : f32
    %1031 = vector.broadcast %cst_346 : f32 to vector<2x32xf32>
    %1032 = arith.mulf %1031, %1030 : vector<2x32xf32>
    %1033 = math.tanh %1032 : vector<2x32xf32>
    %cst_347 = arith.constant 1.000000e+00 : f32
    %1034 = vector.broadcast %cst_347 : f32 to vector<2x32xf32>
    %1035 = arith.addf %1033, %1034 : vector<2x32xf32>
    %cst_348 = arith.constant 5.000000e-01 : f32
    %1036 = vector.broadcast %cst_348 : f32 to vector<2x32xf32>
    %1037 = arith.mulf %1036, %1035 : vector<2x32xf32>
    %1038 = vector.extract_strided_slice %1029 {offsets = [0, 32], sizes = [2, 32], strides = [1, 1]} : vector<2x128xf32> to vector<2x32xf32>
    %cst_349 = arith.constant 5.000000e-01 : f32
    %1039 = vector.broadcast %cst_349 : f32 to vector<2x32xf32>
    %1040 = arith.mulf %1039, %1038 : vector<2x32xf32>
    %1041 = math.tanh %1040 : vector<2x32xf32>
    %cst_350 = arith.constant 1.000000e+00 : f32
    %1042 = vector.broadcast %cst_350 : f32 to vector<2x32xf32>
    %1043 = arith.addf %1041, %1042 : vector<2x32xf32>
    %cst_351 = arith.constant 5.000000e-01 : f32
    %1044 = vector.broadcast %cst_351 : f32 to vector<2x32xf32>
    %1045 = arith.mulf %1044, %1043 : vector<2x32xf32>
    %1046 = vector.extract_strided_slice %1029 {offsets = [0, 64], sizes = [2, 32], strides = [1, 1]} : vector<2x128xf32> to vector<2x32xf32>
    %1047 = math.tanh %1046 : vector<2x32xf32>
    %1048 = vector.extract_strided_slice %1029 {offsets = [0, 96], sizes = [2, 32], strides = [1, 1]} : vector<2x128xf32> to vector<2x32xf32>
    %cst_352 = arith.constant 5.000000e-01 : f32
    %1049 = vector.broadcast %cst_352 : f32 to vector<2x32xf32>
    %1050 = arith.mulf %1049, %1048 : vector<2x32xf32>
    %1051 = math.tanh %1050 : vector<2x32xf32>
    %cst_353 = arith.constant 1.000000e+00 : f32
    %1052 = vector.broadcast %cst_353 : f32 to vector<2x32xf32>
    %1053 = arith.addf %1051, %1052 : vector<2x32xf32>
    %cst_354 = arith.constant 5.000000e-01 : f32
    %1054 = vector.broadcast %cst_354 : f32 to vector<2x32xf32>
    %1055 = arith.mulf %1054, %1053 : vector<2x32xf32>
    %1056 = arith.mulf %1045, %1024 : vector<2x32xf32>
    %1057 = arith.mulf %1037, %1047 : vector<2x32xf32>
    %1058 = arith.addf %1056, %1057 : vector<2x32xf32>
    %1059 = math.tanh %1058 : vector<2x32xf32>
    %1060 = arith.mulf %1055, %1059 : vector<2x32xf32>
    %1061 = vector.extract_strided_slice %818 {offsets = [14, 0], sizes = [2, 128], strides = [1, 1]} : vector<16x128xf32> to vector<2x128xf32>
    %cst_355 = arith.constant dense<0.000000e+00> : vector<2x128xf32>
    %1062 = tpu.matmul %1060, %814, %cst_355 {dimension_numbers = #tpu.dot_dimension_numbers<[1], [0], [0], [1], [0, 0, 1, 1], [], []>} : vector<2x32xf32>, vector<32x128xf32>, vector<2x128xf32> -> vector<2x128xf32>
    %1063 = arith.addf %1061, %1062 : vector<2x128xf32>
    %1064 = vector.extract_strided_slice %1063 {offsets = [0, 0], sizes = [2, 32], strides = [1, 1]} : vector<2x128xf32> to vector<2x32xf32>
    %cst_356 = arith.constant 5.000000e-01 : f32
    %1065 = vector.broadcast %cst_356 : f32 to vector<2x32xf32>
    %1066 = arith.mulf %1065, %1064 : vector<2x32xf32>
    %1067 = math.tanh %1066 : vector<2x32xf32>
    %cst_357 = arith.constant 1.000000e+00 : f32
    %1068 = vector.broadcast %cst_357 : f32 to vector<2x32xf32>
    %1069 = arith.addf %1067, %1068 : vector<2x32xf32>
    %cst_358 = arith.constant 5.000000e-01 : f32
    %1070 = vector.broadcast %cst_358 : f32 to vector<2x32xf32>
    %1071 = arith.mulf %1070, %1069 : vector<2x32xf32>
    %1072 = vector.extract_strided_slice %1063 {offsets = [0, 32], sizes = [2, 32], strides = [1, 1]} : vector<2x128xf32> to vector<2x32xf32>
    %cst_359 = arith.constant 5.000000e-01 : f32
    %1073 = vector.broadcast %cst_359 : f32 to vector<2x32xf32>
    %1074 = arith.mulf %1073, %1072 : vector<2x32xf32>
    %1075 = math.tanh %1074 : vector<2x32xf32>
    %cst_360 = arith.constant 1.000000e+00 : f32
    %1076 = vector.broadcast %cst_360 : f32 to vector<2x32xf32>
    %1077 = arith.addf %1075, %1076 : vector<2x32xf32>
    %cst_361 = arith.constant 5.000000e-01 : f32
    %1078 = vector.broadcast %cst_361 : f32 to vector<2x32xf32>
    %1079 = arith.mulf %1078, %1077 : vector<2x32xf32>
    %1080 = vector.extract_strided_slice %1063 {offsets = [0, 64], sizes = [2, 32], strides = [1, 1]} : vector<2x128xf32> to vector<2x32xf32>
    %1081 = math.tanh %1080 : vector<2x32xf32>
    %1082 = vector.extract_strided_slice %1063 {offsets = [0, 96], sizes = [2, 32], strides = [1, 1]} : vector<2x128xf32> to vector<2x32xf32>
    %cst_362 = arith.constant 5.000000e-01 : f32
    %1083 = vector.broadcast %cst_362 : f32 to vector<2x32xf32>
    %1084 = arith.mulf %1083, %1082 : vector<2x32xf32>
    %1085 = math.tanh %1084 : vector<2x32xf32>
    %cst_363 = arith.constant 1.000000e+00 : f32
    %1086 = vector.broadcast %cst_363 : f32 to vector<2x32xf32>
    %1087 = arith.addf %1085, %1086 : vector<2x32xf32>
    %cst_364 = arith.constant 5.000000e-01 : f32
    %1088 = vector.broadcast %cst_364 : f32 to vector<2x32xf32>
    %1089 = arith.mulf %1088, %1087 : vector<2x32xf32>
    %1090 = arith.mulf %1079, %1058 : vector<2x32xf32>
    %1091 = arith.mulf %1071, %1081 : vector<2x32xf32>
    %1092 = arith.addf %1090, %1091 : vector<2x32xf32>
    %1093 = math.tanh %1092 : vector<2x32xf32>
    %1094 = arith.mulf %1089, %1093 : vector<2x32xf32>
    %1095 = tpu.concatenate %856, %890, %924, %958, %992, %1026, %1060, %1094 in 0 : vector<2x32xf32>, vector<2x32xf32>, vector<2x32xf32>, vector<2x32xf32>, vector<2x32xf32>, vector<2x32xf32>, vector<2x32xf32>, vector<2x32xf32> -> vector<16x32xf32>
    %c1_365 = arith.constant 1 : index
    %c0_366 = arith.constant 0 : index
    %c0_367 = arith.constant 0 : index
    %1096 = vector.load %arg21[%c1_365, %c0_366, %c0_367] : memref<2x2x32xf32, #tpu.memory_space<vmem>>, vector<1x2x32xf32>
    %1097 = vector.shape_cast %1096 : vector<1x2x32xf32> to vector<2x32xf32>
    %1098 = vector.shape_cast %1094 : vector<2x32xf32> to vector<1x2x32xf32>
    tpu.vector_store %arg21[%c1_365, %c0_366, %c0_367], %1098 {strides = array<i32>} : memref<2x2x32xf32, #tpu.memory_space<vmem>>, vector<1x2x32xf32>,
    %c1_368 = arith.constant 1 : index
    %c0_369 = arith.constant 0 : index
    %c0_370 = arith.constant 0 : index
    %1099 = vector.load %arg22[%c1_368, %c0_369, %c0_370] : memref<2x2x32xf32, #tpu.memory_space<vmem>>, vector<1x2x32xf32>
    %1100 = vector.shape_cast %1099 : vector<1x2x32xf32> to vector<2x32xf32>
    %1101 = vector.shape_cast %1092 : vector<2x32xf32> to vector<1x2x32xf32>
    tpu.vector_store %arg22[%c1_368, %c0_369, %c0_370], %1101 {strides = array<i32>} : memref<2x2x32xf32, #tpu.memory_space<vmem>>, vector<1x2x32xf32>,
    %c0_371 = arith.constant 0 : index
    %c0_372 = arith.constant 0 : index
    %1102 = vector.load %arg18[%c0_371, %c0_372] : memref<32x64xf32, #tpu.memory_space<vmem>>, vector<32x64xf32>
    %cst_373 = arith.constant dense<0.000000e+00> : vector<16x64xf32>
    %1103 = tpu.matmul %1095, %1102, %cst_373 {dimension_numbers = #tpu.dot_dimension_numbers<[1], [0], [0], [1], [0, 0, 1, 1], [], []>} : vector<16x32xf32>, vector<32x64xf32>, vector<16x64xf32> -> vector<16x64xf32>
    %c0_374 = arith.constant 0 : index
    %c0_375 = arith.constant 0 : index
    %1104 = vector.load %arg19[%c0_374, %c0_375] : memref<1x64xf32, #tpu.memory_space<vmem>>, vector<1x64xf32>
    %1105 = vector.broadcast %1104 : vector<1x64xf32> to vector<16x64xf32>
    %1106 = arith.addf %1103, %1105 : vector<16x64xf32>
    %c0_376 = arith.constant 0 : index
    %c0_377 = arith.constant 0 : index
    %1107 = vector.load %arg20[%c0_376, %c0_377] : memref<16x64xf32, #tpu.memory_space<vmem>>, vector<16x64xf32>
    tpu.vector_store %arg20[%c0_376, %c0_377], %1106 {strides = array<i32>} : memref<16x64xf32, #tpu.memory_space<vmem>>, vector<16x64xf32>,
    return
  }
}

</mosaic_0001>

<llo_original>
// kernel: rnn_model_forward.1
$region0: #{rnn_model_forward.1}
  #allocation0 [shape = 'u32[]', space=smem, size = 0x4, offset = 0x4, fixed_abs, tag = 'smem constant byte address 0x4 - core index']
  #allocation1 [shape = 'u32[72,128]{1,0:T(1,128)}', space=vmem, size = 0x9000, scoped, tag = 'internal scratch']
  #allocation2 [shape = 'f32[96,128]{1,0:T(8,128)}', space=vmem, size = 0xc000, scoped, tag = 'scratch operand']
  #allocation3 [shape = 'f32[96,128]{1,0:T(8,128)}', space=vmem, size = 0xc000, scoped, tag = 'scratch operand']
  %s0 = inlined_call_operand.vmem [shape: f32[96,32], index: 0, kind: input, shape index: {}]
  %s1 = inlined_call_operand.vmem [shape: s32[16,1], index: 1, kind: input, shape index: {}]
  %s2 = inlined_call_operand.vmem [shape: f32[32,128], index: 2, kind: input, shape index: {}]
  %s3 = inlined_call_operand.vmem [shape: f32[32,128], index: 3, kind: input, shape index: {}]
  %s4 = inlined_call_operand.vmem [shape: f32[1,128], index: 4, kind: input, shape index: {}]
  %s5 = inlined_call_operand.vmem [shape: f32[32,128], index: 5, kind: input, shape index: {}]
  %s6 = inlined_call_operand.vmem [shape: f32[32,128], index: 6, kind: input, shape index: {}]
  %s7 = inlined_call_operand.vmem [shape: f32[1,128], index: 7, kind: input, shape index: {}]
  %s8 = inlined_call_operand.vmem [shape: f32[64,32], index: 8, kind: input, shape index: {}]
  %s9 = inlined_call_operand.vmem [shape: f32[1,32], index: 9, kind: input, shape index: {}]
  %s10 = inlined_call_operand.vmem [shape: f32[2,2,32], index: 10, kind: input, shape index: {}]
  %s11 = inlined_call_operand.vmem [shape: f32[2,2,32], index: 11, kind: input, shape index: {}]
  %s12 = inlined_call_operand.vmem [shape: f32[32,128], index: 12, kind: input, shape index: {}]
  %s13 = inlined_call_operand.vmem [shape: f32[32,128], index: 13, kind: input, shape index: {}]
  %s14 = inlined_call_operand.vmem [shape: f32[1,128], index: 14, kind: input, shape index: {}]
  %s15 = inlined_call_operand.vmem [shape: f32[32,128], index: 15, kind: input, shape index: {}]
  %s16 = inlined_call_operand.vmem [shape: f32[32,128], index: 16, kind: input, shape index: {}]
  %s17 = inlined_call_operand.vmem [shape: f32[1,128], index: 17, kind: input, shape index: {}]
  %s18 = inlined_call_operand.vmem [shape: f32[32,64], index: 18, kind: input, shape index: {}]
  %s19 = inlined_call_operand.vmem [shape: f32[1,64], index: 19, kind: input, shape index: {}]
  %s20 = inlined_call_operand.hbm [shape: f32[16,64], index: 20, kind: output, shape index: {0}]
  %s21 = inlined_call_operand.hbm [shape: f32[2,2,32], index: 21, kind: output, shape index: {1}]
  %s22 = inlined_call_operand.hbm [shape: f32[2,2,32], index: 22, kind: output, shape index: {2}]
  %23 = xla_tuple %s20, %s21, %s22
  %s24 = sld [smem:[#allocation0]]
  $region106: #{rnn_model_forward.1} parent=0
    _
  %s26 = ssub.s32 1, %s24
  %s27 = scalar_select 0, %s26, %s24
  $region1: #{rnn_model_forward.1} parent=0
    #allocation4 [shape = 'u8[8192]{0}', space=vmem, size = 0x2000, scoped, tag = 'output window, operand 0, single buffered']
    #allocation5 [shape = 's32[1]{0}', space=sflag, size = 0x4, scoped, tag = 'scoped memory for rnn_model_forward.1']
    #allocation6 [shape = 'u8[2048]{0}', space=vmem, size = 0x800, scoped, tag = 'output window, operand 1, single buffered']
    #allocation7 [shape = 's32[1]{0}', space=sflag, size = 0x4, scoped, tag = 'scoped memory for rnn_model_forward.1']
    #allocation8 [shape = 'u8[2048]{0}', space=vmem, size = 0x800, scoped, tag = 'output window, operand 2, single buffered']
    %28 = vsyncpa [#allocation5], 0
    %29 = vsyncpa [#allocation7], 0
    // Predicated region
    $region2: #{rnn_model_forward.1} parent=1 // pred_check
      _
    $region3: #{rnn_model_forward.1} parent=1 // pred_check_branch
      %31 = sbr.rel (0) target = $region5
    $region4: #{rnn_model_forward.1} parent=1 // pred_region
      _
    $region5: #{rnn_model_forward.1} parent=1 // pred_fallthru
      _
    // Predicated region
    $region6: #{rnn_model_forward.1} parent=1 // pred_check
      _
    $region7: #{rnn_model_forward.1} parent=1 // pred_check_branch
      %33 = sbr.rel (0) target = $region9
    $region8: #{rnn_model_forward.1} parent=1 // pred_region
      _
    $region9: #{rnn_model_forward.1} parent=1 // pred_fallthru
      _
    // Predicated region
    $region10: #{rnn_model_forward.1} parent=1 // pred_check
      _
    $region11: #{rnn_model_forward.1} parent=1 // pred_check_branch
      %35 = sbr.rel (0) target = $region13
    $region12: #{rnn_model_forward.1} parent=1 // pred_region
      _
    $region13: #{rnn_model_forward.1} parent=1 // pred_fallthru
      _
    // Predicated region
    $region14: #{rnn_model_forward.1} parent=1 // pred_check
      _
    $region15: #{rnn_model_forward.1} parent=1 // pred_check_branch
      %37 = sbr.rel (0) target = $region17
    $region16: #{rnn_model_forward.1} parent=1 // pred_region
      _
    $region17: #{rnn_model_forward.1} parent=1 // pred_fallthru
      _
    // Predicated region
    $region18: #{rnn_model_forward.1} parent=1 // pred_check
      _
    $region19: #{rnn_model_forward.1} parent=1 // pred_check_branch
      %39 = sbr.rel (0) target = $region21
    $region20: #{rnn_model_forward.1} parent=1 // pred_region
      _
    $region21: #{rnn_model_forward.1} parent=1 // pred_fallthru
      _
    // Predicated region
    $region22: #{rnn_model_forward.1} parent=1 // pred_check
      _
    $region23: #{rnn_model_forward.1} parent=1 // pred_check_branch
      %41 = sbr.rel (0) target = $region25
    $region24: #{rnn_model_forward.1} parent=1 // pred_region
      _
    $region25: #{rnn_model_forward.1} parent=1 // pred_fallthru
      _
    // Predicated region
    $region26: #{rnn_model_forward.1} parent=1 // pred_check
      _
    $region27: #{rnn_model_forward.1} parent=1 // pred_check_branch
      %43 = sbr.rel (0) target = $region29
    $region28: #{rnn_model_forward.1} parent=1 // pred_region
      _
    $region29: #{rnn_model_forward.1} parent=1 // pred_fallthru
      _
    // Predicated region
    $region30: #{rnn_model_forward.1} parent=1 // pred_check
      _
    $region31: #{rnn_model_forward.1} parent=1 // pred_check_branch
      %45 = sbr.rel (0) target = $region33
    $region32: #{rnn_model_forward.1} parent=1 // pred_region
      _
    $region33: #{rnn_model_forward.1} parent=1 // pred_fallthru
      _
    // Predicated region
    $region34: #{rnn_model_forward.1} parent=1 // pred_check
      _
    $region35: #{rnn_model_forward.1} parent=1 // pred_check_branch
      %47 = sbr.rel (0) target = $region37
    $region36: #{rnn_model_forward.1} parent=1 // pred_region
      _
    $region37: #{rnn_model_forward.1} parent=1 // pred_fallthru
      _
    // Predicated region
    $region38: #{rnn_model_forward.1} parent=1 // pred_check
      _
    $region39: #{rnn_model_forward.1} parent=1 // pred_check_branch
      %49 = sbr.rel (0) target = $region41
    $region40: #{rnn_model_forward.1} parent=1 // pred_region
      _
    $region41: #{rnn_model_forward.1} parent=1 // pred_fallthru
      _
    // Predicated region
    $region42: #{rnn_model_forward.1} parent=1 // pred_check
      _
    $region43: #{rnn_model_forward.1} parent=1 // pred_check_branch
      %51 = sbr.rel (0) target = $region45
    $region44: #{rnn_model_forward.1} parent=1 // pred_region
      _
    $region45: #{rnn_model_forward.1} parent=1 // pred_fallthru
      _
    // Predicated region
    $region46: #{rnn_model_forward.1} parent=1 // pred_check
      _
    $region47: #{rnn_model_forward.1} parent=1 // pred_check_branch
      %53 = sbr.rel (0) target = $region49
    $region48: #{rnn_model_forward.1} parent=1 // pred_region
      _
    $region49: #{rnn_model_forward.1} parent=1 // pred_fallthru
      _
    // Predicated region
    $region50: #{rnn_model_forward.1} parent=1 // pred_check
      _
    $region51: #{rnn_model_forward.1} parent=1 // pred_check_branch
      %55 = sbr.rel (0) target = $region53
    $region52: #{rnn_model_forward.1} parent=1 // pred_region
      _
    $region53: #{rnn_model_forward.1} parent=1 // pred_fallthru
      _
    // Predicated region
    $region54: #{rnn_model_forward.1} parent=1 // pred_check
      _
    $region55: #{rnn_model_forward.1} parent=1 // pred_check_branch
      %57 = sbr.rel (0) target = $region57
    $region56: #{rnn_model_forward.1} parent=1 // pred_region
      _
    $region57: #{rnn_model_forward.1} parent=1 // pred_fallthru
      _
    // Predicated region
    $region58: #{rnn_model_forward.1} parent=1 // pred_check
      _
    $region59: #{rnn_model_forward.1} parent=1 // pred_check_branch
      %59 = sbr.rel (0) target = $region61
    $region60: #{rnn_model_forward.1} parent=1 // pred_region
      _
    $region61: #{rnn_model_forward.1} parent=1 // pred_fallthru
      _
    // Predicated region
    $region62: #{rnn_model_forward.1} parent=1 // pred_check
      _
    $region63: #{rnn_model_forward.1} parent=1 // pred_check_branch
      %61 = sbr.rel (0) target = $region65
    $region64: #{rnn_model_forward.1} parent=1 // pred_region
      _
    $region65: #{rnn_model_forward.1} parent=1 // pred_fallthru
      _
    // Predicated region
    $region66: #{rnn_model_forward.1} parent=1 // pred_check
      _
    $region67: #{rnn_model_forward.1} parent=1 // pred_check_branch
      %63 = sbr.rel (0) target = $region69
    $region68: #{rnn_model_forward.1} parent=1 // pred_region
      _
    $region69: #{rnn_model_forward.1} parent=1 // pred_fallthru
      _
    // Predicated region
    $region70: #{rnn_model_forward.1} parent=1 // pred_check
      _
    $region71: #{rnn_model_forward.1} parent=1 // pred_check_branch
      %65 = sbr.rel (0) target = $region73
    $region72: #{rnn_model_forward.1} parent=1 // pred_region
      _
    $region73: #{rnn_model_forward.1} parent=1 // pred_fallthru
      _
    // Predicated region
    $region74: #{rnn_model_forward.1} parent=1 // pred_check
      _
    $region75: #{rnn_model_forward.1} parent=1 // pred_check_branch
      %67 = sbr.rel (0) target = $region77
    $region76: #{rnn_model_forward.1} parent=1 // pred_region
      _
    $region77: #{rnn_model_forward.1} parent=1 // pred_fallthru
      _
    // Predicated region
    $region78: #{rnn_model_forward.1} parent=1 // pred_check
      _
    $region79: #{rnn_model_forward.1} parent=1 // pred_check_branch
      %69 = sbr.rel (0) target = $region81
    $region80: #{rnn_model_forward.1} parent=1 // pred_region
      _
    $region81: #{rnn_model_forward.1} parent=1 // pred_fallthru
      _
    %v70 = vld [vmem:[%s0] sm:$0xff]
    %v71 = vld [vmem:[%s0 + $0x8] sm:$0xff]
    %v72 = vld [vmem:[%s0 + $0x10] sm:$0xff]
    %v73 = vld [vmem:[%s0 + $0x18] sm:$0xff]
    %v74 = vld [vmem:[%s0 + $0x20] sm:$0xff]
    %v75 = vld [vmem:[%s0 + $0x28] sm:$0xff]
    %v76 = vld [vmem:[%s0 + $0x30] sm:$0xff]
    %v77 = vld [vmem:[%s0 + $0x38] sm:$0xff]
    %v78 = vld [vmem:[%s0 + $0x40] sm:$0xff]
    %v79 = vld [vmem:[%s0 + $0x48] sm:$0xff]
    %v80 = vld [vmem:[%s0 + $0x50] sm:$0xff]
    %v81 = vld [vmem:[%s0 + $0x58] sm:$0xff]
    %v82 = vld [vmem:[%s1] sm:$0xff]
    %v83 = vld [vmem:[%s1 + $0x8] sm:$0xff]
    %v84 = vld [vmem:[%s2] sm:$0xff]
    %v85 = vld [vmem:[%s2 + $0x8] sm:$0xff]
    %v86 = vld [vmem:[%s2 + $0x10] sm:$0xff]
    %v87 = vld [vmem:[%s2 + $0x18] sm:$0xff]
    %v88 = vld [vmem:[%s4] sm:$0x1]
    %v90 = vperm.slane %v88, 0
    %vm92 = vcmask 261120
    %v94 = vsel %vm92, %v70, 0
    %v97 = vsel %vm92, %v71, 0
    %v100 = vsel %vm92, %v72, 0
    %v103 = vsel %vm92, %v73, 0
    %v106 = vsel %vm92, %v74, 0
    %v109 = vsel %vm92, %v75, 0
    %v112 = vsel %vm92, %v76, 0
    %v115 = vsel %vm92, %v77, 0
    %v118 = vsel %vm92, %v78, 0
    %v121 = vsel %vm92, %v79, 0
    %v124 = vsel %vm92, %v80, 0
    %v127 = vsel %vm92, %v81, 0
    %129 = vmatpush.msra.mxu0 0.0
    %130 = vmatpush.msra.mxu0 0.0
    %131 = vmatpush.msra.mxu0 0.0
    %132 = vmatpush.msra.mxu0 0.0
    %133 = vmatpush.msra.mxu0 0.0
    %134 = vmatpush.msra.mxu0 0.0
    %135 = vmatpush.msra.mxu0 0.0
    %136 = vmatpush.msra.mxu0 0.0
    %137 = vmatpush.msra.mxu0 0.0
    %138 = vmatpush.msra.mxu0 0.0
    %139 = vmatpush.msra.mxu0 0.0
    %140 = vmatpush.msra.mxu0 0.0
    %141 = vmatpush.msra.mxu0 %v87
    %142 = vmatpush.msra.mxu0 %v86
    %143 = vmatpush.msra.mxu0 %v85
    %144 = vmatpush.msra.mxu0 %v84
    %145 = vmatmul.f32.gmra.mxu0 %v94
    %v146 = vpop.f32.mrf.mxu0
    %v147 = vadd.f32 %v90, %v146
    %148 = vmatmul.f32.gmra.mxu0 %v97
    %v149 = vpop.f32.mrf.mxu0
    %v150 = vadd.f32 %v90, %v149
    %151 = vmatmul.f32.gmra.mxu0 %v100
    %v152 = vpop.f32.mrf.mxu0
    %v153 = vadd.f32 %v90, %v152
    %154 = vmatmul.f32.gmra.mxu0 %v103
    %v155 = vpop.f32.mrf.mxu0
    %v156 = vadd.f32 %v90, %v155
    %157 = vmatmul.f32.gmra.mxu0 %v106
    %v158 = vpop.f32.mrf.mxu0
    %v159 = vadd.f32 %v90, %v158
    %160 = vmatmul.f32.gmra.mxu0 %v109
    %v161 = vpop.f32.mrf.mxu0
    %v162 = vadd.f32 %v90, %v161
    %163 = vmatmul.f32.gmra.mxu0 %v112
    %v164 = vpop.f32.mrf.mxu0
    %v165 = vadd.f32 %v90, %v164
    %166 = vmatmul.f32.gmra.mxu0 %v115
    %v167 = vpop.f32.mrf.mxu0
    %v168 = vadd.f32 %v90, %v167
    %169 = vmatmul.f32.gmra.mxu0 %v118
    %v170 = vpop.f32.mrf.mxu0
    %v171 = vadd.f32 %v90, %v170
    %172 = vmatmul.f32.gmra.mxu0 %v121
    %v173 = vpop.f32.mrf.mxu0
    %v174 = vadd.f32 %v90, %v173
    %175 = vmatmul.f32.gmra.mxu0 %v124
    %v176 = vpop.f32.mrf.mxu0
    %v177 = vadd.f32 %v90, %v176
    %178 = vmatmul.f32.gmra.mxu0 %v127
    %v179 = vpop.f32.mrf.mxu0
    %v180 = vadd.f32 %v90, %v179
    %181 = vdwg.mxu0
    %182 = vst [vmem:[#allocation2] sm:$0xff] %v147
    %183 = vst [vmem:[#allocation2 + $0x8] sm:$0xff] %v150
    %184 = vst [vmem:[#allocation2 + $0x10] sm:$0xff] %v153
    %185 = vst [vmem:[#allocation2 + $0x18] sm:$0xff] %v156
    %186 = vst [vmem:[#allocation2 + $0x20] sm:$0xff] %v159
    %187 = vst [vmem:[#allocation2 + $0x28] sm:$0xff] %v162
    %188 = vst [vmem:[#allocation2 + $0x30] sm:$0xff] %v165
    %189 = vst [vmem:[#allocation2 + $0x38] sm:$0xff] %v168
    %190 = vst [vmem:[#allocation2 + $0x40] sm:$0xff] %v171
    %191 = vst [vmem:[#allocation2 + $0x48] sm:$0xff] %v174
    %192 = vst [vmem:[#allocation2 + $0x50] sm:$0xff] %v177
    %193 = vst [vmem:[#allocation2 + $0x58] sm:$0xff] %v180
    %v194 = vld [vmem:[%s5] sm:$0xff]
    %v195 = vld [vmem:[%s5 + $0x8] sm:$0xff]
    %v196 = vld [vmem:[%s5 + $0x10] sm:$0xff]
    %v197 = vld [vmem:[%s5 + $0x18] sm:$0xff]
    %v198 = vld [vmem:[%s7] sm:$0x1]
    %v200 = vperm.slane %v198, 0
    %202 = vmatpush.msra.mxu0 0.0
    %203 = vmatpush.msra.mxu0 0.0
    %204 = vmatpush.msra.mxu0 0.0
    %205 = vmatpush.msra.mxu0 0.0
    %206 = vmatpush.msra.mxu0 0.0
    %207 = vmatpush.msra.mxu0 0.0
    %208 = vmatpush.msra.mxu0 0.0
    %209 = vmatpush.msra.mxu0 0.0
    %210 = vmatpush.msra.mxu0 0.0
    %211 = vmatpush.msra.mxu0 0.0
    %212 = vmatpush.msra.mxu0 0.0
    %213 = vmatpush.msra.mxu0 0.0
    %214 = vmatpush.msra.mxu0 %v197
    %215 = vmatpush.msra.mxu0 %v196
    %216 = vmatpush.msra.mxu0 %v195
    %217 = vmatpush.msra.mxu0 %v194
    %218 = vmatmul.f32.gmra.mxu0 %v94
    %v219 = vpop.f32.mrf.mxu0
    %v220 = vadd.f32 %v200, %v219
    %221 = vmatmul.f32.gmra.mxu0 %v97
    %v222 = vpop.f32.mrf.mxu0
    %v223 = vadd.f32 %v200, %v222
    %224 = vmatmul.f32.gmra.mxu0 %v100
    %v225 = vpop.f32.mrf.mxu0
    %v226 = vadd.f32 %v200, %v225
    %227 = vmatmul.f32.gmra.mxu0 %v103
    %v228 = vpop.f32.mrf.mxu0
    %v229 = vadd.f32 %v200, %v228
    %230 = vmatmul.f32.gmra.mxu0 %v106
    %v231 = vpop.f32.mrf.mxu0
    %v232 = vadd.f32 %v200, %v231
    %233 = vmatmul.f32.gmra.mxu0 %v109
    %v234 = vpop.f32.mrf.mxu0
    %v235 = vadd.f32 %v200, %v234
    %236 = vmatmul.f32.gmra.mxu0 %v112
    %v237 = vpop.f32.mrf.mxu0
    %v238 = vadd.f32 %v200, %v237
    %239 = vmatmul.f32.gmra.mxu0 %v115
    %v240 = vpop.f32.mrf.mxu0
    %v241 = vadd.f32 %v200, %v240
    %242 = vmatmul.f32.gmra.mxu0 %v118
    %v243 = vpop.f32.mrf.mxu0
    %v244 = vadd.f32 %v200, %v243
    %245 = vmatmul.f32.gmra.mxu0 %v121
    %v246 = vpop.f32.mrf.mxu0
    %v247 = vadd.f32 %v200, %v246
    %248 = vmatmul.f32.gmra.mxu0 %v124
    %v249 = vpop.f32.mrf.mxu0
    %v250 = vadd.f32 %v200, %v249
    %251 = vmatmul.f32.gmra.mxu0 %v127
    %v252 = vpop.f32.mrf.mxu0
    %v253 = vadd.f32 %v200, %v252
    %254 = vdwg.mxu0
    %255 = vst [vmem:[#allocation3] sm:$0xff] %v220
    %256 = vst [vmem:[#allocation3 + $0x8] sm:$0xff] %v223
    %257 = vst [vmem:[#allocation3 + $0x10] sm:$0xff] %v226
    %258 = vst [vmem:[#allocation3 + $0x18] sm:$0xff] %v229
    %259 = vst [vmem:[#allocation3 + $0x20] sm:$0xff] %v232
    %260 = vst [vmem:[#allocation3 + $0x28] sm:$0xff] %v235
    %261 = vst [vmem:[#allocation3 + $0x30] sm:$0xff] %v238
    %262 = vst [vmem:[#allocation3 + $0x38] sm:$0xff] %v241
    %263 = vst [vmem:[#allocation3 + $0x40] sm:$0xff] %v244
    %264 = vst [vmem:[#allocation3 + $0x48] sm:$0xff] %v247
    %265 = vst [vmem:[#allocation3 + $0x50] sm:$0xff] %v250
    %266 = vst [vmem:[#allocation3 + $0x58] sm:$0xff] %v253
    %v267 = vld [vmem:[%s3] sm:$0xff]
    %v268 = vld [vmem:[%s3 + $0x8] sm:$0xff]
    %v269 = vld [vmem:[%s3 + $0x10] sm:$0xff]
    %v270 = vld [vmem:[%s3 + $0x18] sm:$0xff]
    %v271 = vld [vmem:[%s6] sm:$0xff]
    %v272 = vld [vmem:[%s6 + $0x8] sm:$0xff]
    %v273 = vld [vmem:[%s6 + $0x10] sm:$0xff]
    %v274 = vld [vmem:[%s6 + $0x18] sm:$0xff]
    %v275 = vld [vmem:[#allocation2] sm:$0xff]
    %v276 = vld [vmem:[#allocation2 + $0x8] sm:$0xff]
    %v278 = vsel %vm92, 0.0, 0
    %280 = vmatpush.msra.mxu0 0.0
    %281 = vmatpush.msra.mxu0 0.0
    %282 = vmatpush.msra.mxu0 0.0
    %283 = vmatpush.msra.mxu0 0.0
    %284 = vmatpush.msra.mxu0 0.0
    %285 = vmatpush.msra.mxu0 0.0
    %286 = vmatpush.msra.mxu0 0.0
    %287 = vmatpush.msra.mxu0 0.0
    %288 = vmatpush.msra.mxu0 0.0
    %289 = vmatpush.msra.mxu0 0.0
    %290 = vmatpush.msra.mxu0 0.0
    %291 = vmatpush.msra.mxu0 0.0
    %292 = vmatpush.msra.mxu0 %v270
    %293 = vmatpush.msra.mxu0 %v269
    %294 = vmatpush.msra.mxu0 %v268
    %295 = vmatpush.msra.mxu0 %v267
    %296 = vmatmul.f32.gmra.mxu0 %v278
    %v297 = vpop.f32.mrf.mxu0
    %v298 = vadd.f32 0.0, %v297
    %299 = vmatmul.f32.gmra.mxu0 %v278
    %v300 = vpop.f32.mrf.mxu0
    %v301 = vadd.f32 0.0, %v300
    %302 = vdwg.mxu0
    %v303 = vadd.f32 %v275, %v298
    %v304 = vadd.f32 %v276, %v301
    %v305 = vmul.f32 %v303, 0.5
    %v306 = vmul.f32 %v304, 0.5
    %v307 = vtanh.pop %v305
    %v308 = vtanh.pop %v306
    %v309 = vadd.f32 %v307, 1.0
    %v310 = vadd.f32 %v308, 1.0
    %v311 = vmul.f32 %v309, 0.5
    %v312 = vmul.f32 %v310, 0.5
    %v313 = vtanh.pop %v303
    %v314 = vtanh.pop %v304
    %v315 = vmul.f32 %v311, 0.0
    %v316 = vmul.f32 %v312, 0.0
    %319 = vrot.lane.b32.xlu0 %v313, 64
    %v320 = vpop.permute.xlu0 %319
    %321 = vrot.lane.b32.xlu0 %v314, 64
    %v322 = vpop.permute.xlu0 %321
    %v325 = vmul.f32 %v311, %v320
    %v326 = vmul.f32 %v312, %v322
    %329 = vrot.lane.b32.xlu0 %v325, 32
    %v330 = vpop.permute.xlu0 %329
    %331 = vrot.lane.b32.xlu0 %v326, 32
    %v332 = vpop.permute.xlu0 %331
    %v335 = vadd.f32 %v315, %v330
    %v336 = vadd.f32 %v316, %v332
    %v337 = vtanh.pop %v335
    %v338 = vtanh.pop %v336
    %341 = vrot.lane.b32.xlu0 %v337, 64
    %v342 = vpop.permute.xlu0 %341
    %343 = vrot.lane.b32.xlu0 %v338, 64
    %v344 = vpop.permute.xlu0 %343
    %v347 = vmul.f32 %v311, %v342
    %v348 = vmul.f32 %v312, %v344
    %vm349 = vcmp.gt.s32.totalorder %v82, 0
    %vm350 = vcmp.gt.s32.totalorder %v83, 0
    %v351 = vsel %vm349, 1, 0
    %v352 = vsel %vm350, 1, 0
    %353 = vset.pattern.permute.xlu0 0
    %354 = vperm.xlu0 %353, %v351
    %v355 = vpop.permute.xlu0 %354
    %356 = vset.pattern.permute.xlu0 0
    %357 = vperm.xlu0 %356, %v352
    %v358 = vpop.permute.xlu0 %357
    %vm359 = vcmp.eq.s32.totalorder %v355, 1
    %vm360 = vcmp.eq.s32.totalorder %v358, 1
    %v361 = vsel %vm359, %v347, 0.0
    %v362 = vsel %vm360, %v348, 0.0
    %v363 = vsel %vm359, %v335, 0.0
    %v364 = vsel %vm360, %v336, 0.0
    %v365 = vld [vmem:[#allocation3 + $0x50] sm:$0xff]
    %v366 = vld [vmem:[#allocation3 + $0x58] sm:$0xff]
    %367 = vmatpush.msra.mxu0 0.0
    %368 = vmatpush.msra.mxu0 0.0
    %369 = vmatpush.msra.mxu0 0.0
    %370 = vmatpush.msra.mxu0 0.0
    %371 = vmatpush.msra.mxu0 0.0
    %372 = vmatpush.msra.mxu0 0.0
    %373 = vmatpush.msra.mxu0 0.0
    %374 = vmatpush.msra.mxu0 0.0
    %375 = vmatpush.msra.mxu0 0.0
    %376 = vmatpush.msra.mxu0 0.0
    %377 = vmatpush.msra.mxu0 0.0
    %378 = vmatpush.msra.mxu0 0.0
    %379 = vmatpush.msra.mxu0 %v274
    %380 = vmatpush.msra.mxu0 %v273
    %381 = vmatpush.msra.mxu0 %v272
    %382 = vmatpush.msra.mxu0 %v271
    %383 = vmatmul.f32.gmra.mxu0 %v278
    %v384 = vpop.f32.mrf.mxu0
    %v385 = vadd.f32 0.0, %v384
    %386 = vmatmul.f32.gmra.mxu0 %v278
    %v387 = vpop.f32.mrf.mxu0
    %v388 = vadd.f32 0.0, %v387
    %389 = vdwg.mxu0
    %v390 = vadd.f32 %v365, %v385
    %v391 = vadd.f32 %v366, %v388
    %v392 = vmul.f32 %v390, 0.5
    %v393 = vmul.f32 %v391, 0.5
    %v394 = vtanh.pop %v392
    %v395 = vtanh.pop %v393
    %v396 = vadd.f32 %v394, 1.0
    %v397 = vadd.f32 %v395, 1.0
    %v398 = vmul.f32 %v396, 0.5
    %v399 = vmul.f32 %v397, 0.5
    %v400 = vtanh.pop %v390
    %v401 = vtanh.pop %v391
    %v402 = vmul.f32 %v398, 0.0
    %v403 = vmul.f32 %v399, 0.0
    %406 = vrot.lane.b32.xlu0 %v400, 64
    %v407 = vpop.permute.xlu0 %406
    %408 = vrot.lane.b32.xlu0 %v401, 64
    %v409 = vpop.permute.xlu0 %408
    %v412 = vmul.f32 %v398, %v407
    %v413 = vmul.f32 %v399, %v409
    %416 = vrot.lane.b32.xlu0 %v412, 32
    %v417 = vpop.permute.xlu0 %416
    %418 = vrot.lane.b32.xlu0 %v413, 32
    %v419 = vpop.permute.xlu0 %418
    %v422 = vadd.f32 %v402, %v417
    %v423 = vadd.f32 %v403, %v419
    %v424 = vtanh.pop %v422
    %v425 = vtanh.pop %v423
    %428 = vrot.lane.b32.xlu0 %v424, 64
    %v429 = vpop.permute.xlu0 %428
    %430 = vrot.lane.b32.xlu0 %v425, 64
    %v431 = vpop.permute.xlu0 %430
    %v434 = vmul.f32 %v398, %v429
    %v435 = vmul.f32 %v399, %v431
    %vm436 = vcmp.gt.s32.totalorder %v82, 5
    %vm437 = vcmp.gt.s32.totalorder %v83, 5
    %v438 = vsel %vm436, 1, 0
    %v439 = vsel %vm437, 1, 0
    %440 = vset.pattern.permute.xlu0 0
    %441 = vperm.xlu0 %440, %v438
    %v442 = vpop.permute.xlu0 %441
    %443 = vset.pattern.permute.xlu0 0
    %444 = vperm.xlu0 %443, %v439
    %v445 = vpop.permute.xlu0 %444
    %vm446 = vcmp.eq.s32.totalorder %v442, 1
    %vm447 = vcmp.eq.s32.totalorder %v445, 1
    %v448 = vsel %vm446, %v434, 0.0
    %v449 = vsel %vm447, %v435, 0.0
    %v450 = vsel %vm446, %v422, 0.0
    %v451 = vsel %vm447, %v423, 0.0
    %v452 = vld [vmem:[#allocation2 + $0x10] sm:$0xff]
    %v453 = vld [vmem:[#allocation2 + $0x18] sm:$0xff]
    %456 = vrot.lane.b32.xlu0 %v361, 32
    %v457 = vpop.permute.xlu0 %456
    %458 = vrot.lane.b32.xlu0 %v362, 32
    %v459 = vpop.permute.xlu0 %458
    %v460 = vsel %vm92, %v457, 0
    %v462 = vsel %vm92, %v459, 0
    %464 = vmatpush.msra.mxu0 0.0
    %465 = vmatpush.msra.mxu0 0.0
    %466 = vmatpush.msra.mxu0 0.0
    %467 = vmatpush.msra.mxu0 0.0
    %468 = vmatpush.msra.mxu0 0.0
    %469 = vmatpush.msra.mxu0 0.0
    %470 = vmatpush.msra.mxu0 0.0
    %471 = vmatpush.msra.mxu0 0.0
    %472 = vmatpush.msra.mxu0 0.0
    %473 = vmatpush.msra.mxu0 0.0
    %474 = vmatpush.msra.mxu0 0.0
    %475 = vmatpush.msra.mxu0 0.0
    %476 = vmatpush.msra.mxu0 %v270
    %477 = vmatpush.msra.mxu0 %v269
    %478 = vmatpush.msra.mxu0 %v268
    %479 = vmatpush.msra.mxu0 %v267
    %480 = vmatmul.f32.gmra.mxu0 %v460
    %v481 = vpop.f32.mrf.mxu0
    %v482 = vadd.f32 0.0, %v481
    %483 = vmatmul.f32.gmra.mxu0 %v462
    %v484 = vpop.f32.mrf.mxu0
    %v485 = vadd.f32 0.0, %v484
    %486 = vdwg.mxu0
    %v487 = vadd.f32 %v452, %v482
    %v488 = vadd.f32 %v453, %v485
    %v489 = vmul.f32 %v487, 0.5
    %v490 = vmul.f32 %v488, 0.5
    %v491 = vtanh.pop %v489
    %v492 = vtanh.pop %v490
    %v493 = vadd.f32 %v491, 1.0
    %v494 = vadd.f32 %v492, 1.0
    %v495 = vmul.f32 %v493, 0.5
    %v496 = vmul.f32 %v494, 0.5
    %v497 = vtanh.pop %v487
    %v498 = vtanh.pop %v488
    %v499 = vmul.f32 %v495, %v363
    %v500 = vmul.f32 %v496, %v364
    %503 = vrot.lane.b32.xlu0 %v497, 64
    %v504 = vpop.permute.xlu0 %503
    %505 = vrot.lane.b32.xlu0 %v498, 64
    %v506 = vpop.permute.xlu0 %505
    %v509 = vmul.f32 %v495, %v504
    %v510 = vmul.f32 %v496, %v506
    %513 = vrot.lane.b32.xlu0 %v509, 32
    %v514 = vpop.permute.xlu0 %513
    %515 = vrot.lane.b32.xlu0 %v510, 32
    %v516 = vpop.permute.xlu0 %515
    %v519 = vadd.f32 %v499, %v514
    %v520 = vadd.f32 %v500, %v516
    %v521 = vtanh.pop %v519
    %v522 = vtanh.pop %v520
    %525 = vrot.lane.b32.xlu0 %v521, 64
    %v526 = vpop.permute.xlu0 %525
    %527 = vrot.lane.b32.xlu0 %v522, 64
    %v528 = vpop.permute.xlu0 %527
    %v531 = vmul.f32 %v495, %v526
    %v532 = vmul.f32 %v496, %v528
    %vm533 = vcmp.gt.s32.totalorder %v82, 1
    %vm534 = vcmp.gt.s32.totalorder %v83, 1
    %v535 = vsel %vm533, 1, 0
    %v536 = vsel %vm534, 1, 0
    %537 = vset.pattern.permute.xlu0 0
    %538 = vperm.xlu0 %537, %v535
    %v539 = vpop.permute.xlu0 %538
    %540 = vset.pattern.permute.xlu0 0
    %541 = vperm.xlu0 %540, %v536
    %v542 = vpop.permute.xlu0 %541
    %vm543 = vcmp.eq.s32.totalorder %v539, 1
    %vm544 = vcmp.eq.s32.totalorder %v542, 1
    %v545 = vsel %vm543, %v531, %v361
    %v546 = vsel %vm544, %v532, %v362
    %v547 = vsel %vm543, %v519, %v363
    %v548 = vsel %vm544, %v520, %v364
    %v549 = vld [vmem:[#allocation3 + $0x40] sm:$0xff]
    %v550 = vld [vmem:[#allocation3 + $0x48] sm:$0xff]
    %553 = vrot.lane.b32.xlu0 %v448, 32
    %v554 = vpop.permute.xlu0 %553
    %555 = vrot.lane.b32.xlu0 %v449, 32
    %v556 = vpop.permute.xlu0 %555
    %v557 = vsel %vm92, %v554, 0
    %v559 = vsel %vm92, %v556, 0
    %561 = vmatpush.msra.mxu0 0.0
    %562 = vmatpush.msra.mxu0 0.0
    %563 = vmatpush.msra.mxu0 0.0
    %564 = vmatpush.msra.mxu0 0.0
    %565 = vmatpush.msra.mxu0 0.0
    %566 = vmatpush.msra.mxu0 0.0
    %567 = vmatpush.msra.mxu0 0.0
    %568 = vmatpush.msra.mxu0 0.0
    %569 = vmatpush.msra.mxu0 0.0
    %570 = vmatpush.msra.mxu0 0.0
    %571 = vmatpush.msra.mxu0 0.0
    %572 = vmatpush.msra.mxu0 0.0
    %573 = vmatpush.msra.mxu0 %v274
    %574 = vmatpush.msra.mxu0 %v273
    %575 = vmatpush.msra.mxu0 %v272
    %576 = vmatpush.msra.mxu0 %v271
    %577 = vmatmul.f32.gmra.mxu0 %v557
    %v578 = vpop.f32.mrf.mxu0
    %v579 = vadd.f32 0.0, %v578
    %580 = vmatmul.f32.gmra.mxu0 %v559
    %v581 = vpop.f32.mrf.mxu0
    %v582 = vadd.f32 0.0, %v581
    %583 = vdwg.mxu0
    %v584 = vadd.f32 %v549, %v579
    %v585 = vadd.f32 %v550, %v582
    %v586 = vmul.f32 %v584, 0.5
    %v587 = vmul.f32 %v585, 0.5
    %v588 = vtanh.pop %v586
    %v589 = vtanh.pop %v587
    %v590 = vadd.f32 %v588, 1.0
    %v591 = vadd.f32 %v589, 1.0
    %v592 = vmul.f32 %v590, 0.5
    %v593 = vmul.f32 %v591, 0.5
    %v594 = vtanh.pop %v584
    %v595 = vtanh.pop %v585
    %v596 = vmul.f32 %v592, %v450
    %v597 = vmul.f32 %v593, %v451
    %600 = vrot.lane.b32.xlu0 %v594, 64
    %v601 = vpop.permute.xlu0 %600
    %602 = vrot.lane.b32.xlu0 %v595, 64
    %v603 = vpop.permute.xlu0 %602
    %v606 = vmul.f32 %v592, %v601
    %v607 = vmul.f32 %v593, %v603
    %610 = vrot.lane.b32.xlu0 %v606, 32
    %v611 = vpop.permute.xlu0 %610
    %612 = vrot.lane.b32.xlu0 %v607, 32
    %v613 = vpop.permute.xlu0 %612
    %v616 = vadd.f32 %v596, %v611
    %v617 = vadd.f32 %v597, %v613
    %v618 = vtanh.pop %v616
    %v619 = vtanh.pop %v617
    %622 = vrot.lane.b32.xlu0 %v618, 64
    %v623 = vpop.permute.xlu0 %622
    %624 = vrot.lane.b32.xlu0 %v619, 64
    %v625 = vpop.permute.xlu0 %624
    %v628 = vmul.f32 %v592, %v623
    %v629 = vmul.f32 %v593, %v625
    %vm630 = vcmp.gt.s32.totalorder %v82, 4
    %vm631 = vcmp.gt.s32.totalorder %v83, 4
    %v632 = vsel %vm630, 1, 0
    %v633 = vsel %vm631, 1, 0
    %634 = vset.pattern.permute.xlu0 0
    %635 = vperm.xlu0 %634, %v632
    %v636 = vpop.permute.xlu0 %635
    %637 = vset.pattern.permute.xlu0 0
    %638 = vperm.xlu0 %637, %v633
    %v639 = vpop.permute.xlu0 %638
    %vm640 = vcmp.eq.s32.totalorder %v636, 1
    %vm641 = vcmp.eq.s32.totalorder %v639, 1
    %v642 = vsel %vm640, %v628, %v448
    %v643 = vsel %vm641, %v629, %v449
    %v644 = vsel %vm640, %v616, %v450
    %v645 = vsel %vm641, %v617, %v451
    %v646 = vld [vmem:[#allocation2 + $0x20] sm:$0xff]
    %v647 = vld [vmem:[#allocation2 + $0x28] sm:$0xff]
    %650 = vrot.lane.b32.xlu0 %v545, 32
    %v651 = vpop.permute.xlu0 %650
    %652 = vrot.lane.b32.xlu0 %v546, 32
    %v653 = vpop.permute.xlu0 %652
    %v654 = vsel %vm92, %v651, 0
    %v656 = vsel %vm92, %v653, 0
    %658 = vmatpush.msra.mxu0 0.0
    %659 = vmatpush.msra.mxu0 0.0
    %660 = vmatpush.msra.mxu0 0.0
    %661 = vmatpush.msra.mxu0 0.0
    %662 = vmatpush.msra.mxu0 0.0
    %663 = vmatpush.msra.mxu0 0.0
    %664 = vmatpush.msra.mxu0 0.0
    %665 = vmatpush.msra.mxu0 0.0
    %666 = vmatpush.msra.mxu0 0.0
    %667 = vmatpush.msra.mxu0 0.0
    %668 = vmatpush.msra.mxu0 0.0
    %669 = vmatpush.msra.mxu0 0.0
    %670 = vmatpush.msra.mxu0 %v270
    %671 = vmatpush.msra.mxu0 %v269
    %672 = vmatpush.msra.mxu0 %v268
    %673 = vmatpush.msra.mxu0 %v267
    %674 = vmatmul.f32.gmra.mxu0 %v654
    %v675 = vpop.f32.mrf.mxu0
    %v676 = vadd.f32 0.0, %v675
    %677 = vmatmul.f32.gmra.mxu0 %v656
    %v678 = vpop.f32.mrf.mxu0
    %v679 = vadd.f32 0.0, %v678
    %680 = vdwg.mxu0
    %v681 = vadd.f32 %v646, %v676
    %v682 = vadd.f32 %v647, %v679
    %v683 = vmul.f32 %v681, 0.5
    %v684 = vmul.f32 %v682, 0.5
    %v685 = vtanh.pop %v683
    %v686 = vtanh.pop %v684
    %v687 = vadd.f32 %v685, 1.0
    %v688 = vadd.f32 %v686, 1.0
    %v689 = vmul.f32 %v687, 0.5
    %v690 = vmul.f32 %v688, 0.5
    %v691 = vtanh.pop %v681
    %v692 = vtanh.pop %v682
    %v693 = vmul.f32 %v689, %v547
    %v694 = vmul.f32 %v690, %v548
    %697 = vrot.lane.b32.xlu0 %v691, 64
    %v698 = vpop.permute.xlu0 %697
    %699 = vrot.lane.b32.xlu0 %v692, 64
    %v700 = vpop.permute.xlu0 %699
    %v703 = vmul.f32 %v689, %v698
    %v704 = vmul.f32 %v690, %v700
    %707 = vrot.lane.b32.xlu0 %v703, 32
    %v708 = vpop.permute.xlu0 %707
    %709 = vrot.lane.b32.xlu0 %v704, 32
    %v710 = vpop.permute.xlu0 %709
    %v713 = vadd.f32 %v693, %v708
    %v714 = vadd.f32 %v694, %v710
    %v715 = vtanh.pop %v713
    %v716 = vtanh.pop %v714
    %719 = vrot.lane.b32.xlu0 %v715, 64
    %v720 = vpop.permute.xlu0 %719
    %721 = vrot.lane.b32.xlu0 %v716, 64
    %v722 = vpop.permute.xlu0 %721
    %v725 = vmul.f32 %v689, %v720
    %v726 = vmul.f32 %v690, %v722
    %vm727 = vcmp.gt.s32.totalorder %v82, 2
    %vm728 = vcmp.gt.s32.totalorder %v83, 2
    %v729 = vsel %vm727, 1, 0
    %v730 = vsel %vm728, 1, 0
    %731 = vset.pattern.permute.xlu0 0
    %732 = vperm.xlu0 %731, %v729
    %v733 = vpop.permute.xlu0 %732
    %734 = vset.pattern.permute.xlu0 0
    %735 = vperm.xlu0 %734, %v730
    %v736 = vpop.permute.xlu0 %735
    %vm737 = vcmp.eq.s32.totalorder %v733, 1
    %vm738 = vcmp.eq.s32.totalorder %v736, 1
    %v739 = vsel %vm737, %v725, %v545
    %v740 = vsel %vm738, %v726, %v546
    %v741 = vsel %vm737, %v713, %v547
    %v742 = vsel %vm738, %v714, %v548
    %v743 = vld [vmem:[#allocation3 + $0x30] sm:$0xff]
    %v744 = vld [vmem:[#allocation3 + $0x38] sm:$0xff]
    %747 = vrot.lane.b32.xlu0 %v642, 32
    %v748 = vpop.permute.xlu0 %747
    %749 = vrot.lane.b32.xlu0 %v643, 32
    %v750 = vpop.permute.xlu0 %749
    %v751 = vsel %vm92, %v748, 0
    %v753 = vsel %vm92, %v750, 0
    %755 = vmatpush.msra.mxu0 0.0
    %756 = vmatpush.msra.mxu0 0.0
    %757 = vmatpush.msra.mxu0 0.0
    %758 = vmatpush.msra.mxu0 0.0
    %759 = vmatpush.msra.mxu0 0.0
    %760 = vmatpush.msra.mxu0 0.0
    %761 = vmatpush.msra.mxu0 0.0
    %762 = vmatpush.msra.mxu0 0.0
    %763 = vmatpush.msra.mxu0 0.0
    %764 = vmatpush.msra.mxu0 0.0
    %765 = vmatpush.msra.mxu0 0.0
    %766 = vmatpush.msra.mxu0 0.0
    %767 = vmatpush.msra.mxu0 %v274
    %768 = vmatpush.msra.mxu0 %v273
    %769 = vmatpush.msra.mxu0 %v272
    %770 = vmatpush.msra.mxu0 %v271
    %771 = vmatmul.f32.gmra.mxu0 %v751
    %v772 = vpop.f32.mrf.mxu0
    %v773 = vadd.f32 0.0, %v772
    %774 = vmatmul.f32.gmra.mxu0 %v753
    %v775 = vpop.f32.mrf.mxu0
    %v776 = vadd.f32 0.0, %v775
    %777 = vdwg.mxu0
    %v778 = vadd.f32 %v743, %v773
    %v779 = vadd.f32 %v744, %v776
    %v780 = vmul.f32 %v778, 0.5
    %v781 = vmul.f32 %v779, 0.5
    %v782 = vtanh.pop %v780
    %v783 = vtanh.pop %v781
    %v784 = vadd.f32 %v782, 1.0
    %v785 = vadd.f32 %v783, 1.0
    %v786 = vmul.f32 %v784, 0.5
    %v787 = vmul.f32 %v785, 0.5
    %v788 = vtanh.pop %v778
    %v789 = vtanh.pop %v779
    %v790 = vmul.f32 %v786, %v644
    %v791 = vmul.f32 %v787, %v645
    %794 = vrot.lane.b32.xlu0 %v788, 64
    %v795 = vpop.permute.xlu0 %794
    %796 = vrot.lane.b32.xlu0 %v789, 64
    %v797 = vpop.permute.xlu0 %796
    %v800 = vmul.f32 %v786, %v795
    %v801 = vmul.f32 %v787, %v797
    %804 = vrot.lane.b32.xlu0 %v800, 32
    %v805 = vpop.permute.xlu0 %804
    %806 = vrot.lane.b32.xlu0 %v801, 32
    %v807 = vpop.permute.xlu0 %806
    %v810 = vadd.f32 %v790, %v805
    %v811 = vadd.f32 %v791, %v807
    %v812 = vtanh.pop %v810
    %v813 = vtanh.pop %v811
    %816 = vrot.lane.b32.xlu0 %v812, 64
    %v817 = vpop.permute.xlu0 %816
    %818 = vrot.lane.b32.xlu0 %v813, 64
    %v819 = vpop.permute.xlu0 %818
    %v822 = vmul.f32 %v786, %v817
    %v823 = vmul.f32 %v787, %v819
    %vm824 = vcmp.gt.s32.totalorder %v82, 3
    %vm825 = vcmp.gt.s32.totalorder %v83, 3
    %v826 = vsel %vm824, 1, 0
    %v827 = vsel %vm825, 1, 0
    %828 = vset.pattern.permute.xlu0 0
    %829 = vperm.xlu0 %828, %v826
    %v830 = vpop.permute.xlu0 %829
    %831 = vset.pattern.permute.xlu0 0
    %832 = vperm.xlu0 %831, %v827
    %v833 = vpop.permute.xlu0 %832
    %vm834 = vcmp.eq.s32.totalorder %v830, 1
    %vm835 = vcmp.eq.s32.totalorder %v833, 1
    %v836 = vsel %vm834, %v822, %v642
    %v837 = vsel %vm835, %v823, %v643
    %v838 = vsel %vm834, %v810, %v644
    %v839 = vsel %vm835, %v811, %v645
    %v840 = vld [vmem:[#allocation2 + $0x30] sm:$0xff]
    %v841 = vld [vmem:[#allocation2 + $0x38] sm:$0xff]
    %844 = vrot.lane.b32.xlu0 %v739, 32
    %v845 = vpop.permute.xlu0 %844
    %846 = vrot.lane.b32.xlu0 %v740, 32
    %v847 = vpop.permute.xlu0 %846
    %v848 = vsel %vm92, %v845, 0
    %v850 = vsel %vm92, %v847, 0
    %852 = vmatpush.msra.mxu0 0.0
    %853 = vmatpush.msra.mxu0 0.0
    %854 = vmatpush.msra.mxu0 0.0
    %855 = vmatpush.msra.mxu0 0.0
    %856 = vmatpush.msra.mxu0 0.0
    %857 = vmatpush.msra.mxu0 0.0
    %858 = vmatpush.msra.mxu0 0.0
    %859 = vmatpush.msra.mxu0 0.0
    %860 = vmatpush.msra.mxu0 0.0
    %861 = vmatpush.msra.mxu0 0.0
    %862 = vmatpush.msra.mxu0 0.0
    %863 = vmatpush.msra.mxu0 0.0
    %864 = vmatpush.msra.mxu0 %v270
    %865 = vmatpush.msra.mxu0 %v269
    %866 = vmatpush.msra.mxu0 %v268
    %867 = vmatpush.msra.mxu0 %v267
    %868 = vmatmul.f32.gmra.mxu0 %v848
    %v869 = vpop.f32.mrf.mxu0
    %v870 = vadd.f32 0.0, %v869
    %871 = vmatmul.f32.gmra.mxu0 %v850
    %v872 = vpop.f32.mrf.mxu0
    %v873 = vadd.f32 0.0, %v872
    %874 = vdwg.mxu0
    %v875 = vadd.f32 %v840, %v870
    %v876 = vadd.f32 %v841, %v873
    %v877 = vmul.f32 %v875, 0.5
    %v878 = vmul.f32 %v876, 0.5
    %v879 = vtanh.pop %v877
    %v880 = vtanh.pop %v878
    %v881 = vadd.f32 %v879, 1.0
    %v882 = vadd.f32 %v880, 1.0
    %v883 = vmul.f32 %v881, 0.5
    %v884 = vmul.f32 %v882, 0.5
    %v885 = vtanh.pop %v875
    %v886 = vtanh.pop %v876
    %v887 = vmul.f32 %v883, %v741
    %v888 = vmul.f32 %v884, %v742
    %891 = vrot.lane.b32.xlu0 %v885, 64
    %v892 = vpop.permute.xlu0 %891
    %893 = vrot.lane.b32.xlu0 %v886, 64
    %v894 = vpop.permute.xlu0 %893
    %v897 = vmul.f32 %v883, %v892
    %v898 = vmul.f32 %v884, %v894
    %901 = vrot.lane.b32.xlu0 %v897, 32
    %v902 = vpop.permute.xlu0 %901
    %903 = vrot.lane.b32.xlu0 %v898, 32
    %v904 = vpop.permute.xlu0 %903
    %v907 = vadd.f32 %v887, %v902
    %v908 = vadd.f32 %v888, %v904
    %v909 = vtanh.pop %v907
    %v910 = vtanh.pop %v908
    %913 = vrot.lane.b32.xlu0 %v909, 64
    %v914 = vpop.permute.xlu0 %913
    %915 = vrot.lane.b32.xlu0 %v910, 64
    %v916 = vpop.permute.xlu0 %915
    %v919 = vmul.f32 %v883, %v914
    %v920 = vmul.f32 %v884, %v916
    %v921 = vsel %vm834, %v919, %v739
    %v922 = vsel %vm835, %v920, %v740
    %v923 = vsel %vm834, %v907, %v741
    %v924 = vsel %vm835, %v908, %v742
    %v925 = vld [vmem:[#allocation3 + $0x20] sm:$0xff]
    %v926 = vld [vmem:[#allocation3 + $0x28] sm:$0xff]
    %929 = vrot.lane.b32.xlu0 %v836, 32
    %v930 = vpop.permute.xlu0 %929
    %931 = vrot.lane.b32.xlu0 %v837, 32
    %v932 = vpop.permute.xlu0 %931
    %v933 = vsel %vm92, %v930, 0
    %v935 = vsel %vm92, %v932, 0
    %937 = vmatpush.msra.mxu0 0.0
    %938 = vmatpush.msra.mxu0 0.0
    %939 = vmatpush.msra.mxu0 0.0
    %940 = vmatpush.msra.mxu0 0.0
    %941 = vmatpush.msra.mxu0 0.0
    %942 = vmatpush.msra.mxu0 0.0
    %943 = vmatpush.msra.mxu0 0.0
    %944 = vmatpush.msra.mxu0 0.0
    %945 = vmatpush.msra.mxu0 0.0
    %946 = vmatpush.msra.mxu0 0.0
    %947 = vmatpush.msra.mxu0 0.0
    %948 = vmatpush.msra.mxu0 0.0
    %949 = vmatpush.msra.mxu0 %v274
    %950 = vmatpush.msra.mxu0 %v273
    %951 = vmatpush.msra.mxu0 %v272
    %952 = vmatpush.msra.mxu0 %v271
    %953 = vmatmul.f32.gmra.mxu0 %v933
    %v954 = vpop.f32.mrf.mxu0
    %v955 = vadd.f32 0.0, %v954
    %956 = vmatmul.f32.gmra.mxu0 %v935
    %v957 = vpop.f32.mrf.mxu0
    %v958 = vadd.f32 0.0, %v957
    %959 = vdwg.mxu0
    %v960 = vadd.f32 %v925, %v955
    %v961 = vadd.f32 %v926, %v958
    %v962 = vmul.f32 %v960, 0.5
    %v963 = vmul.f32 %v961, 0.5
    %v964 = vtanh.pop %v962
    %v965 = vtanh.pop %v963
    %v966 = vadd.f32 %v964, 1.0
    %v967 = vadd.f32 %v965, 1.0
    %v968 = vmul.f32 %v966, 0.5
    %v969 = vmul.f32 %v967, 0.5
    %v970 = vtanh.pop %v960
    %v971 = vtanh.pop %v961
    %v972 = vmul.f32 %v968, %v838
    %v973 = vmul.f32 %v969, %v839
    %976 = vrot.lane.b32.xlu0 %v970, 64
    %v977 = vpop.permute.xlu0 %976
    %978 = vrot.lane.b32.xlu0 %v971, 64
    %v979 = vpop.permute.xlu0 %978
    %v982 = vmul.f32 %v968, %v977
    %v983 = vmul.f32 %v969, %v979
    %986 = vrot.lane.b32.xlu0 %v982, 32
    %v987 = vpop.permute.xlu0 %986
    %988 = vrot.lane.b32.xlu0 %v983, 32
    %v989 = vpop.permute.xlu0 %988
    %v992 = vadd.f32 %v972, %v987
    %v993 = vadd.f32 %v973, %v989
    %v994 = vtanh.pop %v992
    %v995 = vtanh.pop %v993
    %998 = vrot.lane.b32.xlu0 %v994, 64
    %v999 = vpop.permute.xlu0 %998
    %1000 = vrot.lane.b32.xlu0 %v995, 64
    %v1001 = vpop.permute.xlu0 %1000
    %v1004 = vmul.f32 %v968, %v999
    %v1005 = vmul.f32 %v969, %v1001
    %v1006 = vsel %vm737, %v1004, %v836
    %v1007 = vsel %vm738, %v1005, %v837
    %v1008 = vsel %vm737, %v992, %v838
    %v1009 = vsel %vm738, %v993, %v839
    %v1010 = vld [vmem:[#allocation2 + $0x40] sm:$0xff]
    %v1011 = vld [vmem:[#allocation2 + $0x48] sm:$0xff]
    %1014 = vrot.lane.b32.xlu0 %v921, 32
    %v1015 = vpop.permute.xlu0 %1014
    %1016 = vrot.lane.b32.xlu0 %v922, 32
    %v1017 = vpop.permute.xlu0 %1016
    %v1018 = vsel %vm92, %v1015, 0
    %v1020 = vsel %vm92, %v1017, 0
    %1022 = vmatpush.msra.mxu0 0.0
    %1023 = vmatpush.msra.mxu0 0.0
    %1024 = vmatpush.msra.mxu0 0.0
    %1025 = vmatpush.msra.mxu0 0.0
    %1026 = vmatpush.msra.mxu0 0.0
    %1027 = vmatpush.msra.mxu0 0.0
    %1028 = vmatpush.msra.mxu0 0.0
    %1029 = vmatpush.msra.mxu0 0.0
    %1030 = vmatpush.msra.mxu0 0.0
    %1031 = vmatpush.msra.mxu0 0.0
    %1032 = vmatpush.msra.mxu0 0.0
    %1033 = vmatpush.msra.mxu0 0.0
    %1034 = vmatpush.msra.mxu0 %v270
    %1035 = vmatpush.msra.mxu0 %v269
    %1036 = vmatpush.msra.mxu0 %v268
    %1037 = vmatpush.msra.mxu0 %v267
    %1038 = vmatmul.f32.gmra.mxu0 %v1018
    %v1039 = vpop.f32.mrf.mxu0
    %v1040 = vadd.f32 0.0, %v1039
    %1041 = vmatmul.f32.gmra.mxu0 %v1020
    %v1042 = vpop.f32.mrf.mxu0
    %v1043 = vadd.f32 0.0, %v1042
    %1044 = vdwg.mxu0
    %v1045 = vadd.f32 %v1010, %v1040
    %v1046 = vadd.f32 %v1011, %v1043
    %v1047 = vmul.f32 %v1045, 0.5
    %v1048 = vmul.f32 %v1046, 0.5
    %v1049 = vtanh.pop %v1047
    %v1050 = vtanh.pop %v1048
    %v1051 = vadd.f32 %v1049, 1.0
    %v1052 = vadd.f32 %v1050, 1.0
    %v1053 = vmul.f32 %v1051, 0.5
    %v1054 = vmul.f32 %v1052, 0.5
    %v1055 = vtanh.pop %v1045
    %v1056 = vtanh.pop %v1046
    %v1057 = vmul.f32 %v1053, %v923
    %v1058 = vmul.f32 %v1054, %v924
    %1061 = vrot.lane.b32.xlu0 %v1055, 64
    %v1062 = vpop.permute.xlu0 %1061
    %1063 = vrot.lane.b32.xlu0 %v1056, 64
    %v1064 = vpop.permute.xlu0 %1063
    %v1067 = vmul.f32 %v1053, %v1062
    %v1068 = vmul.f32 %v1054, %v1064
    %1071 = vrot.lane.b32.xlu0 %v1067, 32
    %v1072 = vpop.permute.xlu0 %1071
    %1073 = vrot.lane.b32.xlu0 %v1068, 32
    %v1074 = vpop.permute.xlu0 %1073
    %v1077 = vadd.f32 %v1057, %v1072
    %v1078 = vadd.f32 %v1058, %v1074
    %v1079 = vtanh.pop %v1077
    %v1080 = vtanh.pop %v1078
    %1083 = vrot.lane.b32.xlu0 %v1079, 64
    %v1084 = vpop.permute.xlu0 %1083
    %1085 = vrot.lane.b32.xlu0 %v1080, 64
    %v1086 = vpop.permute.xlu0 %1085
    %v1089 = vmul.f32 %v1053, %v1084
    %v1090 = vmul.f32 %v1054, %v1086
    %v1091 = vsel %vm640, %v1089, %v921
    %v1092 = vsel %vm641, %v1090, %v922
    %v1093 = vsel %vm640, %v1077, %v923
    %v1094 = vsel %vm641, %v1078, %v924
    %v1095 = vld [vmem:[#allocation3 + $0x10] sm:$0xff]
    %v1096 = vld [vmem:[#allocation3 + $0x18] sm:$0xff]
    %1099 = vrot.lane.b32.xlu0 %v1006, 32
    %v1100 = vpop.permute.xlu0 %1099
    %1101 = vrot.lane.b32.xlu0 %v1007, 32
    %v1102 = vpop.permute.xlu0 %1101
    %v1103 = vsel %vm92, %v1100, 0
    %v1105 = vsel %vm92, %v1102, 0
    %1107 = vmatpush.msra.mxu0 0.0
    %1108 = vmatpush.msra.mxu0 0.0
    %1109 = vmatpush.msra.mxu0 0.0
    %1110 = vmatpush.msra.mxu0 0.0
    %1111 = vmatpush.msra.mxu0 0.0
    %1112 = vmatpush.msra.mxu0 0.0
    %1113 = vmatpush.msra.mxu0 0.0
    %1114 = vmatpush.msra.mxu0 0.0
    %1115 = vmatpush.msra.mxu0 0.0
    %1116 = vmatpush.msra.mxu0 0.0
    %1117 = vmatpush.msra.mxu0 0.0
    %1118 = vmatpush.msra.mxu0 0.0
    %1119 = vmatpush.msra.mxu0 %v274
    %1120 = vmatpush.msra.mxu0 %v273
    %1121 = vmatpush.msra.mxu0 %v272
    %1122 = vmatpush.msra.mxu0 %v271
    %1123 = vmatmul.f32.gmra.mxu0 %v1103
    %v1124 = vpop.f32.mrf.mxu0
    %v1125 = vadd.f32 0.0, %v1124
    %1126 = vmatmul.f32.gmra.mxu0 %v1105
    %v1127 = vpop.f32.mrf.mxu0
    %v1128 = vadd.f32 0.0, %v1127
    %1129 = vdwg.mxu0
    %v1130 = vadd.f32 %v1095, %v1125
    %v1131 = vadd.f32 %v1096, %v1128
    %v1132 = vmul.f32 %v1130, 0.5
    %v1133 = vmul.f32 %v1131, 0.5
    %v1134 = vtanh.pop %v1132
    %v1135 = vtanh.pop %v1133
    %v1136 = vadd.f32 %v1134, 1.0
    %v1137 = vadd.f32 %v1135, 1.0
    %v1138 = vmul.f32 %v1136, 0.5
    %v1139 = vmul.f32 %v1137, 0.5
    %v1140 = vtanh.pop %v1130
    %v1141 = vtanh.pop %v1131
    %v1142 = vmul.f32 %v1138, %v1008
    %v1143 = vmul.f32 %v1139, %v1009
    %1146 = vrot.lane.b32.xlu0 %v1140, 64
    %v1147 = vpop.permute.xlu0 %1146
    %1148 = vrot.lane.b32.xlu0 %v1141, 64
    %v1149 = vpop.permute.xlu0 %1148
    %v1152 = vmul.f32 %v1138, %v1147
    %v1153 = vmul.f32 %v1139, %v1149
    %1156 = vrot.lane.b32.xlu0 %v1152, 32
    %v1157 = vpop.permute.xlu0 %1156
    %1158 = vrot.lane.b32.xlu0 %v1153, 32
    %v1159 = vpop.permute.xlu0 %1158
    %v1162 = vadd.f32 %v1142, %v1157
    %v1163 = vadd.f32 %v1143, %v1159
    %v1164 = vtanh.pop %v1162
    %v1165 = vtanh.pop %v1163
    %1168 = vrot.lane.b32.xlu0 %v1164, 64
    %v1169 = vpop.permute.xlu0 %1168
    %1170 = vrot.lane.b32.xlu0 %v1165, 64
    %v1171 = vpop.permute.xlu0 %1170
    %v1174 = vmul.f32 %v1138, %v1169
    %v1175 = vmul.f32 %v1139, %v1171
    %v1176 = vsel %vm543, %v1174, %v1006
    %v1177 = vsel %vm544, %v1175, %v1007
    %v1178 = vsel %vm543, %v1162, %v1008
    %v1179 = vsel %vm544, %v1163, %v1009
    %v1180 = vld [vmem:[#allocation2 + $0x50] sm:$0xff]
    %v1181 = vld [vmem:[#allocation2 + $0x58] sm:$0xff]
    %1184 = vrot.lane.b32.xlu0 %v1091, 32
    %v1185 = vpop.permute.xlu0 %1184
    %1186 = vrot.lane.b32.xlu0 %v1092, 32
    %v1187 = vpop.permute.xlu0 %1186
    %v1188 = vsel %vm92, %v1185, 0
    %v1190 = vsel %vm92, %v1187, 0
    %1192 = vmatpush.msra.mxu0 0.0
    %1193 = vmatpush.msra.mxu0 0.0
    %1194 = vmatpush.msra.mxu0 0.0
    %1195 = vmatpush.msra.mxu0 0.0
    %1196 = vmatpush.msra.mxu0 0.0
    %1197 = vmatpush.msra.mxu0 0.0
    %1198 = vmatpush.msra.mxu0 0.0
    %1199 = vmatpush.msra.mxu0 0.0
    %1200 = vmatpush.msra.mxu0 0.0
    %1201 = vmatpush.msra.mxu0 0.0
    %1202 = vmatpush.msra.mxu0 0.0
    %1203 = vmatpush.msra.mxu0 0.0
    %1204 = vmatpush.msra.mxu0 %v270
    %1205 = vmatpush.msra.mxu0 %v269
    %1206 = vmatpush.msra.mxu0 %v268
    %1207 = vmatpush.msra.mxu0 %v267
    %1208 = vmatmul.f32.gmra.mxu0 %v1188
    %v1209 = vpop.f32.mrf.mxu0
    %v1210 = vadd.f32 0.0, %v1209
    %1211 = vmatmul.f32.gmra.mxu0 %v1190
    %v1212 = vpop.f32.mrf.mxu0
    %v1213 = vadd.f32 0.0, %v1212
    %1214 = vdwg.mxu0
    %v1215 = vadd.f32 %v1180, %v1210
    %v1216 = vadd.f32 %v1181, %v1213
    %v1217 = vmul.f32 %v1215, 0.5
    %v1218 = vmul.f32 %v1216, 0.5
    %v1219 = vtanh.pop %v1217
    %v1220 = vtanh.pop %v1218
    %v1221 = vadd.f32 %v1219, 1.0
    %v1222 = vadd.f32 %v1220, 1.0
    %v1223 = vmul.f32 %v1221, 0.5
    %v1224 = vmul.f32 %v1222, 0.5
    %v1225 = vtanh.pop %v1215
    %v1226 = vtanh.pop %v1216
    %v1227 = vmul.f32 %v1223, %v1093
    %v1228 = vmul.f32 %v1224, %v1094
    %1231 = vrot.lane.b32.xlu0 %v1225, 64
    %v1232 = vpop.permute.xlu0 %1231
    %1233 = vrot.lane.b32.xlu0 %v1226, 64
    %v1234 = vpop.permute.xlu0 %1233
    %v1237 = vmul.f32 %v1223, %v1232
    %v1238 = vmul.f32 %v1224, %v1234
    %1241 = vrot.lane.b32.xlu0 %v1237, 32
    %v1242 = vpop.permute.xlu0 %1241
    %1243 = vrot.lane.b32.xlu0 %v1238, 32
    %v1244 = vpop.permute.xlu0 %1243
    %v1247 = vadd.f32 %v1227, %v1242
    %v1248 = vadd.f32 %v1228, %v1244
    %v1249 = vtanh.pop %v1247
    %v1250 = vtanh.pop %v1248
    %1253 = vrot.lane.b32.xlu0 %v1249, 64
    %v1254 = vpop.permute.xlu0 %1253
    %1255 = vrot.lane.b32.xlu0 %v1250, 64
    %v1256 = vpop.permute.xlu0 %1255
    %v1259 = vmul.f32 %v1223, %v1254
    %v1260 = vmul.f32 %v1224, %v1256
    %v1261 = vsel %vm446, %v1259, %v1091
    %v1262 = vsel %vm447, %v1260, %v1092
    %v1263 = vld [vmem:[#allocation3] sm:$0xff]
    %v1264 = vld [vmem:[#allocation3 + $0x8] sm:$0xff]
    %1267 = vrot.lane.b32.xlu0 %v1176, 32
    %v1268 = vpop.permute.xlu0 %1267
    %1269 = vrot.lane.b32.xlu0 %v1177, 32
    %v1270 = vpop.permute.xlu0 %1269
    %v1271 = vsel %vm92, %v1268, 0
    %v1273 = vsel %vm92, %v1270, 0
    %1275 = vmatpush.msra.mxu0 0.0
    %1276 = vmatpush.msra.mxu0 0.0
    %1277 = vmatpush.msra.mxu0 0.0
    %1278 = vmatpush.msra.mxu0 0.0
    %1279 = vmatpush.msra.mxu0 0.0
    %1280 = vmatpush.msra.mxu0 0.0
    %1281 = vmatpush.msra.mxu0 0.0
    %1282 = vmatpush.msra.mxu0 0.0
    %1283 = vmatpush.msra.mxu0 0.0
    %1284 = vmatpush.msra.mxu0 0.0
    %1285 = vmatpush.msra.mxu0 0.0
    %1286 = vmatpush.msra.mxu0 0.0
    %1287 = vmatpush.msra.mxu0 %v274
    %1288 = vmatpush.msra.mxu0 %v273
    %1289 = vmatpush.msra.mxu0 %v272
    %1290 = vmatpush.msra.mxu0 %v271
    %1291 = vmatmul.f32.gmra.mxu0 %v1271
    %v1292 = vpop.f32.mrf.mxu0
    %v1293 = vadd.f32 0.0, %v1292
    %1294 = vmatmul.f32.gmra.mxu0 %v1273
    %v1295 = vpop.f32.mrf.mxu0
    %v1296 = vadd.f32 0.0, %v1295
    %1297 = vdwg.mxu0
    %v1298 = vadd.f32 %v1263, %v1293
    %v1299 = vadd.f32 %v1264, %v1296
    %v1300 = vmul.f32 %v1298, 0.5
    %v1301 = vmul.f32 %v1299, 0.5
    %v1302 = vtanh.pop %v1300
    %v1303 = vtanh.pop %v1301
    %v1304 = vadd.f32 %v1302, 1.0
    %v1305 = vadd.f32 %v1303, 1.0
    %v1306 = vmul.f32 %v1304, 0.5
    %v1307 = vmul.f32 %v1305, 0.5
    %v1308 = vtanh.pop %v1298
    %v1309 = vtanh.pop %v1299
    %v1310 = vmul.f32 %v1306, %v1178
    %v1311 = vmul.f32 %v1307, %v1179
    %1314 = vrot.lane.b32.xlu0 %v1308, 64
    %v1315 = vpop.permute.xlu0 %1314
    %1316 = vrot.lane.b32.xlu0 %v1309, 64
    %v1317 = vpop.permute.xlu0 %1316
    %v1320 = vmul.f32 %v1306, %v1315
    %v1321 = vmul.f32 %v1307, %v1317
    %1324 = vrot.lane.b32.xlu0 %v1320, 32
    %v1325 = vpop.permute.xlu0 %1324
    %1326 = vrot.lane.b32.xlu0 %v1321, 32
    %v1327 = vpop.permute.xlu0 %1326
    %v1330 = vadd.f32 %v1310, %v1325
    %v1331 = vadd.f32 %v1311, %v1327
    %v1332 = vtanh.pop %v1330
    %v1333 = vtanh.pop %v1331
    %1336 = vrot.lane.b32.xlu0 %v1332, 64
    %v1337 = vpop.permute.xlu0 %1336
    %1338 = vrot.lane.b32.xlu0 %v1333, 64
    %v1339 = vpop.permute.xlu0 %1338
    %v1342 = vmul.f32 %v1306, %v1337
    %v1343 = vmul.f32 %v1307, %v1339
    %v1344 = vsel %vm359, %v1342, %v1176
    %v1345 = vsel %vm360, %v1343, %v1177
    %1348 = vrot.lane.b32.xlu0 %v1261, 32
    %v1349 = vpop.permute.xlu0 %1348
    %1350 = vrot.lane.b32.xlu0 %v1262, 32
    %v1351 = vpop.permute.xlu0 %1350
    %1356 = vrot.lane.b32.xlu0 %v1344, 64
    %v1357 = vpop.permute.xlu0 %1356
    %1358 = vrot.lane.b32.xlu0 %v1345, 64
    %v1359 = vpop.permute.xlu0 %1358
    %v1362 = vsel %vm92, %v1349, %v1357
    %v1363 = vsel %vm92, %v1351, %v1359
    %v1364 = vld [vmem:[%s8] sm:$0xff]
    %v1365 = vld [vmem:[%s8 + $0x8] sm:$0xff]
    %v1366 = vld [vmem:[%s8 + $0x10] sm:$0xff]
    %v1367 = vld [vmem:[%s8 + $0x18] sm:$0xff]
    %v1368 = vld [vmem:[%s8 + $0x20] sm:$0xff]
    %v1369 = vld [vmem:[%s8 + $0x28] sm:$0xff]
    %v1370 = vld [vmem:[%s8 + $0x30] sm:$0xff]
    %v1371 = vld [vmem:[%s8 + $0x38] sm:$0xff]
    %v1372 = vld [vmem:[%s9] sm:$0x1]
    %v1374 = vperm.slane %v1372, 0
    %vm1376 = vcmask 523264
    %v1378 = vsel %vm1376, %v1362, 0
    %v1381 = vsel %vm1376, %v1363, 0
    %1383 = vmatpush.msra.mxu0 0.0
    %1384 = vmatpush.msra.mxu0 0.0
    %1385 = vmatpush.msra.mxu0 0.0
    %1386 = vmatpush.msra.mxu0 0.0
    %1387 = vmatpush.msra.mxu0 0.0
    %1388 = vmatpush.msra.mxu0 0.0
    %1389 = vmatpush.msra.mxu0 0.0
    %1390 = vmatpush.msra.mxu0 0.0
    %1391 = vmatpush.msra.mxu0 %v1371
    %1392 = vmatpush.msra.mxu0 %v1370
    %1393 = vmatpush.msra.mxu0 %v1369
    %1394 = vmatpush.msra.mxu0 %v1368
    %1395 = vmatpush.msra.mxu0 %v1367
    %1396 = vmatpush.msra.mxu0 %v1366
    %1397 = vmatpush.msra.mxu0 %v1365
    %1398 = vmatpush.msra.mxu0 %v1364
    %1399 = vmatmul.f32.gmra.mxu0 %v1378
    %v1400 = vpop.f32.mrf.mxu0
    %v1401 = vadd.f32 %v1374, %v1400
    %1402 = vmatmul.f32.gmra.mxu0 %v1381
    %v1403 = vpop.f32.mrf.mxu0
    %v1404 = vadd.f32 %v1374, %v1403
    %1405 = vdwg.mxu0
    %v1406 = vld [vmem:[%s12] sm:$0xff]
    %v1407 = vld [vmem:[%s12 + $0x8] sm:$0xff]
    %v1408 = vld [vmem:[%s12 + $0x10] sm:$0xff]
    %v1409 = vld [vmem:[%s12 + $0x18] sm:$0xff]
    %v1410 = vld [vmem:[%s13] sm:$0xff]
    %v1411 = vld [vmem:[%s13 + $0x8] sm:$0xff]
    %v1412 = vld [vmem:[%s13 + $0x10] sm:$0xff]
    %v1413 = vld [vmem:[%s13 + $0x18] sm:$0xff]
    %v1414 = vld [vmem:[%s14] sm:$0x1]
    %v1416 = vperm.slane %v1414, 0
    %v1419 = vsel %vm92, %v1401, 0
    %v1422 = vsel %vm92, %v1404, 0
    %1424 = vmatpush.msra.mxu0 0.0
    %1425 = vmatpush.msra.mxu0 0.0
    %1426 = vmatpush.msra.mxu0 0.0
    %1427 = vmatpush.msra.mxu0 0.0
    %1428 = vmatpush.msra.mxu0 0.0
    %1429 = vmatpush.msra.mxu0 0.0
    %1430 = vmatpush.msra.mxu0 0.0
    %1431 = vmatpush.msra.mxu0 0.0
    %1432 = vmatpush.msra.mxu0 0.0
    %1433 = vmatpush.msra.mxu0 0.0
    %1434 = vmatpush.msra.mxu0 0.0
    %1435 = vmatpush.msra.mxu0 0.0
    %1436 = vmatpush.msra.mxu0 %v1409
    %1437 = vmatpush.msra.mxu0 %v1408
    %1438 = vmatpush.msra.mxu0 %v1407
    %1439 = vmatpush.msra.mxu0 %v1406
    %1440 = vmatmul.f32.gmra.mxu0 %v1419
    %v1441 = vpop.f32.mrf.mxu0
    %v1442 = vadd.f32 %v1416, %v1441
    %1443 = vmatmul.f32.gmra.mxu0 %v1422
    %v1444 = vpop.f32.mrf.mxu0
    %v1445 = vadd.f32 %v1416, %v1444
    %1446 = vdwg.mxu0
    %v1447 = vld [vmem:[%s10] sm:$0x3]
    %v1448 = vld [vmem:[%s11] sm:$0x3]
    %v1450 = vsel %vm92, %v1447, 0
    %1452 = vmatpush.msra.mxu0 0.0
    %1453 = vmatpush.msra.mxu0 0.0
    %1454 = vmatpush.msra.mxu0 0.0
    %1455 = vmatpush.msra.mxu0 0.0
    %1456 = vmatpush.msra.mxu0 0.0
    %1457 = vmatpush.msra.mxu0 0.0
    %1458 = vmatpush.msra.mxu0 0.0
    %1459 = vmatpush.msra.mxu0 0.0
    %1460 = vmatpush.msra.mxu0 0.0
    %1461 = vmatpush.msra.mxu0 0.0
    %1462 = vmatpush.msra.mxu0 0.0
    %1463 = vmatpush.msra.mxu0 0.0
    %1464 = vmatpush.msra.mxu0 %v1413
    %1465 = vmatpush.msra.mxu0 %v1412
    %1466 = vmatpush.msra.mxu0 %v1411
    %1467 = vmatpush.msra.mxu0 %v1410
    %1468 = vmatmul.f32.gmra.mxu0 %v1450
    %v1469 = vpop.f32.mrf.mxu0
    %v1470 = vadd.f32 0.0, %v1469
    %1471 = vdwg.mxu0
    %v1472 = vadd.f32 %v1442, %v1470
    %v1473 = vmul.f32 %v1472, 0.5
    %v1474 = vtanh.pop %v1473
    %v1475 = vadd.f32 %v1474, 1.0
    %v1476 = vmul.f32 %v1475, 0.5
    %v1477 = vtanh.pop %v1472
    %1479 = vrot.lane.b32.xlu0 %v1448, 32
    %v1480 = vpop.permute.xlu0 %1479
    %v1482 = vmul.f32 %v1476, %v1480
    %1484 = vrot.lane.b32.xlu0 %v1477, 64
    %v1485 = vpop.permute.xlu0 %1484
    %v1487 = vmul.f32 %v1476, %v1485
    %1489 = vrot.lane.b32.xlu0 %v1487, 32
    %v1490 = vpop.permute.xlu0 %1489
    %v1492 = vadd.f32 %v1482, %v1490
    %v1493 = vtanh.pop %v1492
    %1495 = vrot.lane.b32.xlu0 %v1493, 64
    %v1496 = vpop.permute.xlu0 %1495
    %v1498 = vmul.f32 %v1476, %v1496
    %1500 = vrot.lane.b32.xlu0 %v1498, 32
    %v1501 = vpop.permute.xlu0 %1500
    %v1502 = vsel %vm92, %v1501, 0
    %1504 = vmatpush.msra.mxu0 0.0
    %1505 = vmatpush.msra.mxu0 0.0
    %1506 = vmatpush.msra.mxu0 0.0
    %1507 = vmatpush.msra.mxu0 0.0
    %1508 = vmatpush.msra.mxu0 0.0
    %1509 = vmatpush.msra.mxu0 0.0
    %1510 = vmatpush.msra.mxu0 0.0
    %1511 = vmatpush.msra.mxu0 0.0
    %1512 = vmatpush.msra.mxu0 0.0
    %1513 = vmatpush.msra.mxu0 0.0
    %1514 = vmatpush.msra.mxu0 0.0
    %1515 = vmatpush.msra.mxu0 0.0
    %1516 = vmatpush.msra.mxu0 %v1413
    %1517 = vmatpush.msra.mxu0 %v1412
    %1518 = vmatpush.msra.mxu0 %v1411
    %1519 = vmatpush.msra.mxu0 %v1410
    %1520 = vmatmul.f32.gmra.mxu0 %v1502
    %v1521 = vpop.f32.mrf.mxu0
    %v1522 = vadd.f32 0.0, %v1521
    %1523 = vdwg.mxu0
    %v1525 = vrot.slane %v1522, 6
    %v1527 = vadd.f32 %v1442, %v1525
    %v1528 = vmul.f32 %v1527, 0.5
    %v1529 = vtanh.pop %v1528
    %v1530 = vadd.f32 %v1529, 1.0
    %v1531 = vmul.f32 %v1530, 0.5
    %v1532 = vtanh.pop %v1527
    %v1534 = vrot.slane %v1492, 6
    %v1536 = vmul.f32 %v1531, %v1534
    %1538 = vrot.lane.b32.xlu0 %v1532, 64
    %v1539 = vpop.permute.xlu0 %1538
    %v1541 = vmul.f32 %v1531, %v1539
    %1543 = vrot.lane.b32.xlu0 %v1541, 32
    %v1544 = vpop.permute.xlu0 %1543
    %v1546 = vadd.f32 %v1536, %v1544
    %v1547 = vtanh.pop %v1546
    %1549 = vrot.lane.b32.xlu0 %v1547, 64
    %v1550 = vpop.permute.xlu0 %1549
    %v1552 = vmul.f32 %v1531, %v1550
    %v1554 = vrot.slane %v1552, 2
    %1555 = vrot.lane.b32.xlu0 %v1554, 32
    %v1556 = vpop.permute.xlu0 %1555
    %v1557 = vsel %vm92, %v1556, 0
    %1559 = vmatpush.msra.mxu0 0.0
    %1560 = vmatpush.msra.mxu0 0.0
    %1561 = vmatpush.msra.mxu0 0.0
    %1562 = vmatpush.msra.mxu0 0.0
    %1563 = vmatpush.msra.mxu0 0.0
    %1564 = vmatpush.msra.mxu0 0.0
    %1565 = vmatpush.msra.mxu0 0.0
    %1566 = vmatpush.msra.mxu0 0.0
    %1567 = vmatpush.msra.mxu0 0.0
    %1568 = vmatpush.msra.mxu0 0.0
    %1569 = vmatpush.msra.mxu0 0.0
    %1570 = vmatpush.msra.mxu0 0.0
    %1571 = vmatpush.msra.mxu0 %v1413
    %1572 = vmatpush.msra.mxu0 %v1412
    %1573 = vmatpush.msra.mxu0 %v1411
    %1574 = vmatpush.msra.mxu0 %v1410
    %1575 = vmatmul.f32.gmra.mxu0 %v1557
    %v1576 = vpop.f32.mrf.mxu0
    %v1577 = vadd.f32 0.0, %v1576
    %1578 = vdwg.mxu0
    %v1580 = vrot.slane %v1577, 4
    %v1582 = vadd.f32 %v1442, %v1580
    %v1583 = vmul.f32 %v1582, 0.5
    %v1584 = vtanh.pop %v1583
    %v1585 = vadd.f32 %v1584, 1.0
    %v1586 = vmul.f32 %v1585, 0.5
    %v1587 = vtanh.pop %v1582
    %v1589 = vrot.slane %v1546, 6
    %v1591 = vmul.f32 %v1586, %v1589
    %1593 = vrot.lane.b32.xlu0 %v1587, 64
    %v1594 = vpop.permute.xlu0 %1593
    %v1596 = vmul.f32 %v1586, %v1594
    %1598 = vrot.lane.b32.xlu0 %v1596, 32
    %v1599 = vpop.permute.xlu0 %1598
    %v1601 = vadd.f32 %v1591, %v1599
    %v1602 = vtanh.pop %v1601
    %1604 = vrot.lane.b32.xlu0 %v1602, 64
    %v1605 = vpop.permute.xlu0 %1604
    %v1607 = vmul.f32 %v1586, %v1605
    %v1609 = vrot.slane %v1607, 4
    %1610 = vrot.lane.b32.xlu0 %v1609, 32
    %v1611 = vpop.permute.xlu0 %1610
    %v1612 = vsel %vm92, %v1611, 0
    %1614 = vmatpush.msra.mxu0 0.0
    %1615 = vmatpush.msra.mxu0 0.0
    %1616 = vmatpush.msra.mxu0 0.0
    %1617 = vmatpush.msra.mxu0 0.0
    %1618 = vmatpush.msra.mxu0 0.0
    %1619 = vmatpush.msra.mxu0 0.0
    %1620 = vmatpush.msra.mxu0 0.0
    %1621 = vmatpush.msra.mxu0 0.0
    %1622 = vmatpush.msra.mxu0 0.0
    %1623 = vmatpush.msra.mxu0 0.0
    %1624 = vmatpush.msra.mxu0 0.0
    %1625 = vmatpush.msra.mxu0 0.0
    %1626 = vmatpush.msra.mxu0 %v1413
    %1627 = vmatpush.msra.mxu0 %v1412
    %1628 = vmatpush.msra.mxu0 %v1411
    %1629 = vmatpush.msra.mxu0 %v1410
    %1630 = vmatmul.f32.gmra.mxu0 %v1612
    %v1631 = vpop.f32.mrf.mxu0
    %v1632 = vadd.f32 0.0, %v1631
    %1633 = vdwg.mxu0
    %v1635 = vrot.slane %v1632, 2
    %v1637 = vadd.f32 %v1442, %v1635
    %v1638 = vmul.f32 %v1637, 0.5
    %v1639 = vtanh.pop %v1638
    %v1640 = vadd.f32 %v1639, 1.0
    %v1641 = vmul.f32 %v1640, 0.5
    %v1642 = vtanh.pop %v1637
    %v1644 = vrot.slane %v1601, 6
    %v1646 = vmul.f32 %v1641, %v1644
    %1648 = vrot.lane.b32.xlu0 %v1642, 64
    %v1649 = vpop.permute.xlu0 %1648
    %v1651 = vmul.f32 %v1641, %v1649
    %1653 = vrot.lane.b32.xlu0 %v1651, 32
    %v1654 = vpop.permute.xlu0 %1653
    %v1656 = vadd.f32 %v1646, %v1654
    %v1657 = vtanh.pop %v1656
    %1659 = vrot.lane.b32.xlu0 %v1657, 64
    %v1660 = vpop.permute.xlu0 %1659
    %v1662 = vmul.f32 %v1641, %v1660
    %v1664 = vrot.slane %v1662, 6
    %1665 = vrot.lane.b32.xlu0 %v1664, 32
    %v1666 = vpop.permute.xlu0 %1665
    %v1667 = vsel %vm92, %v1666, 0
    %1669 = vmatpush.msra.mxu0 0.0
    %1670 = vmatpush.msra.mxu0 0.0
    %1671 = vmatpush.msra.mxu0 0.0
    %1672 = vmatpush.msra.mxu0 0.0
    %1673 = vmatpush.msra.mxu0 0.0
    %1674 = vmatpush.msra.mxu0 0.0
    %1675 = vmatpush.msra.mxu0 0.0
    %1676 = vmatpush.msra.mxu0 0.0
    %1677 = vmatpush.msra.mxu0 0.0
    %1678 = vmatpush.msra.mxu0 0.0
    %1679 = vmatpush.msra.mxu0 0.0
    %1680 = vmatpush.msra.mxu0 0.0
    %1681 = vmatpush.msra.mxu0 %v1413
    %1682 = vmatpush.msra.mxu0 %v1412
    %1683 = vmatpush.msra.mxu0 %v1411
    %1684 = vmatpush.msra.mxu0 %v1410
    %1685 = vmatmul.f32.gmra.mxu0 %v1667
    %v1686 = vpop.f32.mrf.mxu0
    %v1687 = vadd.f32 0.0, %v1686
    %1688 = vdwg.mxu0
    %v1689 = vadd.f32 %v1445, %v1687
    %v1690 = vmul.f32 %v1689, 0.5
    %v1691 = vtanh.pop %v1690
    %v1692 = vadd.f32 %v1691, 1.0
    %v1693 = vmul.f32 %v1692, 0.5
    %v1694 = vtanh.pop %v1689
    %v1696 = vrot.slane %v1656, 6
    %v1698 = vmul.f32 %v1693, %v1696
    %1700 = vrot.lane.b32.xlu0 %v1694, 64
    %v1701 = vpop.permute.xlu0 %1700
    %v1703 = vmul.f32 %v1693, %v1701
    %1705 = vrot.lane.b32.xlu0 %v1703, 32
    %v1706 = vpop.permute.xlu0 %1705
    %v1708 = vadd.f32 %v1698, %v1706
    %v1709 = vtanh.pop %v1708
    %1711 = vrot.lane.b32.xlu0 %v1709, 64
    %v1712 = vpop.permute.xlu0 %1711
    %v1714 = vmul.f32 %v1693, %v1712
    %1716 = vrot.lane.b32.xlu0 %v1714, 32
    %v1717 = vpop.permute.xlu0 %1716
    %v1718 = vsel %vm92, %v1717, 0
    %1720 = vmatpush.msra.mxu0 0.0
    %1721 = vmatpush.msra.mxu0 0.0
    %1722 = vmatpush.msra.mxu0 0.0
    %1723 = vmatpush.msra.mxu0 0.0
    %1724 = vmatpush.msra.mxu0 0.0
    %1725 = vmatpush.msra.mxu0 0.0
    %1726 = vmatpush.msra.mxu0 0.0
    %1727 = vmatpush.msra.mxu0 0.0
    %1728 = vmatpush.msra.mxu0 0.0
    %1729 = vmatpush.msra.mxu0 0.0
    %1730 = vmatpush.msra.mxu0 0.0
    %1731 = vmatpush.msra.mxu0 0.0
    %1732 = vmatpush.msra.mxu0 %v1413
    %1733 = vmatpush.msra.mxu0 %v1412
    %1734 = vmatpush.msra.mxu0 %v1411
    %1735 = vmatpush.msra.mxu0 %v1410
    %1736 = vmatmul.f32.gmra.mxu0 %v1718
    %v1737 = vpop.f32.mrf.mxu0
    %v1738 = vadd.f32 0.0, %v1737
    %1739 = vdwg.mxu0
    %v1741 = vrot.slane %v1738, 6
    %v1743 = vadd.f32 %v1445, %v1741
    %v1744 = vmul.f32 %v1743, 0.5
    %v1745 = vtanh.pop %v1744
    %v1746 = vadd.f32 %v1745, 1.0
    %v1747 = vmul.f32 %v1746, 0.5
    %v1748 = vtanh.pop %v1743
    %v1750 = vrot.slane %v1708, 6
    %v1752 = vmul.f32 %v1747, %v1750
    %1754 = vrot.lane.b32.xlu0 %v1748, 64
    %v1755 = vpop.permute.xlu0 %1754
    %v1757 = vmul.f32 %v1747, %v1755
    %1759 = vrot.lane.b32.xlu0 %v1757, 32
    %v1760 = vpop.permute.xlu0 %1759
    %v1762 = vadd.f32 %v1752, %v1760
    %v1763 = vtanh.pop %v1762
    %1765 = vrot.lane.b32.xlu0 %v1763, 64
    %v1766 = vpop.permute.xlu0 %1765
    %v1768 = vmul.f32 %v1747, %v1766
    %v1770 = vrot.slane %v1768, 2
    %1771 = vrot.lane.b32.xlu0 %v1770, 32
    %v1772 = vpop.permute.xlu0 %1771
    %v1773 = vsel %vm92, %v1772, 0
    %1775 = vmatpush.msra.mxu0 0.0
    %1776 = vmatpush.msra.mxu0 0.0
    %1777 = vmatpush.msra.mxu0 0.0
    %1778 = vmatpush.msra.mxu0 0.0
    %1779 = vmatpush.msra.mxu0 0.0
    %1780 = vmatpush.msra.mxu0 0.0
    %1781 = vmatpush.msra.mxu0 0.0
    %1782 = vmatpush.msra.mxu0 0.0
    %1783 = vmatpush.msra.mxu0 0.0
    %1784 = vmatpush.msra.mxu0 0.0
    %1785 = vmatpush.msra.mxu0 0.0
    %1786 = vmatpush.msra.mxu0 0.0
    %1787 = vmatpush.msra.mxu0 %v1413
    %1788 = vmatpush.msra.mxu0 %v1412
    %1789 = vmatpush.msra.mxu0 %v1411
    %1790 = vmatpush.msra.mxu0 %v1410
    %1791 = vmatmul.f32.gmra.mxu0 %v1773
    %v1792 = vpop.f32.mrf.mxu0
    %v1793 = vadd.f32 0.0, %v1792
    %1794 = vdwg.mxu0
    %v1796 = vrot.slane %v1793, 4
    %v1798 = vadd.f32 %v1445, %v1796
    %v1799 = vmul.f32 %v1798, 0.5
    %v1800 = vtanh.pop %v1799
    %v1801 = vadd.f32 %v1800, 1.0
    %v1802 = vmul.f32 %v1801, 0.5
    %v1803 = vtanh.pop %v1798
    %v1805 = vrot.slane %v1762, 6
    %v1807 = vmul.f32 %v1802, %v1805
    %1809 = vrot.lane.b32.xlu0 %v1803, 64
    %v1810 = vpop.permute.xlu0 %1809
    %v1812 = vmul.f32 %v1802, %v1810
    %1814 = vrot.lane.b32.xlu0 %v1812, 32
    %v1815 = vpop.permute.xlu0 %1814
    %v1817 = vadd.f32 %v1807, %v1815
    %v1818 = vtanh.pop %v1817
    %1820 = vrot.lane.b32.xlu0 %v1818, 64
    %v1821 = vpop.permute.xlu0 %1820
    %v1823 = vmul.f32 %v1802, %v1821
    %v1825 = vrot.slane %v1823, 4
    %1826 = vrot.lane.b32.xlu0 %v1825, 32
    %v1827 = vpop.permute.xlu0 %1826
    %v1828 = vsel %vm92, %v1827, 0
    %1830 = vmatpush.msra.mxu0 0.0
    %1831 = vmatpush.msra.mxu0 0.0
    %1832 = vmatpush.msra.mxu0 0.0
    %1833 = vmatpush.msra.mxu0 0.0
    %1834 = vmatpush.msra.mxu0 0.0
    %1835 = vmatpush.msra.mxu0 0.0
    %1836 = vmatpush.msra.mxu0 0.0
    %1837 = vmatpush.msra.mxu0 0.0
    %1838 = vmatpush.msra.mxu0 0.0
    %1839 = vmatpush.msra.mxu0 0.0
    %1840 = vmatpush.msra.mxu0 0.0
    %1841 = vmatpush.msra.mxu0 0.0
    %1842 = vmatpush.msra.mxu0 %v1413
    %1843 = vmatpush.msra.mxu0 %v1412
    %1844 = vmatpush.msra.mxu0 %v1411
    %1845 = vmatpush.msra.mxu0 %v1410
    %1846 = vmatmul.f32.gmra.mxu0 %v1828
    %v1847 = vpop.f32.mrf.mxu0
    %v1848 = vadd.f32 0.0, %v1847
    %1849 = vdwg.mxu0
    %v1851 = vrot.slane %v1848, 2
    %v1853 = vadd.f32 %v1445, %v1851
    %v1854 = vmul.f32 %v1853, 0.5
    %v1855 = vtanh.pop %v1854
    %v1856 = vadd.f32 %v1855, 1.0
    %v1857 = vmul.f32 %v1856, 0.5
    %v1858 = vtanh.pop %v1853
    %v1860 = vrot.slane %v1817, 6
    %v1862 = vmul.f32 %v1857, %v1860
    %1864 = vrot.lane.b32.xlu0 %v1858, 64
    %v1865 = vpop.permute.xlu0 %1864
    %v1867 = vmul.f32 %v1857, %v1865
    %1869 = vrot.lane.b32.xlu0 %v1867, 32
    %v1870 = vpop.permute.xlu0 %1869
    %v1872 = vadd.f32 %v1862, %v1870
    %v1873 = vtanh.pop %v1872
    %1875 = vrot.lane.b32.xlu0 %v1873, 64
    %v1876 = vpop.permute.xlu0 %1875
    %v1878 = vmul.f32 %v1857, %v1876
    %vm1879 = vcmask 1041408
    %v1880 = vsel %vm1879, %v1498, %v1552
    %vm1881 = vcmask 1043456
    %v1882 = vsel %vm1881, %v1880, %v1607
    %vm1883 = vcmask 1045504
    %v1884 = vsel %vm1883, %v1882, %v1662
    %v1885 = vsel %vm1879, %v1714, %v1768
    %v1886 = vsel %vm1881, %v1885, %v1823
    %v1887 = vsel %vm1883, %v1886, %v1878
    %1889 = vrot.lane.b32.xlu0 %v1878, 32
    %v1890 = vpop.permute.xlu0 %1889
    %vm1892 = vcmask 261126
    %1893 = vst.msk [vmem:[#allocation6 - $0x6] sm:$0xc0] %vm1892, %v1890
    %1895 = vrot.lane.b32.xlu0 %v1872, 96
    %v1896 = vpop.permute.xlu0 %1895
    %1898 = vst.msk [vmem:[#allocation8 - $0x6] sm:$0xc0] %vm1892, %v1896
    %v1899 = vld [vmem:[%s15] sm:$0xff]
    %v1900 = vld [vmem:[%s15 + $0x8] sm:$0xff]
    %v1901 = vld [vmem:[%s15 + $0x10] sm:$0xff]
    %v1902 = vld [vmem:[%s15 + $0x18] sm:$0xff]
    %v1903 = vld [vmem:[%s16] sm:$0xff]
    %v1904 = vld [vmem:[%s16 + $0x8] sm:$0xff]
    %v1905 = vld [vmem:[%s16 + $0x10] sm:$0xff]
    %v1906 = vld [vmem:[%s16 + $0x18] sm:$0xff]
    %v1907 = vld [vmem:[%s17] sm:$0x1]
    %v1909 = vperm.slane %v1907, 0
    %1913 = vrot.lane.b32.xlu0 %v1884, 32
    %v1914 = vpop.permute.xlu0 %1913
    %1915 = vrot.lane.b32.xlu0 %v1887, 32
    %v1916 = vpop.permute.xlu0 %1915
    %v1917 = vsel %vm92, %v1914, 0
    %v1919 = vsel %vm92, %v1916, 0
    %1921 = vmatpush.msra.mxu0 0.0
    %1922 = vmatpush.msra.mxu0 0.0
    %1923 = vmatpush.msra.mxu0 0.0
    %1924 = vmatpush.msra.mxu0 0.0
    %1925 = vmatpush.msra.mxu0 0.0
    %1926 = vmatpush.msra.mxu0 0.0
    %1927 = vmatpush.msra.mxu0 0.0
    %1928 = vmatpush.msra.mxu0 0.0
    %1929 = vmatpush.msra.mxu0 0.0
    %1930 = vmatpush.msra.mxu0 0.0
    %1931 = vmatpush.msra.mxu0 0.0
    %1932 = vmatpush.msra.mxu0 0.0
    %1933 = vmatpush.msra.mxu0 %v1902
    %1934 = vmatpush.msra.mxu0 %v1901
    %1935 = vmatpush.msra.mxu0 %v1900
    %1936 = vmatpush.msra.mxu0 %v1899
    %1937 = vmatmul.f32.gmra.mxu0 %v1917
    %v1938 = vpop.f32.mrf.mxu0
    %v1939 = vadd.f32 %v1909, %v1938
    %1940 = vmatmul.f32.gmra.mxu0 %v1919
    %v1941 = vpop.f32.mrf.mxu0
    %v1942 = vadd.f32 %v1909, %v1941
    %1943 = vdwg.mxu0
    %s1944 = scalar_lea.vmem %s10, 2
    %v1945 = vld [vmem:[%s1944] sm:$0x3]
    %s1946 = scalar_lea.vmem %s11, 2
    %v1947 = vld [vmem:[%s1946] sm:$0x3]
    %v1949 = vsel %vm92, %v1945, 0
    %1951 = vmatpush.msra.mxu0 0.0
    %1952 = vmatpush.msra.mxu0 0.0
    %1953 = vmatpush.msra.mxu0 0.0
    %1954 = vmatpush.msra.mxu0 0.0
    %1955 = vmatpush.msra.mxu0 0.0
    %1956 = vmatpush.msra.mxu0 0.0
    %1957 = vmatpush.msra.mxu0 0.0
    %1958 = vmatpush.msra.mxu0 0.0
    %1959 = vmatpush.msra.mxu0 0.0
    %1960 = vmatpush.msra.mxu0 0.0
    %1961 = vmatpush.msra.mxu0 0.0
    %1962 = vmatpush.msra.mxu0 0.0
    %1963 = vmatpush.msra.mxu0 %v1906
    %1964 = vmatpush.msra.mxu0 %v1905
    %1965 = vmatpush.msra.mxu0 %v1904
    %1966 = vmatpush.msra.mxu0 %v1903
    %1967 = vmatmul.f32.gmra.mxu0 %v1949
    %v1968 = vpop.f32.mrf.mxu0
    %v1969 = vadd.f32 0.0, %v1968
    %1970 = vdwg.mxu0
    %v1971 = vadd.f32 %v1939, %v1969
    %v1972 = vmul.f32 %v1971, 0.5
    %v1973 = vtanh.pop %v1972
    %v1974 = vadd.f32 %v1973, 1.0
    %v1975 = vmul.f32 %v1974, 0.5
    %v1976 = vtanh.pop %v1971
    %1978 = vrot.lane.b32.xlu0 %v1947, 32
    %v1979 = vpop.permute.xlu0 %1978
    %v1981 = vmul.f32 %v1975, %v1979
    %1983 = vrot.lane.b32.xlu0 %v1976, 64
    %v1984 = vpop.permute.xlu0 %1983
    %v1986 = vmul.f32 %v1975, %v1984
    %1988 = vrot.lane.b32.xlu0 %v1986, 32
    %v1989 = vpop.permute.xlu0 %1988
    %v1991 = vadd.f32 %v1981, %v1989
    %v1992 = vtanh.pop %v1991
    %1994 = vrot.lane.b32.xlu0 %v1992, 64
    %v1995 = vpop.permute.xlu0 %1994
    %v1997 = vmul.f32 %v1975, %v1995
    %1999 = vrot.lane.b32.xlu0 %v1997, 32
    %v2000 = vpop.permute.xlu0 %1999
    %v2001 = vsel %vm92, %v2000, 0
    %2003 = vmatpush.msra.mxu0 0.0
    %2004 = vmatpush.msra.mxu0 0.0
    %2005 = vmatpush.msra.mxu0 0.0
    %2006 = vmatpush.msra.mxu0 0.0
    %2007 = vmatpush.msra.mxu0 0.0
    %2008 = vmatpush.msra.mxu0 0.0
    %2009 = vmatpush.msra.mxu0 0.0
    %2010 = vmatpush.msra.mxu0 0.0
    %2011 = vmatpush.msra.mxu0 0.0
    %2012 = vmatpush.msra.mxu0 0.0
    %2013 = vmatpush.msra.mxu0 0.0
    %2014 = vmatpush.msra.mxu0 0.0
    %2015 = vmatpush.msra.mxu0 %v1906
    %2016 = vmatpush.msra.mxu0 %v1905
    %2017 = vmatpush.msra.mxu0 %v1904
    %2018 = vmatpush.msra.mxu0 %v1903
    %2019 = vmatmul.f32.gmra.mxu0 %v2001
    %v2020 = vpop.f32.mrf.mxu0
    %v2021 = vadd.f32 0.0, %v2020
    %2022 = vdwg.mxu0
    %v2024 = vrot.slane %v2021, 6
    %v2026 = vadd.f32 %v1939, %v2024
    %v2027 = vmul.f32 %v2026, 0.5
    %v2028 = vtanh.pop %v2027
    %v2029 = vadd.f32 %v2028, 1.0
    %v2030 = vmul.f32 %v2029, 0.5
    %v2031 = vtanh.pop %v2026
    %v2033 = vrot.slane %v1991, 6
    %v2035 = vmul.f32 %v2030, %v2033
    %2037 = vrot.lane.b32.xlu0 %v2031, 64
    %v2038 = vpop.permute.xlu0 %2037
    %v2040 = vmul.f32 %v2030, %v2038
    %2042 = vrot.lane.b32.xlu0 %v2040, 32
    %v2043 = vpop.permute.xlu0 %2042
    %v2045 = vadd.f32 %v2035, %v2043
    %v2046 = vtanh.pop %v2045
    %2048 = vrot.lane.b32.xlu0 %v2046, 64
    %v2049 = vpop.permute.xlu0 %2048
    %v2051 = vmul.f32 %v2030, %v2049
    %v2053 = vrot.slane %v2051, 2
    %2054 = vrot.lane.b32.xlu0 %v2053, 32
    %v2055 = vpop.permute.xlu0 %2054
    %v2056 = vsel %vm92, %v2055, 0
    %2058 = vmatpush.msra.mxu0 0.0
    %2059 = vmatpush.msra.mxu0 0.0
    %2060 = vmatpush.msra.mxu0 0.0
    %2061 = vmatpush.msra.mxu0 0.0
    %2062 = vmatpush.msra.mxu0 0.0
    %2063 = vmatpush.msra.mxu0 0.0
    %2064 = vmatpush.msra.mxu0 0.0
    %2065 = vmatpush.msra.mxu0 0.0
    %2066 = vmatpush.msra.mxu0 0.0
    %2067 = vmatpush.msra.mxu0 0.0
    %2068 = vmatpush.msra.mxu0 0.0
    %2069 = vmatpush.msra.mxu0 0.0
    %2070 = vmatpush.msra.mxu0 %v1906
    %2071 = vmatpush.msra.mxu0 %v1905
    %2072 = vmatpush.msra.mxu0 %v1904
    %2073 = vmatpush.msra.mxu0 %v1903
    %2074 = vmatmul.f32.gmra.mxu0 %v2056
    %v2075 = vpop.f32.mrf.mxu0
    %v2076 = vadd.f32 0.0, %v2075
    %2077 = vdwg.mxu0
    %v2079 = vrot.slane %v2076, 4
    %v2081 = vadd.f32 %v1939, %v2079
    %v2082 = vmul.f32 %v2081, 0.5
    %v2083 = vtanh.pop %v2082
    %v2084 = vadd.f32 %v2083, 1.0
    %v2085 = vmul.f32 %v2084, 0.5
    %v2086 = vtanh.pop %v2081
    %v2088 = vrot.slane %v2045, 6
    %v2090 = vmul.f32 %v2085, %v2088
    %2092 = vrot.lane.b32.xlu0 %v2086, 64
    %v2093 = vpop.permute.xlu0 %2092
    %v2095 = vmul.f32 %v2085, %v2093
    %2097 = vrot.lane.b32.xlu0 %v2095, 32
    %v2098 = vpop.permute.xlu0 %2097
    %v2100 = vadd.f32 %v2090, %v2098
    %v2101 = vtanh.pop %v2100
    %2103 = vrot.lane.b32.xlu0 %v2101, 64
    %v2104 = vpop.permute.xlu0 %2103
    %v2106 = vmul.f32 %v2085, %v2104
    %v2108 = vrot.slane %v2106, 4
    %2109 = vrot.lane.b32.xlu0 %v2108, 32
    %v2110 = vpop.permute.xlu0 %2109
    %v2111 = vsel %vm92, %v2110, 0
    %2113 = vmatpush.msra.mxu0 0.0
    %2114 = vmatpush.msra.mxu0 0.0
    %2115 = vmatpush.msra.mxu0 0.0
    %2116 = vmatpush.msra.mxu0 0.0
    %2117 = vmatpush.msra.mxu0 0.0
    %2118 = vmatpush.msra.mxu0 0.0
    %2119 = vmatpush.msra.mxu0 0.0
    %2120 = vmatpush.msra.mxu0 0.0
    %2121 = vmatpush.msra.mxu0 0.0
    %2122 = vmatpush.msra.mxu0 0.0
    %2123 = vmatpush.msra.mxu0 0.0
    %2124 = vmatpush.msra.mxu0 0.0
    %2125 = vmatpush.msra.mxu0 %v1906
    %2126 = vmatpush.msra.mxu0 %v1905
    %2127 = vmatpush.msra.mxu0 %v1904
    %2128 = vmatpush.msra.mxu0 %v1903
    %2129 = vmatmul.f32.gmra.mxu0 %v2111
    %v2130 = vpop.f32.mrf.mxu0
    %v2131 = vadd.f32 0.0, %v2130
    %2132 = vdwg.mxu0
    %v2134 = vrot.slane %v2131, 2
    %v2136 = vadd.f32 %v1939, %v2134
    %v2137 = vmul.f32 %v2136, 0.5
    %v2138 = vtanh.pop %v2137
    %v2139 = vadd.f32 %v2138, 1.0
    %v2140 = vmul.f32 %v2139, 0.5
    %v2141 = vtanh.pop %v2136
    %v2143 = vrot.slane %v2100, 6
    %v2145 = vmul.f32 %v2140, %v2143
    %2147 = vrot.lane.b32.xlu0 %v2141, 64
    %v2148 = vpop.permute.xlu0 %2147
    %v2150 = vmul.f32 %v2140, %v2148
    %2152 = vrot.lane.b32.xlu0 %v2150, 32
    %v2153 = vpop.permute.xlu0 %2152
    %v2155 = vadd.f32 %v2145, %v2153
    %v2156 = vtanh.pop %v2155
    %2158 = vrot.lane.b32.xlu0 %v2156, 64
    %v2159 = vpop.permute.xlu0 %2158
    %v2161 = vmul.f32 %v2140, %v2159
    %v2163 = vrot.slane %v2161, 6
    %2164 = vrot.lane.b32.xlu0 %v2163, 32
    %v2165 = vpop.permute.xlu0 %2164
    %v2166 = vsel %vm92, %v2165, 0
    %2168 = vmatpush.msra.mxu0 0.0
    %2169 = vmatpush.msra.mxu0 0.0
    %2170 = vmatpush.msra.mxu0 0.0
    %2171 = vmatpush.msra.mxu0 0.0
    %2172 = vmatpush.msra.mxu0 0.0
    %2173 = vmatpush.msra.mxu0 0.0
    %2174 = vmatpush.msra.mxu0 0.0
    %2175 = vmatpush.msra.mxu0 0.0
    %2176 = vmatpush.msra.mxu0 0.0
    %2177 = vmatpush.msra.mxu0 0.0
    %2178 = vmatpush.msra.mxu0 0.0
    %2179 = vmatpush.msra.mxu0 0.0
    %2180 = vmatpush.msra.mxu0 %v1906
    %2181 = vmatpush.msra.mxu0 %v1905
    %2182 = vmatpush.msra.mxu0 %v1904
    %2183 = vmatpush.msra.mxu0 %v1903
    %2184 = vmatmul.f32.gmra.mxu0 %v2166
    %v2185 = vpop.f32.mrf.mxu0
    %v2186 = vadd.f32 0.0, %v2185
    %2187 = vdwg.mxu0
    %v2188 = vadd.f32 %v1942, %v2186
    %v2189 = vmul.f32 %v2188, 0.5
    %v2190 = vtanh.pop %v2189
    %v2191 = vadd.f32 %v2190, 1.0
    %v2192 = vmul.f32 %v2191, 0.5
    %v2193 = vtanh.pop %v2188
    %v2195 = vrot.slane %v2155, 6
    %v2197 = vmul.f32 %v2192, %v2195
    %2199 = vrot.lane.b32.xlu0 %v2193, 64
    %v2200 = vpop.permute.xlu0 %2199
    %v2202 = vmul.f32 %v2192, %v2200
    %2204 = vrot.lane.b32.xlu0 %v2202, 32
    %v2205 = vpop.permute.xlu0 %2204
    %v2207 = vadd.f32 %v2197, %v2205
    %v2208 = vtanh.pop %v2207
    %2210 = vrot.lane.b32.xlu0 %v2208, 64
    %v2211 = vpop.permute.xlu0 %2210
    %v2213 = vmul.f32 %v2192, %v2211
    %2215 = vrot.lane.b32.xlu0 %v2213, 32
    %v2216 = vpop.permute.xlu0 %2215
    %v2217 = vsel %vm92, %v2216, 0
    %2219 = vmatpush.msra.mxu0 0.0
    %2220 = vmatpush.msra.mxu0 0.0
    %2221 = vmatpush.msra.mxu0 0.0
    %2222 = vmatpush.msra.mxu0 0.0
    %2223 = vmatpush.msra.mxu0 0.0
    %2224 = vmatpush.msra.mxu0 0.0
    %2225 = vmatpush.msra.mxu0 0.0
    %2226 = vmatpush.msra.mxu0 0.0
    %2227 = vmatpush.msra.mxu0 0.0
    %2228 = vmatpush.msra.mxu0 0.0
    %2229 = vmatpush.msra.mxu0 0.0
    %2230 = vmatpush.msra.mxu0 0.0
    %2231 = vmatpush.msra.mxu0 %v1906
    %2232 = vmatpush.msra.mxu0 %v1905
    %2233 = vmatpush.msra.mxu0 %v1904
    %2234 = vmatpush.msra.mxu0 %v1903
    %2235 = vmatmul.f32.gmra.mxu0 %v2217
    %v2236 = vpop.f32.mrf.mxu0
    %v2237 = vadd.f32 0.0, %v2236
    %2238 = vdwg.mxu0
    %v2240 = vrot.slane %v2237, 6
    %v2242 = vadd.f32 %v1942, %v2240
    %v2243 = vmul.f32 %v2242, 0.5
    %v2244 = vtanh.pop %v2243
    %v2245 = vadd.f32 %v2244, 1.0
    %v2246 = vmul.f32 %v2245, 0.5
    %v2247 = vtanh.pop %v2242
    %v2249 = vrot.slane %v2207, 6
    %v2251 = vmul.f32 %v2246, %v2249
    %2253 = vrot.lane.b32.xlu0 %v2247, 64
    %v2254 = vpop.permute.xlu0 %2253
    %v2256 = vmul.f32 %v2246, %v2254
    %2258 = vrot.lane.b32.xlu0 %v2256, 32
    %v2259 = vpop.permute.xlu0 %2258
    %v2261 = vadd.f32 %v2251, %v2259
    %v2262 = vtanh.pop %v2261
    %2264 = vrot.lane.b32.xlu0 %v2262, 64
    %v2265 = vpop.permute.xlu0 %2264
    %v2267 = vmul.f32 %v2246, %v2265
    %v2269 = vrot.slane %v2267, 2
    %2270 = vrot.lane.b32.xlu0 %v2269, 32
    %v2271 = vpop.permute.xlu0 %2270
    %v2272 = vsel %vm92, %v2271, 0
    %2274 = vmatpush.msra.mxu0 0.0
    %2275 = vmatpush.msra.mxu0 0.0
    %2276 = vmatpush.msra.mxu0 0.0
    %2277 = vmatpush.msra.mxu0 0.0
    %2278 = vmatpush.msra.mxu0 0.0
    %2279 = vmatpush.msra.mxu0 0.0
    %2280 = vmatpush.msra.mxu0 0.0
    %2281 = vmatpush.msra.mxu0 0.0
    %2282 = vmatpush.msra.mxu0 0.0
    %2283 = vmatpush.msra.mxu0 0.0
    %2284 = vmatpush.msra.mxu0 0.0
    %2285 = vmatpush.msra.mxu0 0.0
    %2286 = vmatpush.msra.mxu0 %v1906
    %2287 = vmatpush.msra.mxu0 %v1905
    %2288 = vmatpush.msra.mxu0 %v1904
    %2289 = vmatpush.msra.mxu0 %v1903
    %2290 = vmatmul.f32.gmra.mxu0 %v2272
    %v2291 = vpop.f32.mrf.mxu0
    %v2292 = vadd.f32 0.0, %v2291
    %2293 = vdwg.mxu0
    %v2295 = vrot.slane %v2292, 4
    %v2297 = vadd.f32 %v1942, %v2295
    %v2298 = vmul.f32 %v2297, 0.5
    %v2299 = vtanh.pop %v2298
    %v2300 = vadd.f32 %v2299, 1.0
    %v2301 = vmul.f32 %v2300, 0.5
    %v2302 = vtanh.pop %v2297
    %v2304 = vrot.slane %v2261, 6
    %v2306 = vmul.f32 %v2301, %v2304
    %2308 = vrot.lane.b32.xlu0 %v2302, 64
    %v2309 = vpop.permute.xlu0 %2308
    %v2311 = vmul.f32 %v2301, %v2309
    %2313 = vrot.lane.b32.xlu0 %v2311, 32
    %v2314 = vpop.permute.xlu0 %2313
    %v2316 = vadd.f32 %v2306, %v2314
    %v2317 = vtanh.pop %v2316
    %2319 = vrot.lane.b32.xlu0 %v2317, 64
    %v2320 = vpop.permute.xlu0 %2319
    %v2322 = vmul.f32 %v2301, %v2320
    %v2324 = vrot.slane %v2322, 4
    %2325 = vrot.lane.b32.xlu0 %v2324, 32
    %v2326 = vpop.permute.xlu0 %2325
    %v2327 = vsel %vm92, %v2326, 0
    %2329 = vmatpush.msra.mxu0 0.0
    %2330 = vmatpush.msra.mxu0 0.0
    %2331 = vmatpush.msra.mxu0 0.0
    %2332 = vmatpush.msra.mxu0 0.0
    %2333 = vmatpush.msra.mxu0 0.0
    %2334 = vmatpush.msra.mxu0 0.0
    %2335 = vmatpush.msra.mxu0 0.0
    %2336 = vmatpush.msra.mxu0 0.0
    %2337 = vmatpush.msra.mxu0 0.0
    %2338 = vmatpush.msra.mxu0 0.0
    %2339 = vmatpush.msra.mxu0 0.0
    %2340 = vmatpush.msra.mxu0 0.0
    %2341 = vmatpush.msra.mxu0 %v1906
    %2342 = vmatpush.msra.mxu0 %v1905
    %2343 = vmatpush.msra.mxu0 %v1904
    %2344 = vmatpush.msra.mxu0 %v1903
    %2345 = vmatmul.f32.gmra.mxu0 %v2327
    %v2346 = vpop.f32.mrf.mxu0
    %v2347 = vadd.f32 0.0, %v2346
    %2348 = vdwg.mxu0
    %v2350 = vrot.slane %v2347, 2
    %v2352 = vadd.f32 %v1942, %v2350
    %v2353 = vmul.f32 %v2352, 0.5
    %v2354 = vtanh.pop %v2353
    %v2355 = vadd.f32 %v2354, 1.0
    %v2356 = vmul.f32 %v2355, 0.5
    %v2357 = vtanh.pop %v2352
    %v2359 = vrot.slane %v2316, 6
    %v2361 = vmul.f32 %v2356, %v2359
    %2363 = vrot.lane.b32.xlu0 %v2357, 64
    %v2364 = vpop.permute.xlu0 %2363
    %v2366 = vmul.f32 %v2356, %v2364
    %2368 = vrot.lane.b32.xlu0 %v2366, 32
    %v2369 = vpop.permute.xlu0 %2368
    %v2371 = vadd.f32 %v2361, %v2369
    %v2372 = vtanh.pop %v2371
    %2374 = vrot.lane.b32.xlu0 %v2372, 64
    %v2375 = vpop.permute.xlu0 %2374
    %v2377 = vmul.f32 %v2356, %v2375
    %v2378 = vsel %vm1879, %v1997, %v2051
    %v2379 = vsel %vm1881, %v2378, %v2106
    %v2380 = vsel %vm1883, %v2379, %v2161
    %v2381 = vsel %vm1879, %v2213, %v2267
    %v2382 = vsel %vm1881, %v2381, %v2322
    %v2383 = vsel %vm1883, %v2382, %v2377
    %2385 = vrot.lane.b32.xlu0 %v2377, 32
    %v2386 = vpop.permute.xlu0 %2385
    %s2388 = scalar_lea.vmem [#allocation6], 2
    %2389 = vst.msk [vmem:[%s2388 - $0x6] sm:$0xc0] %vm1892, %v2386
    %2391 = vrot.lane.b32.xlu0 %v2371, 96
    %v2392 = vpop.permute.xlu0 %2391
    %s2394 = scalar_lea.vmem [#allocation8], 2
    %2395 = vst.msk [vmem:[%s2394 - $0x6] sm:$0xc0] %vm1892, %v2392
    %v2396 = vld [vmem:[%s18] sm:$0xff]
    %v2397 = vld [vmem:[%s18 + $0x8] sm:$0xff]
    %v2398 = vld [vmem:[%s18 + $0x10] sm:$0xff]
    %v2399 = vld [vmem:[%s18 + $0x18] sm:$0xff]
    %v2400 = vld [vmem:[%s19] sm:$0x1]
    %v2402 = vperm.slane %v2400, 0
    %2406 = vrot.lane.b32.xlu0 %v2380, 32
    %v2407 = vpop.permute.xlu0 %2406
    %2408 = vrot.lane.b32.xlu0 %v2383, 32
    %v2409 = vpop.permute.xlu0 %2408
    %v2410 = vsel %vm92, %v2407, 0
    %v2412 = vsel %vm92, %v2409, 0
    %2414 = vmatpush.msra.mxu0 0.0
    %2415 = vmatpush.msra.mxu0 0.0
    %2416 = vmatpush.msra.mxu0 0.0
    %2417 = vmatpush.msra.mxu0 0.0
    %2418 = vmatpush.msra.mxu0 0.0
    %2419 = vmatpush.msra.mxu0 0.0
    %2420 = vmatpush.msra.mxu0 0.0
    %2421 = vmatpush.msra.mxu0 0.0
    %2422 = vmatpush.msra.mxu0 0.0
    %2423 = vmatpush.msra.mxu0 0.0
    %2424 = vmatpush.msra.mxu0 0.0
    %2425 = vmatpush.msra.mxu0 0.0
    %2426 = vmatpush.msra.mxu0 %v2399
    %2427 = vmatpush.msra.mxu0 %v2398
    %2428 = vmatpush.msra.mxu0 %v2397
    %2429 = vmatpush.msra.mxu0 %v2396
    %2430 = vmatmul.f32.gmra.mxu0 %v2410
    %v2431 = vpop.f32.mrf.mxu0
    %v2432 = vadd.f32 %v2402, %v2431
    %2433 = vmatmul.f32.gmra.mxu0 %v2412
    %v2434 = vpop.f32.mrf.mxu0
    %v2435 = vadd.f32 %v2402, %v2434
    %2436 = vdwg.mxu0
    %2437 = vst.msk [vmem:[#allocation4] sm:$0xff] %vm1376, %v2432
    %2438 = vst.msk [vmem:[#allocation4 + $0x8] sm:$0xff] %vm1376, %v2435
    // Predicated region
    $region82: #{rnn_model_forward.1} parent=1 // pred_check
      _
    $region83: #{rnn_model_forward.1} parent=1 // pred_check_branch
      %2440 = sbr.rel (0) target = $region85
    $region84: #{rnn_model_forward.1} parent=1 // pred_region
      %2442 = vsyncadd [#allocation5], 0
      %s2443 = sshll.u32 [#allocation4], 4
      %s2444 = int_to_ptr.vmem [resolvable:$true] %s2443
      %s2445 = sshll.u32 %s20, 4
      %s2446 = int_to_ptr.hbm [resolvable:$true] %s2445
      %2451 = dma.vmem_to_hbm [thread:$0]  %s2444, 256, %s2446, [#allocation5], 128, 128, 8
    $region85: #{rnn_model_forward.1} parent=1 // pred_fallthru
      _
    // Predicated region
    $region86: #{rnn_model_forward.1} parent=1 // pred_check
      _
    $region87: #{rnn_model_forward.1} parent=1 // pred_check_branch
      %2453 = sbr.rel (0) target = $region89
    $region88: #{rnn_model_forward.1} parent=1 // pred_region
      %2455 = vsyncadd [#allocation7], 0
      %s2456 = sshll.u32 [#allocation6], 4
      %s2457 = int_to_ptr.vmem [resolvable:$true] %s2456
      %s2458 = sshll.u32 %s21, 4
      %s2459 = int_to_ptr.hbm [resolvable:$true] %s2458
      %2464 = dma.vmem_to_hbm [thread:$0]  %s2457, 64, %s2459, [#allocation7], 32, 32, 2
    $region89: #{rnn_model_forward.1} parent=1 // pred_fallthru
      _
    // Predicated region
    $region90: #{rnn_model_forward.1} parent=1 // pred_check
      _
    $region91: #{rnn_model_forward.1} parent=1 // pred_check_branch
      %2466 = sbr.rel (0) target = $region93
    $region92: #{rnn_model_forward.1} parent=1 // pred_region
      %2468 = vsyncadd [#allocation7], 0
      %s2469 = sshll.u32 [#allocation8], 4
      %s2470 = int_to_ptr.vmem [resolvable:$true] %s2469
      %s2471 = sshll.u32 %s22, 4
      %s2472 = int_to_ptr.hbm [resolvable:$true] %s2471
      %2477 = dma.vmem_to_hbm [thread:$0]  %s2470, 64, %s2472, [#allocation7], 32, 32, 2
    $region93: #{rnn_model_forward.1} parent=1 // pred_fallthru
      _
    // Predicated region
    $region94: #{rnn_model_forward.1} parent=1 // pred_check
      _
    $region95: #{rnn_model_forward.1} parent=1 // pred_check_branch
      %2479 = sbr.rel (0) target = $region97
    $region96: #{rnn_model_forward.1} parent=1 // pred_region
      %2481 = dma.done [#allocation5], 256
    $region97: #{rnn_model_forward.1} parent=1 // pred_fallthru
      _
    // Predicated region
    $region98: #{rnn_model_forward.1} parent=1 // pred_check
      _
    $region99: #{rnn_model_forward.1} parent=1 // pred_check_branch
      %2483 = sbr.rel (0) target = $region101
    $region100: #{rnn_model_forward.1} parent=1 // pred_region
      %2485 = dma.done [#allocation7], 64
    $region101: #{rnn_model_forward.1} parent=1 // pred_fallthru
      _
    // Predicated region
    $region102: #{rnn_model_forward.1} parent=1 // pred_check
      _
    $region103: #{rnn_model_forward.1} parent=1 // pred_check_branch
      %2487 = sbr.rel (0) target = $region105
    $region104: #{rnn_model_forward.1} parent=1 // pred_region
      %2489 = dma.done [#allocation7], 64
    $region105: #{rnn_model_forward.1} parent=1 // pred_fallthru
      _
    %2490 = vsyncpa [#allocation5], 1
    %2491 = vsyncpa [#allocation7], 1

</llo_original>
